<compile_context>
chip_gen: v7x
topology: tpu7x:2x2x1
jax: 0.10.0
libtpu: 0.0.40
codegen_flags: <defaults>
</compile_context>

<pallas_src>
import jax
import jax.numpy as jnp
from jax import lax
from jax.experimental import pallas as pl
from jax.experimental.pallas import tpu as pltpu

# ---- problem sizes (small, consistent with the forward's shape conventions) ----
B, F, N, D = 2, 2, 128, 128        # batch, frames, points/frame, point feature dim
CLIP_D = 128                        # clip / adapted feature dim
K = 8                               # max instances per frame (instance-id vocabulary)
H, W = 16, 16                       # instance mask spatial size

# ---- sub-loss hyper-parameters (from the PyTorch __init__) ----
TEMP_INST, MARGIN_INST = 0.1, 1.0
INTRA_W, INTER_W, COMPACT_W = 1.0, 1.0, 0.5
TEMP_SEM, MARGIN_SEM = 0.1, 0.2
TEMP_CONS, CONS_W, TEMPORAL_W = 0.1, 1.0, 0.5
LOSS_WEIGHTS = {
    "instance_discrimination": 1.0,
    "semantic_alignment": 1.0,
    "cross_frame_consistency": 0.5,
}

_EPS = 1e-8
_NEG = -1e9
MXU_DTYPE = jnp.bfloat16   # MXU operands only; all accumulation / softmax math stays f32


# -------------------------- in-kernel helpers --------------------------
def _l2norm(x):
    return x * lax.rsqrt(jnp.sum(x * x, axis=-1, keepdims=True) + _EPS)


def _lse_last(x):
    m = jnp.max(x, axis=-1, keepdims=True)
    return jnp.log(jnp.sum(jnp.exp(x - m), axis=-1, keepdims=True)) + m


def _lse_axis0(x):
    m = jnp.max(x, axis=0, keepdims=True)
    return jnp.log(jnp.sum(jnp.exp(x - m), axis=0, keepdims=True)) + m


def _dot_t(a, b):
    # a @ b.T  (contract last dims) — dot_general, no explicit transpose
    return lax.dot_general(a, b, (((a.ndim - 1,), (b.ndim - 1,)), ((), ())),
                           preferred_element_type=jnp.float32)


def _mm(a, b):
    # regular matmul a @ b in f32 accumulation
    return jnp.dot(a, b, preferred_element_type=jnp.float32)


# -------------------------- fused per-batch kernel --------------------------
def fused_loss_kernel(feat_ref, adapt_ref, text_ref, labels_ref, vis_ref, out_ref):
    labels_all = labels_ref[0]                       # (F, N) int32
    vis = vis_ref[0]                                 # (N, F) f32

    iota_k = lax.broadcasted_iota(jnp.int32, (K, N), 0)
    ii = lax.broadcasted_iota(jnp.int32, (K, K), 0)
    jj = lax.broadcasted_iota(jnp.int32, (K, K), 1)
    offdiag_kk = (ii != jj).astype(jnp.float32)
    diag_kk = 1.0 - offdiag_kk
    iin = lax.broadcasted_iota(jnp.int32, (N, N), 0)
    jjn = lax.broadcasted_iota(jnp.int32, (N, N), 1)
    diag_nn = (iin == jjn).astype(jnp.float32)
    ones_1n = jnp.ones((1, N), jnp.float32)

    inst_sum = 0.0
    sem_sum = 0.0
    xns = []                                          # per-frame normalized features (reused)

    for f in range(F):
        x = feat_ref[0, f]                            # (N, D)
        y = adapt_ref[0, f]                           # (N, CLIP_D)
        t = text_ref[0, f]                            # (K, CLIP_D)
        lab = labels_all[f:f + 1, :]                  # (1, N) int32

        # lane-dense one-hot (K, N) built in-kernel
        a_kn = (iota_k == lab).astype(jnp.float32)    # (K, N)
        counts = jnp.sum(a_kn, axis=1, keepdims=True)           # (K, 1)
        counts_row = _dot_t(ones_1n, a_kn)                      # (1, K)
        valid = (counts > 0.5).astype(jnp.float32)              # (K, 1)
        valid_row = (counts_row > 0.5).astype(jnp.float32)      # (1, K)
        pair_valid = valid * valid_row                          # (K, K)
        inv_counts = 1.0 / jnp.maximum(counts, 1.0)

        # ---- shared one-hot pooling (MXU, lane-dense 8x128 @ 128x128) ----
        a_mx = a_kn.astype(MXU_DTYPE)
        protos = _mm(a_mx, x.astype(MXU_DTYPE)) * inv_counts    # (K, D)
        pooled = _mm(a_mx, y.astype(MXU_DTYPE)) * inv_counts    # (K, CLIP_D)

        # ---- instance discrimination ----
        x_sq = jnp.sum(x * x, axis=-1, keepdims=True)           # (N, 1)
        xn = x * lax.rsqrt(x_sq + _EPS)                         # (N, D)
        p_sq = jnp.sum(protos * protos, axis=-1, keepdims=True) # (K, 1)
        pn = protos * lax.rsqrt(p_sq + _EPS)                    # (K, D)

        # intra: InfoNCE of each point vs instance prototypes, (K, N) layout
        logits = _dot_t(pn.astype(MXU_DTYPE), xn.astype(MXU_DTYPE)) / TEMP_INST   # (K, N)
        logits = jnp.where(valid > 0.5, logits, _NEG)
        lse = _lse_axis0(logits)                                 # (1, N)
        pos = jnp.sum(logits * a_kn, axis=0, keepdims=True)      # (1, N)
        intra = jnp.mean(lse - pos)

        # compactness: mean ||x_p - proto_{label(p)}||^2
        #            = (sum ||x||^2 - sum_k counts_k*||proto_k||^2) / N  (algebraic identity)
        compact = jnp.maximum(jnp.sum(x_sq) - jnp.sum(counts * p_sq), 0.0) / N

        # inter: hinge margin between distinct valid prototypes
        gram = _dot_t(pn, pn)                                    # (K, K)
        dist = jnp.sqrt(jnp.maximum(2.0 - 2.0 * gram, 0.0) + 1e-12)
        pair_mask = pair_valid * offdiag_kk
        hinge = jnp.maximum(MARGIN_INST - dist, 0.0) ** 2
        inter = jnp.sum(hinge * pair_mask) / jnp.maximum(jnp.sum(pair_mask), 1.0)

        inst_sum = inst_sum + (INTRA_W * intra + INTER_W * inter + COMPACT_W * compact)

        # ---- semantic alignment (reuses a_kn / counts / valid / pooling) ----
        pn_s = _l2norm(pooled)
        tn = _l2norm(t)
        sim = _dot_t(pn_s.astype(MXU_DTYPE), tn.astype(MXU_DTYPE))   # (K, K)

        slog = jnp.where(valid_row > 0.5, sim / TEMP_SEM, _NEG)
        lse_s = _lse_last(slog)                                      # (K, 1)
        pos_s = jnp.sum(slog * diag_kk, axis=-1, keepdims=True)      # (K, 1)
        n_valid = jnp.maximum(jnp.sum(valid), 1.0)
        ce = jnp.sum((lse_s - pos_s) * valid) / n_valid

        pos_sim = jnp.sum(sim * diag_kk, axis=-1, keepdims=True)     # (K, 1)
        neg_mask = offdiag_kk * pair_valid
        hinge_s = jnp.maximum(sim - pos_sim + MARGIN_SEM, 0.0) * neg_mask
        margin_loss = jnp.sum(hinge_s) / jnp.maximum(jnp.sum(neg_mask), 1.0)

        sem_sum = sem_sum + ce + margin_loss
        xns.append(xn)

    inst_mean = inst_sum / F
    sem_mean = sem_sum / F

    # ---- cross-frame consistency (normalization hoisted: xns computed once per frame) ----
    cons_sum = 0.0
    temporal_sum = 0.0
    n_pairs = 0
    n_adj = 0
    for f in range(F):
        for g in range(f + 1, F):
            w = vis[:, f:f + 1] * vis[:, g:g + 1]                    # (N, 1) co-visibility
            wsum = jnp.maximum(jnp.sum(w), 1.0)
            sim = _dot_t(xns[f].astype(MXU_DTYPE),
                         xns[g].astype(MXU_DTYPE)) / TEMP_CONS       # (N, N)
            pos = jnp.sum(sim * diag_nn, axis=-1, keepdims=True)     # (N, 1)
            lse = _lse_last(sim)                                     # (N, 1)
            cons_sum = cons_sum + jnp.sum((lse - pos) * w) / wsum
            n_pairs += 1
            if g == f + 1:                                           # temporal (adjacent) term
                cos_pos = pos * TEMP_CONS                            # undo temperature → cosine
                temporal_sum = temporal_sum + jnp.sum((1.0 - cos_pos) * w) / wsum
                n_adj += 1

    cons_total = (CONS_W * (cons_sum / max(n_pairs, 1))
                  + TEMPORAL_W * (temporal_sum / max(n_adj, 1)))

    # lane-dense scalar output: losses in lanes 0..2 of one (1, 128) row
    lane = lax.broadcasted_iota(jnp.int32, (1, 128), 1)
    row = (jnp.where(lane == 0, inst_mean, 0.0)
           + jnp.where(lane == 1, sem_mean, 0.0)
           + jnp.where(lane == 2, cons_total, 0.0)).astype(jnp.float32)
    out_ref[0] = row


# -------------------------- pallas_call wrapper --------------------------
def fused_losses(point_features, adapted_features, text_features, labels, visibility):
    out = pl.pallas_call(
        fused_loss_kernel,
        out_shape=jax.ShapeDtypeStruct((B, 1, 128), jnp.float32),
        grid=(B,),
        in_specs=[
            pl.BlockSpec((1, F, N, D), lambda b: (b, 0, 0, 0)),
            pl.BlockSpec((1, F, N, CLIP_D), lambda b: (b, 0, 0, 0)),
            pl.BlockSpec((1, F, K, CLIP_D), lambda b: (b, 0, 0, 0)),
            pl.BlockSpec((1, F, N), lambda b: (b, 0, 0)),
            pl.BlockSpec((1, N, F), lambda b: (b, 0, 0)),
        ],
        out_specs=pl.BlockSpec((1, 1, 128), lambda b: (b, 0, 0)),
        compiler_params=pltpu.CompilerParams(dimension_semantics=("parallel",)),
    )(point_features, adapted_features, text_features, labels, visibility)
    return out[:, 0, 0], out[:, 0, 1], out[:, 0, 2]


# -------------------------- combined loss (thin XLA glue) --------------------------
@jax.jit
def combined_loss(point_features, adapted_features, text_features,
                  instance_masks, visibility, point_indices):
    # map each sampled point to its instance id via the point->pixel index table (glue gather)
    flat_masks = instance_masks.reshape(B, F, H * W)
    labels = jnp.take_along_axis(flat_masks, point_indices, axis=-1).astype(jnp.int32)  # (B, F, N)

    inst_b, sem_b, cons_b = fused_losses(point_features, adapted_features,
                                         text_features, labels, visibility)

    # per-batch mean over frames done in-kernel; mean over batch here — matches PyTorch loops
    final_instance_loss = jnp.mean(inst_b)
    final_semantic_loss = jnp.mean(sem_b)
    final_consistency_loss = jnp.mean(cons_b)

    total_loss = (LOSS_WEIGHTS["instance_discrimination"] * final_instance_loss
                  + LOSS_WEIGHTS["semantic_alignment"] * final_semantic_loss
                  + LOSS_WEIGHTS["cross_frame_consistency"] * final_consistency_loss)

    return {
        "total_loss": total_loss,
        "instance_discrimination_loss": final_instance_loss,
        "semantic_alignment_loss": final_semantic_loss,
        "cross_frame_consistency_loss": final_consistency_loss,
        "loss_weights": LOSS_WEIGHTS,
    }


if __name__ == "__main__":
    key = jax.random.PRNGKey(0)
    k1, k2, k3, k4, k5, k6 = jax.random.split(key, 6)

    point_features = jax.random.normal(k1, (B, F, N, D), jnp.float32)
    adapted_features = jax.random.normal(k2, (B, F, N, CLIP_D), jnp.float32)
    text_features = jax.random.normal(k3, (B, F, K, CLIP_D), jnp.float32)
    instance_masks = jax.random.randint(k4, (B, F, H, W), 0, K)            # integer instance ids
    point_indices = jax.random.randint(k5, (B, F, N), 0, H * W)            # point -> pixel map
    visibility = (jax.random.uniform(k6, (B, N, F)) > 0.3).astype(jnp.float32)  # [B, total_points, F]

    result = combined_loss(point_features, adapted_features, text_features,
                           instance_masks, visibility, point_indices)
    jax.block_until_ready(result["total_loss"])
    print("KERNEL_OK")
</pallas_src>

<mosaic_0001>
module attributes {stable_mosaic.version = 11 : i64} {
  func.func @fused_loss_kernel(%arg0: i32, %arg1: memref<1x2x128x128xf32, #tpu.memory_space<vmem>>, %arg2: memref<1x2x128x128xf32, #tpu.memory_space<vmem>>, %arg3: memref<1x2x8x128xf32, #tpu.memory_space<vmem>>, %arg4: memref<1x2x128xi32, #tpu.memory_space<vmem>>, %arg5: memref<1x128x2xf32, #tpu.memory_space<vmem>>, %arg6: memref<1x1x128xf32, #tpu.memory_space<vmem>>) attributes {dimension_semantics = [#tpu.dimension_semantics<parallel>], iteration_bounds = array<i64: 2>, scalar_prefetch = 0 : i64, scratch_operands = 0 : i64, tpu.core_type = #tpu.core_type<tc>, window_params = [{transform_indices = @transform_0, window_bounds = array<i64: 1, 2, 128, 128>}, {transform_indices = @transform_1, window_bounds = array<i64: 1, 2, 128, 128>}, {transform_indices = @transform_2, window_bounds = array<i64: 1, 2, 8, 128>}, {transform_indices = @transform_3, window_bounds = array<i64: 1, 2, 128>}, {transform_indices = @transform_4, window_bounds = array<i64: 1, 128, 2>}, {transform_indices = @transform_5, window_bounds = array<i64: 1, 1, 128>}]} {
    %c0 = arith.constant 0 : index
    %c0_0 = arith.constant 0 : index
    %c0_1 = arith.constant 0 : index
    %0 = vector.load %arg4[%c0, %c0_0, %c0_1] : memref<1x2x128xi32, #tpu.memory_space<vmem>>, vector<1x2x128xi32>
    %1 = vector.shape_cast %0 : vector<1x2x128xi32> to vector<2x128xi32>
    %c0_2 = arith.constant 0 : index
    %c0_3 = arith.constant 0 : index
    %c0_4 = arith.constant 0 : index
    %2 = vector.load %arg5[%c0_2, %c0_3, %c0_4] : memref<1x128x2xf32, #tpu.memory_space<vmem>>, vector<1x128x2xf32>
    %3 = vector.shape_cast %2 : vector<1x128x2xf32> to vector<128x2xf32>
    %4 = tpu.iota {dimensions = array<i32: 0>} : vector<8x128xi32>
    %5 = tpu.iota {dimensions = array<i32: 0>} : vector<8x8xi32>
    %6 = tpu.iota {dimensions = array<i32: 1>} : vector<8x8xi32>
    %7 = arith.cmpi ne, %5, %6 : vector<8x8xi32>
    %8 = arith.extui %7 : vector<8x8xi1> to vector<8x8xi32>
    %9 = arith.sitofp %8 : vector<8x8xi32> to vector<8x8xf32>
    %cst = arith.constant 1.000000e+00 : f32
    %10 = vector.broadcast %cst : f32 to vector<8x8xf32>
    %11 = arith.subf %10, %9 : vector<8x8xf32>
    %12 = tpu.iota {dimensions = array<i32: 0>} : vector<128x128xi32>
    %13 = tpu.iota {dimensions = array<i32: 1>} : vector<128x128xi32>
    %14 = arith.cmpi eq, %12, %13 : vector<128x128xi32>
    %15 = arith.extui %14 : vector<128x128xi1> to vector<128x128xi32>
    %16 = arith.sitofp %15 : vector<128x128xi32> to vector<128x128xf32>
    %cst_5 = arith.constant 1.000000e+00 : f32
    %17 = vector.broadcast %cst_5 : f32 to vector<1x128xf32>
    %c0_6 = arith.constant 0 : index
    %c0_7 = arith.constant 0 : index
    %c0_8 = arith.constant 0 : index
    %c0_9 = arith.constant 0 : index
    %18 = vector.load %arg1[%c0_6, %c0_7, %c0_8, %c0_9] : memref<1x2x128x128xf32, #tpu.memory_space<vmem>>, vector<1x1x128x128xf32>
    %19 = vector.shape_cast %18 : vector<1x1x128x128xf32> to vector<128x128xf32>
    %c0_10 = arith.constant 0 : index
    %c0_11 = arith.constant 0 : index
    %c0_12 = arith.constant 0 : index
    %c0_13 = arith.constant 0 : index
    %20 = vector.load %arg2[%c0_10, %c0_11, %c0_12, %c0_13] : memref<1x2x128x128xf32, #tpu.memory_space<vmem>>, vector<1x1x128x128xf32>
    %21 = vector.shape_cast %20 : vector<1x1x128x128xf32> to vector<128x128xf32>
    %c0_14 = arith.constant 0 : index
    %c0_15 = arith.constant 0 : index
    %c0_16 = arith.constant 0 : index
    %c0_17 = arith.constant 0 : index
    %22 = vector.load %arg3[%c0_14, %c0_15, %c0_16, %c0_17] : memref<1x2x8x128xf32, #tpu.memory_space<vmem>>, vector<1x1x8x128xf32>
    %23 = vector.shape_cast %22 : vector<1x1x8x128xf32> to vector<8x128xf32>
    %24 = vector.extract_strided_slice %1 {offsets = [0, 0], sizes = [1, 128], strides = [1, 1]} : vector<2x128xi32> to vector<1x128xi32>
    %25 = vector.broadcast %24 : vector<1x128xi32> to vector<8x128xi32>
    %26 = arith.cmpi eq, %4, %25 : vector<8x128xi32>
    %27 = arith.extui %26 : vector<8x128xi1> to vector<8x128xi32>
    %28 = arith.sitofp %27 : vector<8x128xi32> to vector<8x128xf32>
    %cst_18 = arith.constant dense<0.000000e+00> : vector<8xf32>
    %29 = vector.multi_reduction <add>, %28, %cst_18 [1] : vector<8x128xf32> to vector<8xf32>
    %30 = vector.shape_cast %29 : vector<8xf32> to vector<8x1xf32>
    %cst_19 = arith.constant dense<0.000000e+00> : vector<1x8xf32>
    %31 = tpu.matmul %17, %28, %cst_19 {dimension_numbers = #tpu.dot_dimension_numbers<[1], [1], [0], [0], [0, 0, 1, 0], [], []>} : vector<1x128xf32>, vector<8x128xf32>, vector<1x8xf32> -> vector<1x8xf32>
    %cst_20 = arith.constant 5.000000e-01 : f32
    %32 = vector.broadcast %cst_20 : f32 to vector<8x1xf32>
    %33 = arith.cmpf ogt, %30, %32 : vector<8x1xf32>
    %34 = arith.extui %33 : vector<8x1xi1> to vector<8x1xi32>
    %35 = arith.sitofp %34 : vector<8x1xi32> to vector<8x1xf32>
    %cst_21 = arith.constant 5.000000e-01 : f32
    %36 = vector.broadcast %cst_21 : f32 to vector<1x8xf32>
    %37 = arith.cmpf ogt, %31, %36 : vector<1x8xf32>
    %38 = arith.extui %37 : vector<1x8xi1> to vector<1x8xi32>
    %39 = arith.sitofp %38 : vector<1x8xi32> to vector<1x8xf32>
    %40 = vector.broadcast %35 : vector<8x1xf32> to vector<8x8xf32>
    %41 = vector.broadcast %39 : vector<1x8xf32> to vector<8x8xf32>
    %42 = arith.mulf %40, %41 : vector<8x8xf32>
    %cst_22 = arith.constant 1.000000e+00 : f32
    %43 = vector.broadcast %cst_22 : f32 to vector<8x1xf32>
    %44 = arith.maximumf %30, %43 : vector<8x1xf32>
    %cst_23 = arith.constant 1.000000e+00 : f32
    %45 = vector.broadcast %cst_23 : f32 to vector<8x1xf32>
    %46 = arith.divf %45, %44 : vector<8x1xf32>
    %47 = arith.truncf %28 : vector<8x128xf32> to vector<8x128xbf16>
    %48 = arith.truncf %19 : vector<128x128xf32> to vector<128x128xbf16>
    %cst_24 = arith.constant dense<0.000000e+00> : vector<8x128xf32>
    %49 = tpu.matmul %47, %48, %cst_24 {dimension_numbers = #tpu.dot_dimension_numbers<[1], [0], [0], [1], [0, 0, 1, 1], [], []>} : vector<8x128xbf16>, vector<128x128xbf16>, vector<8x128xf32> -> vector<8x128xf32>
    %50 = vector.broadcast %46 : vector<8x1xf32> to vector<8x128xf32>
    %51 = arith.mulf %49, %50 : vector<8x128xf32>
    %52 = arith.truncf %21 : vector<128x128xf32> to vector<128x128xbf16>
    %cst_25 = arith.constant dense<0.000000e+00> : vector<8x128xf32>
    %53 = tpu.matmul %47, %52, %cst_25 {dimension_numbers = #tpu.dot_dimension_numbers<[1], [0], [0], [1], [0, 0, 1, 1], [], []>} : vector<8x128xbf16>, vector<128x128xbf16>, vector<8x128xf32> -> vector<8x128xf32>
    %54 = vector.broadcast %46 : vector<8x1xf32> to vector<8x128xf32>
    %55 = arith.mulf %53, %54 : vector<8x128xf32>
    %56 = arith.mulf %19, %19 : vector<128x128xf32>
    %cst_26 = arith.constant dense<0.000000e+00> : vector<128xf32>
    %57 = vector.multi_reduction <add>, %56, %cst_26 [1] : vector<128x128xf32> to vector<128xf32>
    %58 = vector.shape_cast %57 : vector<128xf32> to vector<128x1xf32>
    %cst_27 = arith.constant 9.99999993E-9 : f32
    %59 = vector.broadcast %cst_27 : f32 to vector<128x1xf32>
    %60 = arith.addf %58, %59 : vector<128x1xf32>
    %61 = math.rsqrt %60 : vector<128x1xf32>
    %62 = vector.broadcast %61 : vector<128x1xf32> to vector<128x128xf32>
    %63 = arith.mulf %19, %62 : vector<128x128xf32>
    %64 = arith.mulf %51, %51 : vector<8x128xf32>
    %cst_28 = arith.constant dense<0.000000e+00> : vector<8xf32>
    %65 = vector.multi_reduction <add>, %64, %cst_28 [1] : vector<8x128xf32> to vector<8xf32>
    %66 = vector.shape_cast %65 : vector<8xf32> to vector<8x1xf32>
    %cst_29 = arith.constant 9.99999993E-9 : f32
    %67 = vector.broadcast %cst_29 : f32 to vector<8x1xf32>
    %68 = arith.addf %66, %67 : vector<8x1xf32>
    %69 = math.rsqrt %68 : vector<8x1xf32>
    %70 = vector.broadcast %69 : vector<8x1xf32> to vector<8x128xf32>
    %71 = arith.mulf %51, %70 : vector<8x128xf32>
    %72 = arith.truncf %71 : vector<8x128xf32> to vector<8x128xbf16>
    %73 = arith.truncf %63 : vector<128x128xf32> to vector<128x128xbf16>
    %cst_30 = arith.constant dense<0.000000e+00> : vector<8x128xf32>
    %74 = tpu.matmul %72, %73, %cst_30 {dimension_numbers = #tpu.dot_dimension_numbers<[1], [1], [0], [0], [0, 0, 1, 0], [], []>} : vector<8x128xbf16>, vector<128x128xbf16>, vector<8x128xf32> -> vector<8x128xf32>
    %cst_31 = arith.constant 1.000000e-01 : f32
    %75 = vector.broadcast %cst_31 : f32 to vector<8x128xf32>
    %76 = arith.divf %74, %75 : vector<8x128xf32>
    %cst_32 = arith.constant 5.000000e-01 : f32
    %77 = vector.broadcast %cst_32 : f32 to vector<8x1xf32>
    %78 = arith.cmpf ogt, %35, %77 : vector<8x1xf32>
    %cst_33 = arith.constant -1.000000e+09 : f32
    %79 = vector.shape_cast %78 : vector<8x1xi1> to vector<8x1xi1>
    %80 = vector.broadcast %79 : vector<8x1xi1> to vector<8x128xi1>
    %81 = vector.broadcast %cst_33 : f32 to vector<8x128xf32>
    %82 = arith.select %80, %76, %81 : vector<8x128xi1>, vector<8x128xf32>
    %cst_34 = arith.constant dense<0xFF800000> : vector<128xf32>
    %83 = vector.multi_reduction <maximumf>, %82, %cst_34 [0] : vector<8x128xf32> to vector<128xf32>
    %84 = vector.shape_cast %83 : vector<128xf32> to vector<1x128xf32>
    %85 = vector.broadcast %84 : vector<1x128xf32> to vector<8x128xf32>
    %86 = arith.subf %82, %85 : vector<8x128xf32>
    %87 = math.exp %86 : vector<8x128xf32>
    %cst_35 = arith.constant dense<0.000000e+00> : vector<128xf32>
    %88 = vector.multi_reduction <add>, %87, %cst_35 [0] : vector<8x128xf32> to vector<128xf32>
    %89 = vector.shape_cast %88 : vector<128xf32> to vector<1x128xf32>
    %90 = math.log %89 : vector<1x128xf32>
    %91 = arith.addf %90, %84 : vector<1x128xf32>
    %92 = arith.mulf %82, %28 : vector<8x128xf32>
    %cst_36 = arith.constant dense<0.000000e+00> : vector<128xf32>
    %93 = vector.multi_reduction <add>, %92, %cst_36 [0] : vector<8x128xf32> to vector<128xf32>
    %94 = vector.shape_cast %93 : vector<128xf32> to vector<1x128xf32>
    %95 = arith.subf %91, %94 : vector<1x128xf32>
    %96 = vector.shape_cast %95 : vector<1x128xf32> to vector<1x1x128xf32>
    %cst_37 = arith.constant dense<0.000000e+00> : vector<1xf32>
    %97 = vector.multi_reduction <add>, %96, %cst_37 [1, 2] : vector<1x1x128xf32> to vector<1xf32>
    %98 = vector.shape_cast %97 : vector<1xf32> to vector<1x1x1xf32>
    %99 = vector.extract %98[0, 0, 0] : f32 from vector<1x1x1xf32>
    %cst_38 = arith.constant 1.280000e+02 : f32
    %100 = arith.divf %99, %cst_38 : f32
    %101 = vector.shape_cast %58 : vector<128x1xf32> to vector<1x128x1xf32>
    %cst_39 = arith.constant dense<0.000000e+00> : vector<1xf32>
    %102 = vector.multi_reduction <add>, %101, %cst_39 [1, 2] : vector<1x128x1xf32> to vector<1xf32>
    %103 = vector.shape_cast %102 : vector<1xf32> to vector<1x1x1xf32>
    %104 = vector.extract %103[0, 0, 0] : f32 from vector<1x1x1xf32>
    %105 = arith.mulf %30, %66 : vector<8x1xf32>
    %106 = vector.shape_cast %105 : vector<8x1xf32> to vector<1x8x1xf32>
    %cst_40 = arith.constant dense<0.000000e+00> : vector<1xf32>
    %107 = vector.multi_reduction <add>, %106, %cst_40 [1, 2] : vector<1x8x1xf32> to vector<1xf32>
    %108 = vector.shape_cast %107 : vector<1xf32> to vector<1x1x1xf32>
    %109 = vector.extract %108[0, 0, 0] : f32 from vector<1x1x1xf32>
    %110 = arith.subf %104, %109 : f32
    %cst_41 = arith.constant 0.000000e+00 : f32
    %111 = arith.maximumf %110, %cst_41 : f32
    %cst_42 = arith.constant 1.280000e+02 : f32
    %112 = arith.divf %111, %cst_42 : f32
    %cst_43 = arith.constant dense<0.000000e+00> : vector<8x8xf32>
    %113 = tpu.matmul %71, %71, %cst_43 {dimension_numbers = #tpu.dot_dimension_numbers<[1], [1], [0], [0], [0, 0, 1, 0], [], []>} : vector<8x128xf32>, vector<8x128xf32>, vector<8x8xf32> -> vector<8x8xf32>
    %cst_44 = arith.constant 2.000000e+00 : f32
    %114 = vector.broadcast %cst_44 : f32 to vector<8x8xf32>
    %115 = arith.mulf %114, %113 : vector<8x8xf32>
    %cst_45 = arith.constant 2.000000e+00 : f32
    %116 = vector.broadcast %cst_45 : f32 to vector<8x8xf32>
    %117 = arith.subf %116, %115 : vector<8x8xf32>
    %cst_46 = arith.constant 0.000000e+00 : f32
    %118 = vector.broadcast %cst_46 : f32 to vector<8x8xf32>
    %119 = arith.maximumf %117, %118 : vector<8x8xf32>
    %cst_47 = arith.constant 9.99999996E-13 : f32
    %120 = vector.broadcast %cst_47 : f32 to vector<8x8xf32>
    %121 = arith.addf %119, %120 : vector<8x8xf32>
    %122 = math.sqrt %121 : vector<8x8xf32>
    %123 = arith.mulf %42, %9 : vector<8x8xf32>
    %cst_48 = arith.constant 1.000000e+00 : f32
    %124 = vector.broadcast %cst_48 : f32 to vector<8x8xf32>
    %125 = arith.subf %124, %122 : vector<8x8xf32>
    %cst_49 = arith.constant 0.000000e+00 : f32
    %126 = vector.broadcast %cst_49 : f32 to vector<8x8xf32>
    %127 = arith.maximumf %125, %126 : vector<8x8xf32>
    %128 = arith.mulf %127, %127 : vector<8x8xf32>
    %129 = arith.mulf %128, %123 : vector<8x8xf32>
    %130 = vector.shape_cast %129 : vector<8x8xf32> to vector<1x8x8xf32>
    %cst_50 = arith.constant dense<0.000000e+00> : vector<1xf32>
    %131 = vector.multi_reduction <add>, %130, %cst_50 [1, 2] : vector<1x8x8xf32> to vector<1xf32>
    %132 = vector.shape_cast %131 : vector<1xf32> to vector<1x1x1xf32>
    %133 = vector.extract %132[0, 0, 0] : f32 from vector<1x1x1xf32>
    %134 = vector.shape_cast %123 : vector<8x8xf32> to vector<1x8x8xf32>
    %cst_51 = arith.constant dense<0.000000e+00> : vector<1xf32>
    %135 = vector.multi_reduction <add>, %134, %cst_51 [1, 2] : vector<1x8x8xf32> to vector<1xf32>
    %136 = vector.shape_cast %135 : vector<1xf32> to vector<1x1x1xf32>
    %137 = vector.extract %136[0, 0, 0] : f32 from vector<1x1x1xf32>
    %cst_52 = arith.constant 1.000000e+00 : f32
    %138 = arith.maximumf %137, %cst_52 : f32
    %139 = arith.divf %133, %138 : f32
    %cst_53 = arith.constant 1.000000e+00 : f32
    %140 = arith.mulf %cst_53, %100 : f32
    %cst_54 = arith.constant 1.000000e+00 : f32
    %141 = arith.mulf %cst_54, %139 : f32
    %142 = arith.addf %140, %141 : f32
    %cst_55 = arith.constant 5.000000e-01 : f32
    %143 = arith.mulf %cst_55, %112 : f32
    %144 = arith.addf %142, %143 : f32
    %cst_56 = arith.constant 0.000000e+00 : f32
    %145 = arith.addf %cst_56, %144 : f32
    %146 = arith.mulf %55, %55 : vector<8x128xf32>
    %cst_57 = arith.constant dense<0.000000e+00> : vector<8xf32>
    %147 = vector.multi_reduction <add>, %146, %cst_57 [1] : vector<8x128xf32> to vector<8xf32>
    %148 = vector.shape_cast %147 : vector<8xf32> to vector<8x1xf32>
    %cst_58 = arith.constant 9.99999993E-9 : f32
    %149 = vector.broadcast %cst_58 : f32 to vector<8x1xf32>
    %150 = arith.addf %148, %149 : vector<8x1xf32>
    %151 = math.rsqrt %150 : vector<8x1xf32>
    %152 = vector.broadcast %151 : vector<8x1xf32> to vector<8x128xf32>
    %153 = arith.mulf %55, %152 : vector<8x128xf32>
    %154 = arith.mulf %23, %23 : vector<8x128xf32>
    %cst_59 = arith.constant dense<0.000000e+00> : vector<8xf32>
    %155 = vector.multi_reduction <add>, %154, %cst_59 [1] : vector<8x128xf32> to vector<8xf32>
    %156 = vector.shape_cast %155 : vector<8xf32> to vector<8x1xf32>
    %cst_60 = arith.constant 9.99999993E-9 : f32
    %157 = vector.broadcast %cst_60 : f32 to vector<8x1xf32>
    %158 = arith.addf %156, %157 : vector<8x1xf32>
    %159 = math.rsqrt %158 : vector<8x1xf32>
    %160 = vector.broadcast %159 : vector<8x1xf32> to vector<8x128xf32>
    %161 = arith.mulf %23, %160 : vector<8x128xf32>
    %162 = arith.truncf %153 : vector<8x128xf32> to vector<8x128xbf16>
    %163 = arith.truncf %161 : vector<8x128xf32> to vector<8x128xbf16>
    %cst_61 = arith.constant dense<0.000000e+00> : vector<8x8xf32>
    %164 = tpu.matmul %162, %163, %cst_61 {dimension_numbers = #tpu.dot_dimension_numbers<[1], [1], [0], [0], [0, 0, 1, 0], [], []>} : vector<8x128xbf16>, vector<8x128xbf16>, vector<8x8xf32> -> vector<8x8xf32>
    %cst_62 = arith.constant 5.000000e-01 : f32
    %165 = vector.broadcast %cst_62 : f32 to vector<1x8xf32>
    %166 = arith.cmpf ogt, %39, %165 : vector<1x8xf32>
    %cst_63 = arith.constant 1.000000e-01 : f32
    %167 = vector.broadcast %cst_63 : f32 to vector<8x8xf32>
    %168 = arith.divf %164, %167 : vector<8x8xf32>
    %cst_64 = arith.constant -1.000000e+09 : f32
    %169 = vector.shape_cast %166 : vector<1x8xi1> to vector<1x8xi1>
    %170 = vector.broadcast %169 : vector<1x8xi1> to vector<8x8xi1>
    %171 = vector.broadcast %cst_64 : f32 to vector<8x8xf32>
    %172 = arith.select %170, %168, %171 : vector<8x8xi1>, vector<8x8xf32>
    %cst_65 = arith.constant dense<0xFF800000> : vector<8xf32>
    %173 = vector.multi_reduction <maximumf>, %172, %cst_65 [1] : vector<8x8xf32> to vector<8xf32>
    %174 = vector.shape_cast %173 : vector<8xf32> to vector<8x1xf32>
    %175 = vector.broadcast %174 : vector<8x1xf32> to vector<8x8xf32>
    %176 = arith.subf %172, %175 : vector<8x8xf32>
    %177 = math.exp %176 : vector<8x8xf32>
    %cst_66 = arith.constant dense<0.000000e+00> : vector<8xf32>
    %178 = vector.multi_reduction <add>, %177, %cst_66 [1] : vector<8x8xf32> to vector<8xf32>
    %179 = vector.shape_cast %178 : vector<8xf32> to vector<8x1xf32>
    %180 = math.log %179 : vector<8x1xf32>
    %181 = arith.addf %180, %174 : vector<8x1xf32>
    %182 = arith.mulf %172, %11 : vector<8x8xf32>
    %cst_67 = arith.constant dense<0.000000e+00> : vector<8xf32>
    %183 = vector.multi_reduction <add>, %182, %cst_67 [1] : vector<8x8xf32> to vector<8xf32>
    %184 = vector.shape_cast %183 : vector<8xf32> to vector<8x1xf32>
    %185 = vector.shape_cast %35 : vector<8x1xf32> to vector<1x8x1xf32>
    %cst_68 = arith.constant dense<0.000000e+00> : vector<1xf32>
    %186 = vector.multi_reduction <add>, %185, %cst_68 [1, 2] : vector<1x8x1xf32> to vector<1xf32>
    %187 = vector.shape_cast %186 : vector<1xf32> to vector<1x1x1xf32>
    %188 = vector.extract %187[0, 0, 0] : f32 from vector<1x1x1xf32>
    %cst_69 = arith.constant 1.000000e+00 : f32
    %189 = arith.maximumf %188, %cst_69 : f32
    %190 = arith.subf %181, %184 : vector<8x1xf32>
    %191 = arith.mulf %190, %35 : vector<8x1xf32>
    %192 = vector.shape_cast %191 : vector<8x1xf32> to vector<1x8x1xf32>
    %cst_70 = arith.constant dense<0.000000e+00> : vector<1xf32>
    %193 = vector.multi_reduction <add>, %192, %cst_70 [1, 2] : vector<1x8x1xf32> to vector<1xf32>
    %194 = vector.shape_cast %193 : vector<1xf32> to vector<1x1x1xf32>
    %195 = vector.extract %194[0, 0, 0] : f32 from vector<1x1x1xf32>
    %196 = arith.divf %195, %189 : f32
    %197 = arith.mulf %164, %11 : vector<8x8xf32>
    %cst_71 = arith.constant dense<0.000000e+00> : vector<8xf32>
    %198 = vector.multi_reduction <add>, %197, %cst_71 [1] : vector<8x8xf32> to vector<8xf32>
    %199 = vector.shape_cast %198 : vector<8xf32> to vector<8x1xf32>
    %200 = arith.mulf %9, %42 : vector<8x8xf32>
    %201 = vector.broadcast %199 : vector<8x1xf32> to vector<8x8xf32>
    %202 = arith.subf %164, %201 : vector<8x8xf32>
    %cst_72 = arith.constant 2.000000e-01 : f32
    %203 = vector.broadcast %cst_72 : f32 to vector<8x8xf32>
    %204 = arith.addf %202, %203 : vector<8x8xf32>
    %cst_73 = arith.constant 0.000000e+00 : f32
    %205 = vector.broadcast %cst_73 : f32 to vector<8x8xf32>
    %206 = arith.maximumf %204, %205 : vector<8x8xf32>
    %207 = arith.mulf %206, %200 : vector<8x8xf32>
    %208 = vector.shape_cast %207 : vector<8x8xf32> to vector<1x8x8xf32>
    %cst_74 = arith.constant dense<0.000000e+00> : vector<1xf32>
    %209 = vector.multi_reduction <add>, %208, %cst_74 [1, 2] : vector<1x8x8xf32> to vector<1xf32>
    %210 = vector.shape_cast %209 : vector<1xf32> to vector<1x1x1xf32>
    %211 = vector.extract %210[0, 0, 0] : f32 from vector<1x1x1xf32>
    %212 = vector.shape_cast %200 : vector<8x8xf32> to vector<1x8x8xf32>
    %cst_75 = arith.constant dense<0.000000e+00> : vector<1xf32>
    %213 = vector.multi_reduction <add>, %212, %cst_75 [1, 2] : vector<1x8x8xf32> to vector<1xf32>
    %214 = vector.shape_cast %213 : vector<1xf32> to vector<1x1x1xf32>
    %215 = vector.extract %214[0, 0, 0] : f32 from vector<1x1x1xf32>
    %cst_76 = arith.constant 1.000000e+00 : f32
    %216 = arith.maximumf %215, %cst_76 : f32
    %217 = arith.divf %211, %216 : f32
    %cst_77 = arith.constant 0.000000e+00 : f32
    %218 = arith.addf %cst_77, %196 : f32
    %219 = arith.addf %218, %217 : f32
    %c0_78 = arith.constant 0 : index
    %c1 = arith.constant 1 : index
    %c0_79 = arith.constant 0 : index
    %c0_80 = arith.constant 0 : index
    %220 = vector.load %arg1[%c0_78, %c1, %c0_79, %c0_80] : memref<1x2x128x128xf32, #tpu.memory_space<vmem>>, vector<1x1x128x128xf32>
    %221 = vector.shape_cast %220 : vector<1x1x128x128xf32> to vector<128x128xf32>
    %c0_81 = arith.constant 0 : index
    %c1_82 = arith.constant 1 : index
    %c0_83 = arith.constant 0 : index
    %c0_84 = arith.constant 0 : index
    %222 = vector.load %arg2[%c0_81, %c1_82, %c0_83, %c0_84] : memref<1x2x128x128xf32, #tpu.memory_space<vmem>>, vector<1x1x128x128xf32>
    %223 = vector.shape_cast %222 : vector<1x1x128x128xf32> to vector<128x128xf32>
    %c0_85 = arith.constant 0 : index
    %c1_86 = arith.constant 1 : index
    %c0_87 = arith.constant 0 : index
    %c0_88 = arith.constant 0 : index
    %224 = vector.load %arg3[%c0_85, %c1_86, %c0_87, %c0_88] : memref<1x2x8x128xf32, #tpu.memory_space<vmem>>, vector<1x1x8x128xf32>
    %225 = vector.shape_cast %224 : vector<1x1x8x128xf32> to vector<8x128xf32>
    %226 = vector.extract_strided_slice %1 {offsets = [1, 0], sizes = [1, 128], strides = [1, 1]} : vector<2x128xi32> to vector<1x128xi32>
    %227 = vector.broadcast %226 : vector<1x128xi32> to vector<8x128xi32>
    %228 = arith.cmpi eq, %4, %227 : vector<8x128xi32>
    %229 = arith.extui %228 : vector<8x128xi1> to vector<8x128xi32>
    %230 = arith.sitofp %229 : vector<8x128xi32> to vector<8x128xf32>
    %cst_89 = arith.constant dense<0.000000e+00> : vector<8xf32>
    %231 = vector.multi_reduction <add>, %230, %cst_89 [1] : vector<8x128xf32> to vector<8xf32>
    %232 = vector.shape_cast %231 : vector<8xf32> to vector<8x1xf32>
    %cst_90 = arith.constant dense<0.000000e+00> : vector<1x8xf32>
    %233 = tpu.matmul %17, %230, %cst_90 {dimension_numbers = #tpu.dot_dimension_numbers<[1], [1], [0], [0], [0, 0, 1, 0], [], []>} : vector<1x128xf32>, vector<8x128xf32>, vector<1x8xf32> -> vector<1x8xf32>
    %cst_91 = arith.constant 5.000000e-01 : f32
    %234 = vector.broadcast %cst_91 : f32 to vector<8x1xf32>
    %235 = arith.cmpf ogt, %232, %234 : vector<8x1xf32>
    %236 = arith.extui %235 : vector<8x1xi1> to vector<8x1xi32>
    %237 = arith.sitofp %236 : vector<8x1xi32> to vector<8x1xf32>
    %cst_92 = arith.constant 5.000000e-01 : f32
    %238 = vector.broadcast %cst_92 : f32 to vector<1x8xf32>
    %239 = arith.cmpf ogt, %233, %238 : vector<1x8xf32>
    %240 = arith.extui %239 : vector<1x8xi1> to vector<1x8xi32>
    %241 = arith.sitofp %240 : vector<1x8xi32> to vector<1x8xf32>
    %242 = vector.broadcast %237 : vector<8x1xf32> to vector<8x8xf32>
    %243 = vector.broadcast %241 : vector<1x8xf32> to vector<8x8xf32>
    %244 = arith.mulf %242, %243 : vector<8x8xf32>
    %cst_93 = arith.constant 1.000000e+00 : f32
    %245 = vector.broadcast %cst_93 : f32 to vector<8x1xf32>
    %246 = arith.maximumf %232, %245 : vector<8x1xf32>
    %cst_94 = arith.constant 1.000000e+00 : f32
    %247 = vector.broadcast %cst_94 : f32 to vector<8x1xf32>
    %248 = arith.divf %247, %246 : vector<8x1xf32>
    %249 = arith.truncf %230 : vector<8x128xf32> to vector<8x128xbf16>
    %250 = arith.truncf %221 : vector<128x128xf32> to vector<128x128xbf16>
    %cst_95 = arith.constant dense<0.000000e+00> : vector<8x128xf32>
    %251 = tpu.matmul %249, %250, %cst_95 {dimension_numbers = #tpu.dot_dimension_numbers<[1], [0], [0], [1], [0, 0, 1, 1], [], []>} : vector<8x128xbf16>, vector<128x128xbf16>, vector<8x128xf32> -> vector<8x128xf32>
    %252 = vector.broadcast %248 : vector<8x1xf32> to vector<8x128xf32>
    %253 = arith.mulf %251, %252 : vector<8x128xf32>
    %254 = arith.truncf %223 : vector<128x128xf32> to vector<128x128xbf16>
    %cst_96 = arith.constant dense<0.000000e+00> : vector<8x128xf32>
    %255 = tpu.matmul %249, %254, %cst_96 {dimension_numbers = #tpu.dot_dimension_numbers<[1], [0], [0], [1], [0, 0, 1, 1], [], []>} : vector<8x128xbf16>, vector<128x128xbf16>, vector<8x128xf32> -> vector<8x128xf32>
    %256 = vector.broadcast %248 : vector<8x1xf32> to vector<8x128xf32>
    %257 = arith.mulf %255, %256 : vector<8x128xf32>
    %258 = arith.mulf %221, %221 : vector<128x128xf32>
    %cst_97 = arith.constant dense<0.000000e+00> : vector<128xf32>
    %259 = vector.multi_reduction <add>, %258, %cst_97 [1] : vector<128x128xf32> to vector<128xf32>
    %260 = vector.shape_cast %259 : vector<128xf32> to vector<128x1xf32>
    %cst_98 = arith.constant 9.99999993E-9 : f32
    %261 = vector.broadcast %cst_98 : f32 to vector<128x1xf32>
    %262 = arith.addf %260, %261 : vector<128x1xf32>
    %263 = math.rsqrt %262 : vector<128x1xf32>
    %264 = vector.broadcast %263 : vector<128x1xf32> to vector<128x128xf32>
    %265 = arith.mulf %221, %264 : vector<128x128xf32>
    %266 = arith.mulf %253, %253 : vector<8x128xf32>
    %cst_99 = arith.constant dense<0.000000e+00> : vector<8xf32>
    %267 = vector.multi_reduction <add>, %266, %cst_99 [1] : vector<8x128xf32> to vector<8xf32>
    %268 = vector.shape_cast %267 : vector<8xf32> to vector<8x1xf32>
    %cst_100 = arith.constant 9.99999993E-9 : f32
    %269 = vector.broadcast %cst_100 : f32 to vector<8x1xf32>
    %270 = arith.addf %268, %269 : vector<8x1xf32>
    %271 = math.rsqrt %270 : vector<8x1xf32>
    %272 = vector.broadcast %271 : vector<8x1xf32> to vector<8x128xf32>
    %273 = arith.mulf %253, %272 : vector<8x128xf32>
    %274 = arith.truncf %273 : vector<8x128xf32> to vector<8x128xbf16>
    %275 = arith.truncf %265 : vector<128x128xf32> to vector<128x128xbf16>
    %cst_101 = arith.constant dense<0.000000e+00> : vector<8x128xf32>
    %276 = tpu.matmul %274, %275, %cst_101 {dimension_numbers = #tpu.dot_dimension_numbers<[1], [1], [0], [0], [0, 0, 1, 0], [], []>} : vector<8x128xbf16>, vector<128x128xbf16>, vector<8x128xf32> -> vector<8x128xf32>
    %cst_102 = arith.constant 1.000000e-01 : f32
    %277 = vector.broadcast %cst_102 : f32 to vector<8x128xf32>
    %278 = arith.divf %276, %277 : vector<8x128xf32>
    %cst_103 = arith.constant 5.000000e-01 : f32
    %279 = vector.broadcast %cst_103 : f32 to vector<8x1xf32>
    %280 = arith.cmpf ogt, %237, %279 : vector<8x1xf32>
    %cst_104 = arith.constant -1.000000e+09 : f32
    %281 = vector.shape_cast %280 : vector<8x1xi1> to vector<8x1xi1>
    %282 = vector.broadcast %281 : vector<8x1xi1> to vector<8x128xi1>
    %283 = vector.broadcast %cst_104 : f32 to vector<8x128xf32>
    %284 = arith.select %282, %278, %283 : vector<8x128xi1>, vector<8x128xf32>
    %cst_105 = arith.constant dense<0xFF800000> : vector<128xf32>
    %285 = vector.multi_reduction <maximumf>, %284, %cst_105 [0] : vector<8x128xf32> to vector<128xf32>
    %286 = vector.shape_cast %285 : vector<128xf32> to vector<1x128xf32>
    %287 = vector.broadcast %286 : vector<1x128xf32> to vector<8x128xf32>
    %288 = arith.subf %284, %287 : vector<8x128xf32>
    %289 = math.exp %288 : vector<8x128xf32>
    %cst_106 = arith.constant dense<0.000000e+00> : vector<128xf32>
    %290 = vector.multi_reduction <add>, %289, %cst_106 [0] : vector<8x128xf32> to vector<128xf32>
    %291 = vector.shape_cast %290 : vector<128xf32> to vector<1x128xf32>
    %292 = math.log %291 : vector<1x128xf32>
    %293 = arith.addf %292, %286 : vector<1x128xf32>
    %294 = arith.mulf %284, %230 : vector<8x128xf32>
    %cst_107 = arith.constant dense<0.000000e+00> : vector<128xf32>
    %295 = vector.multi_reduction <add>, %294, %cst_107 [0] : vector<8x128xf32> to vector<128xf32>
    %296 = vector.shape_cast %295 : vector<128xf32> to vector<1x128xf32>
    %297 = arith.subf %293, %296 : vector<1x128xf32>
    %298 = vector.shape_cast %297 : vector<1x128xf32> to vector<1x1x128xf32>
    %cst_108 = arith.constant dense<0.000000e+00> : vector<1xf32>
    %299 = vector.multi_reduction <add>, %298, %cst_108 [1, 2] : vector<1x1x128xf32> to vector<1xf32>
    %300 = vector.shape_cast %299 : vector<1xf32> to vector<1x1x1xf32>
    %301 = vector.extract %300[0, 0, 0] : f32 from vector<1x1x1xf32>
    %cst_109 = arith.constant 1.280000e+02 : f32
    %302 = arith.divf %301, %cst_109 : f32
    %303 = vector.shape_cast %260 : vector<128x1xf32> to vector<1x128x1xf32>
    %cst_110 = arith.constant dense<0.000000e+00> : vector<1xf32>
    %304 = vector.multi_reduction <add>, %303, %cst_110 [1, 2] : vector<1x128x1xf32> to vector<1xf32>
    %305 = vector.shape_cast %304 : vector<1xf32> to vector<1x1x1xf32>
    %306 = vector.extract %305[0, 0, 0] : f32 from vector<1x1x1xf32>
    %307 = arith.mulf %232, %268 : vector<8x1xf32>
    %308 = vector.shape_cast %307 : vector<8x1xf32> to vector<1x8x1xf32>
    %cst_111 = arith.constant dense<0.000000e+00> : vector<1xf32>
    %309 = vector.multi_reduction <add>, %308, %cst_111 [1, 2] : vector<1x8x1xf32> to vector<1xf32>
    %310 = vector.shape_cast %309 : vector<1xf32> to vector<1x1x1xf32>
    %311 = vector.extract %310[0, 0, 0] : f32 from vector<1x1x1xf32>
    %312 = arith.subf %306, %311 : f32
    %cst_112 = arith.constant 0.000000e+00 : f32
    %313 = arith.maximumf %312, %cst_112 : f32
    %cst_113 = arith.constant 1.280000e+02 : f32
    %314 = arith.divf %313, %cst_113 : f32
    %cst_114 = arith.constant dense<0.000000e+00> : vector<8x8xf32>
    %315 = tpu.matmul %273, %273, %cst_114 {dimension_numbers = #tpu.dot_dimension_numbers<[1], [1], [0], [0], [0, 0, 1, 0], [], []>} : vector<8x128xf32>, vector<8x128xf32>, vector<8x8xf32> -> vector<8x8xf32>
    %cst_115 = arith.constant 2.000000e+00 : f32
    %316 = vector.broadcast %cst_115 : f32 to vector<8x8xf32>
    %317 = arith.mulf %316, %315 : vector<8x8xf32>
    %cst_116 = arith.constant 2.000000e+00 : f32
    %318 = vector.broadcast %cst_116 : f32 to vector<8x8xf32>
    %319 = arith.subf %318, %317 : vector<8x8xf32>
    %cst_117 = arith.constant 0.000000e+00 : f32
    %320 = vector.broadcast %cst_117 : f32 to vector<8x8xf32>
    %321 = arith.maximumf %319, %320 : vector<8x8xf32>
    %cst_118 = arith.constant 9.99999996E-13 : f32
    %322 = vector.broadcast %cst_118 : f32 to vector<8x8xf32>
    %323 = arith.addf %321, %322 : vector<8x8xf32>
    %324 = math.sqrt %323 : vector<8x8xf32>
    %325 = arith.mulf %244, %9 : vector<8x8xf32>
    %cst_119 = arith.constant 1.000000e+00 : f32
    %326 = vector.broadcast %cst_119 : f32 to vector<8x8xf32>
    %327 = arith.subf %326, %324 : vector<8x8xf32>
    %cst_120 = arith.constant 0.000000e+00 : f32
    %328 = vector.broadcast %cst_120 : f32 to vector<8x8xf32>
    %329 = arith.maximumf %327, %328 : vector<8x8xf32>
    %330 = arith.mulf %329, %329 : vector<8x8xf32>
    %331 = arith.mulf %330, %325 : vector<8x8xf32>
    %332 = vector.shape_cast %331 : vector<8x8xf32> to vector<1x8x8xf32>
    %cst_121 = arith.constant dense<0.000000e+00> : vector<1xf32>
    %333 = vector.multi_reduction <add>, %332, %cst_121 [1, 2] : vector<1x8x8xf32> to vector<1xf32>
    %334 = vector.shape_cast %333 : vector<1xf32> to vector<1x1x1xf32>
    %335 = vector.extract %334[0, 0, 0] : f32 from vector<1x1x1xf32>
    %336 = vector.shape_cast %325 : vector<8x8xf32> to vector<1x8x8xf32>
    %cst_122 = arith.constant dense<0.000000e+00> : vector<1xf32>
    %337 = vector.multi_reduction <add>, %336, %cst_122 [1, 2] : vector<1x8x8xf32> to vector<1xf32>
    %338 = vector.shape_cast %337 : vector<1xf32> to vector<1x1x1xf32>
    %339 = vector.extract %338[0, 0, 0] : f32 from vector<1x1x1xf32>
    %cst_123 = arith.constant 1.000000e+00 : f32
    %340 = arith.maximumf %339, %cst_123 : f32
    %341 = arith.divf %335, %340 : f32
    %cst_124 = arith.constant 1.000000e+00 : f32
    %342 = arith.mulf %cst_124, %302 : f32
    %cst_125 = arith.constant 1.000000e+00 : f32
    %343 = arith.mulf %cst_125, %341 : f32
    %344 = arith.addf %342, %343 : f32
    %cst_126 = arith.constant 5.000000e-01 : f32
    %345 = arith.mulf %cst_126, %314 : f32
    %346 = arith.addf %344, %345 : f32
    %347 = arith.addf %145, %346 : f32
    %348 = arith.mulf %257, %257 : vector<8x128xf32>
    %cst_127 = arith.constant dense<0.000000e+00> : vector<8xf32>
    %349 = vector.multi_reduction <add>, %348, %cst_127 [1] : vector<8x128xf32> to vector<8xf32>
    %350 = vector.shape_cast %349 : vector<8xf32> to vector<8x1xf32>
    %cst_128 = arith.constant 9.99999993E-9 : f32
    %351 = vector.broadcast %cst_128 : f32 to vector<8x1xf32>
    %352 = arith.addf %350, %351 : vector<8x1xf32>
    %353 = math.rsqrt %352 : vector<8x1xf32>
    %354 = vector.broadcast %353 : vector<8x1xf32> to vector<8x128xf32>
    %355 = arith.mulf %257, %354 : vector<8x128xf32>
    %356 = arith.mulf %225, %225 : vector<8x128xf32>
    %cst_129 = arith.constant dense<0.000000e+00> : vector<8xf32>
    %357 = vector.multi_reduction <add>, %356, %cst_129 [1] : vector<8x128xf32> to vector<8xf32>
    %358 = vector.shape_cast %357 : vector<8xf32> to vector<8x1xf32>
    %cst_130 = arith.constant 9.99999993E-9 : f32
    %359 = vector.broadcast %cst_130 : f32 to vector<8x1xf32>
    %360 = arith.addf %358, %359 : vector<8x1xf32>
    %361 = math.rsqrt %360 : vector<8x1xf32>
    %362 = vector.broadcast %361 : vector<8x1xf32> to vector<8x128xf32>
    %363 = arith.mulf %225, %362 : vector<8x128xf32>
    %364 = arith.truncf %355 : vector<8x128xf32> to vector<8x128xbf16>
    %365 = arith.truncf %363 : vector<8x128xf32> to vector<8x128xbf16>
    %cst_131 = arith.constant dense<0.000000e+00> : vector<8x8xf32>
    %366 = tpu.matmul %364, %365, %cst_131 {dimension_numbers = #tpu.dot_dimension_numbers<[1], [1], [0], [0], [0, 0, 1, 0], [], []>} : vector<8x128xbf16>, vector<8x128xbf16>, vector<8x8xf32> -> vector<8x8xf32>
    %cst_132 = arith.constant 5.000000e-01 : f32
    %367 = vector.broadcast %cst_132 : f32 to vector<1x8xf32>
    %368 = arith.cmpf ogt, %241, %367 : vector<1x8xf32>
    %cst_133 = arith.constant 1.000000e-01 : f32
    %369 = vector.broadcast %cst_133 : f32 to vector<8x8xf32>
    %370 = arith.divf %366, %369 : vector<8x8xf32>
    %cst_134 = arith.constant -1.000000e+09 : f32
    %371 = vector.shape_cast %368 : vector<1x8xi1> to vector<1x8xi1>
    %372 = vector.broadcast %371 : vector<1x8xi1> to vector<8x8xi1>
    %373 = vector.broadcast %cst_134 : f32 to vector<8x8xf32>
    %374 = arith.select %372, %370, %373 : vector<8x8xi1>, vector<8x8xf32>
    %cst_135 = arith.constant dense<0xFF800000> : vector<8xf32>
    %375 = vector.multi_reduction <maximumf>, %374, %cst_135 [1] : vector<8x8xf32> to vector<8xf32>
    %376 = vector.shape_cast %375 : vector<8xf32> to vector<8x1xf32>
    %377 = vector.broadcast %376 : vector<8x1xf32> to vector<8x8xf32>
    %378 = arith.subf %374, %377 : vector<8x8xf32>
    %379 = math.exp %378 : vector<8x8xf32>
    %cst_136 = arith.constant dense<0.000000e+00> : vector<8xf32>
    %380 = vector.multi_reduction <add>, %379, %cst_136 [1] : vector<8x8xf32> to vector<8xf32>
    %381 = vector.shape_cast %380 : vector<8xf32> to vector<8x1xf32>
    %382 = math.log %381 : vector<8x1xf32>
    %383 = arith.addf %382, %376 : vector<8x1xf32>
    %384 = arith.mulf %374, %11 : vector<8x8xf32>
    %cst_137 = arith.constant dense<0.000000e+00> : vector<8xf32>
    %385 = vector.multi_reduction <add>, %384, %cst_137 [1] : vector<8x8xf32> to vector<8xf32>
    %386 = vector.shape_cast %385 : vector<8xf32> to vector<8x1xf32>
    %387 = vector.shape_cast %237 : vector<8x1xf32> to vector<1x8x1xf32>
    %cst_138 = arith.constant dense<0.000000e+00> : vector<1xf32>
    %388 = vector.multi_reduction <add>, %387, %cst_138 [1, 2] : vector<1x8x1xf32> to vector<1xf32>
    %389 = vector.shape_cast %388 : vector<1xf32> to vector<1x1x1xf32>
    %390 = vector.extract %389[0, 0, 0] : f32 from vector<1x1x1xf32>
    %cst_139 = arith.constant 1.000000e+00 : f32
    %391 = arith.maximumf %390, %cst_139 : f32
    %392 = arith.subf %383, %386 : vector<8x1xf32>
    %393 = arith.mulf %392, %237 : vector<8x1xf32>
    %394 = vector.shape_cast %393 : vector<8x1xf32> to vector<1x8x1xf32>
    %cst_140 = arith.constant dense<0.000000e+00> : vector<1xf32>
    %395 = vector.multi_reduction <add>, %394, %cst_140 [1, 2] : vector<1x8x1xf32> to vector<1xf32>
    %396 = vector.shape_cast %395 : vector<1xf32> to vector<1x1x1xf32>
    %397 = vector.extract %396[0, 0, 0] : f32 from vector<1x1x1xf32>
    %398 = arith.divf %397, %391 : f32
    %399 = arith.mulf %366, %11 : vector<8x8xf32>
    %cst_141 = arith.constant dense<0.000000e+00> : vector<8xf32>
    %400 = vector.multi_reduction <add>, %399, %cst_141 [1] : vector<8x8xf32> to vector<8xf32>
    %401 = vector.shape_cast %400 : vector<8xf32> to vector<8x1xf32>
    %402 = arith.mulf %9, %244 : vector<8x8xf32>
    %403 = vector.broadcast %401 : vector<8x1xf32> to vector<8x8xf32>
    %404 = arith.subf %366, %403 : vector<8x8xf32>
    %cst_142 = arith.constant 2.000000e-01 : f32
    %405 = vector.broadcast %cst_142 : f32 to vector<8x8xf32>
    %406 = arith.addf %404, %405 : vector<8x8xf32>
    %cst_143 = arith.constant 0.000000e+00 : f32
    %407 = vector.broadcast %cst_143 : f32 to vector<8x8xf32>
    %408 = arith.maximumf %406, %407 : vector<8x8xf32>
    %409 = arith.mulf %408, %402 : vector<8x8xf32>
    %410 = vector.shape_cast %409 : vector<8x8xf32> to vector<1x8x8xf32>
    %cst_144 = arith.constant dense<0.000000e+00> : vector<1xf32>
    %411 = vector.multi_reduction <add>, %410, %cst_144 [1, 2] : vector<1x8x8xf32> to vector<1xf32>
    %412 = vector.shape_cast %411 : vector<1xf32> to vector<1x1x1xf32>
    %413 = vector.extract %412[0, 0, 0] : f32 from vector<1x1x1xf32>
    %414 = vector.shape_cast %402 : vector<8x8xf32> to vector<1x8x8xf32>
    %cst_145 = arith.constant dense<0.000000e+00> : vector<1xf32>
    %415 = vector.multi_reduction <add>, %414, %cst_145 [1, 2] : vector<1x8x8xf32> to vector<1xf32>
    %416 = vector.shape_cast %415 : vector<1xf32> to vector<1x1x1xf32>
    %417 = vector.extract %416[0, 0, 0] : f32 from vector<1x1x1xf32>
    %cst_146 = arith.constant 1.000000e+00 : f32
    %418 = arith.maximumf %417, %cst_146 : f32
    %419 = arith.divf %413, %418 : f32
    %420 = arith.addf %219, %398 : f32
    %421 = arith.addf %420, %419 : f32
    %cst_147 = arith.constant 2.000000e+00 : f32
    %422 = arith.divf %347, %cst_147 : f32
    %cst_148 = arith.constant 2.000000e+00 : f32
    %423 = arith.divf %421, %cst_148 : f32
    %424 = vector.extract_strided_slice %3 {offsets = [0, 0], sizes = [128, 1], strides = [1, 1]} : vector<128x2xf32> to vector<128x1xf32>
    %425 = vector.extract_strided_slice %3 {offsets = [0, 1], sizes = [128, 1], strides = [1, 1]} : vector<128x2xf32> to vector<128x1xf32>
    %426 = arith.mulf %424, %425 : vector<128x1xf32>
    %427 = vector.shape_cast %426 : vector<128x1xf32> to vector<1x128x1xf32>
    %cst_149 = arith.constant dense<0.000000e+00> : vector<1xf32>
    %428 = vector.multi_reduction <add>, %427, %cst_149 [1, 2] : vector<1x128x1xf32> to vector<1xf32>
    %429 = vector.shape_cast %428 : vector<1xf32> to vector<1x1x1xf32>
    %430 = vector.extract %429[0, 0, 0] : f32 from vector<1x1x1xf32>
    %cst_150 = arith.constant 1.000000e+00 : f32
    %431 = arith.maximumf %430, %cst_150 : f32
    %432 = arith.truncf %63 : vector<128x128xf32> to vector<128x128xbf16>
    %433 = arith.truncf %265 : vector<128x128xf32> to vector<128x128xbf16>
    %cst_151 = arith.constant dense<0.000000e+00> : vector<128x128xf32>
    %434 = tpu.matmul %432, %433, %cst_151 {dimension_numbers = #tpu.dot_dimension_numbers<[1], [1], [0], [0], [0, 0, 1, 0], [], []>} : vector<128x128xbf16>, vector<128x128xbf16>, vector<128x128xf32> -> vector<128x128xf32>
    %cst_152 = arith.constant 1.000000e-01 : f32
    %435 = vector.broadcast %cst_152 : f32 to vector<128x128xf32>
    %436 = arith.divf %434, %435 : vector<128x128xf32>
    %437 = arith.mulf %436, %16 : vector<128x128xf32>
    %cst_153 = arith.constant dense<0.000000e+00> : vector<128xf32>
    %438 = vector.multi_reduction <add>, %437, %cst_153 [1] : vector<128x128xf32> to vector<128xf32>
    %439 = vector.shape_cast %438 : vector<128xf32> to vector<128x1xf32>
    %cst_154 = arith.constant dense<0xFF800000> : vector<128xf32>
    %440 = vector.multi_reduction <maximumf>, %436, %cst_154 [1] : vector<128x128xf32> to vector<128xf32>
    %441 = vector.shape_cast %440 : vector<128xf32> to vector<128x1xf32>
    %442 = vector.broadcast %441 : vector<128x1xf32> to vector<128x128xf32>
    %443 = arith.subf %436, %442 : vector<128x128xf32>
    %444 = math.exp %443 : vector<128x128xf32>
    %cst_155 = arith.constant dense<0.000000e+00> : vector<128xf32>
    %445 = vector.multi_reduction <add>, %444, %cst_155 [1] : vector<128x128xf32> to vector<128xf32>
    %446 = vector.shape_cast %445 : vector<128xf32> to vector<128x1xf32>
    %447 = math.log %446 : vector<128x1xf32>
    %448 = arith.addf %447, %441 : vector<128x1xf32>
    %449 = arith.subf %448, %439 : vector<128x1xf32>
    %450 = arith.mulf %449, %426 : vector<128x1xf32>
    %451 = vector.shape_cast %450 : vector<128x1xf32> to vector<1x128x1xf32>
    %cst_156 = arith.constant dense<0.000000e+00> : vector<1xf32>
    %452 = vector.multi_reduction <add>, %451, %cst_156 [1, 2] : vector<1x128x1xf32> to vector<1xf32>
    %453 = vector.shape_cast %452 : vector<1xf32> to vector<1x1x1xf32>
    %454 = vector.extract %453[0, 0, 0] : f32 from vector<1x1x1xf32>
    %455 = arith.divf %454, %431 : f32
    %cst_157 = arith.constant 0.000000e+00 : f32
    %456 = arith.addf %cst_157, %455 : f32
    %cst_158 = arith.constant 1.000000e-01 : f32
    %457 = vector.broadcast %cst_158 : f32 to vector<128x1xf32>
    %458 = arith.mulf %439, %457 : vector<128x1xf32>
    %cst_159 = arith.constant 1.000000e+00 : f32
    %459 = vector.broadcast %cst_159 : f32 to vector<128x1xf32>
    %460 = arith.subf %459, %458 : vector<128x1xf32>
    %461 = arith.mulf %460, %426 : vector<128x1xf32>
    %462 = vector.shape_cast %461 : vector<128x1xf32> to vector<1x128x1xf32>
    %cst_160 = arith.constant dense<0.000000e+00> : vector<1xf32>
    %463 = vector.multi_reduction <add>, %462, %cst_160 [1, 2] : vector<1x128x1xf32> to vector<1xf32>
    %464 = vector.shape_cast %463 : vector<1xf32> to vector<1x1x1xf32>
    %465 = vector.extract %464[0, 0, 0] : f32 from vector<1x1x1xf32>
    %466 = arith.divf %465, %431 : f32
    %cst_161 = arith.constant 0.000000e+00 : f32
    %467 = arith.addf %cst_161, %466 : f32
    %cst_162 = arith.constant 1.000000e+00 : f32
    %468 = arith.divf %456, %cst_162 : f32
    %cst_163 = arith.constant 1.000000e+00 : f32
    %469 = arith.mulf %cst_163, %468 : f32
    %cst_164 = arith.constant 1.000000e+00 : f32
    %470 = arith.divf %467, %cst_164 : f32
    %cst_165 = arith.constant 5.000000e-01 : f32
    %471 = arith.mulf %cst_165, %470 : f32
    %472 = arith.addf %469, %471 : f32
    %473 = tpu.iota {dimensions = array<i32: 1>} : vector<1x128xi32>
    %c0_i32 = arith.constant 0 : i32
    %474 = vector.broadcast %c0_i32 : i32 to vector<1x128xi32>
    %475 = arith.cmpi eq, %473, %474 : vector<1x128xi32>
    %cst_166 = arith.constant 0.000000e+00 : f32
    %476 = vector.broadcast %422 : f32 to vector<1x128xf32>
    %477 = vector.broadcast %cst_166 : f32 to vector<1x128xf32>
    %478 = arith.select %475, %476, %477 : vector<1x128xi1>, vector<1x128xf32>
    %c1_i32 = arith.constant 1 : i32
    %479 = vector.broadcast %c1_i32 : i32 to vector<1x128xi32>
    %480 = arith.cmpi eq, %473, %479 : vector<1x128xi32>
    %cst_167 = arith.constant 0.000000e+00 : f32
    %481 = vector.broadcast %423 : f32 to vector<1x128xf32>
    %482 = vector.broadcast %cst_167 : f32 to vector<1x128xf32>
    %483 = arith.select %480, %481, %482 : vector<1x128xi1>, vector<1x128xf32>
    %484 = arith.addf %478, %483 : vector<1x128xf32>
    %c2_i32 = arith.constant 2 : i32
    %485 = vector.broadcast %c2_i32 : i32 to vector<1x128xi32>
    %486 = arith.cmpi eq, %473, %485 : vector<1x128xi32>
    %cst_168 = arith.constant 0.000000e+00 : f32
    %487 = vector.broadcast %472 : f32 to vector<1x128xf32>
    %488 = vector.broadcast %cst_168 : f32 to vector<1x128xf32>
    %489 = arith.select %486, %487, %488 : vector<1x128xi1>, vector<1x128xf32>
    %490 = arith.addf %484, %489 : vector<1x128xf32>
    %c0_169 = arith.constant 0 : index
    %c0_170 = arith.constant 0 : index
    %c0_171 = arith.constant 0 : index
    %491 = vector.load %arg6[%c0_169, %c0_170, %c0_171] : memref<1x1x128xf32, #tpu.memory_space<vmem>>, vector<1x1x128xf32>
    %492 = vector.shape_cast %491 : vector<1x1x128xf32> to vector<1x128xf32>
    %493 = vector.shape_cast %490 : vector<1x128xf32> to vector<1x1x128xf32>
    tpu.vector_store %arg6[%c0_169, %c0_170, %c0_171], %493 {strides = array<i32>} : memref<1x1x128xf32, #tpu.memory_space<vmem>>, vector<1x1x128xf32>,
    return
  }
  func.func @transform_0(%arg0: i32) -> (i32, i32, i32, i32) {
    %c0_i32 = arith.constant 0 : i32
    %c0_i32_0 = arith.constant 0 : i32
    %c0_i32_1 = arith.constant 0 : i32
    %c0_i32_2 = arith.constant 0 : i32
    return %arg0, %c0_i32, %c0_i32_0, %c0_i32_1 : i32, i32, i32, i32
  }
  func.func @transform_1(%arg0: i32) -> (i32, i32, i32, i32) {
    %c0_i32 = arith.constant 0 : i32
    %c0_i32_0 = arith.constant 0 : i32
    %c0_i32_1 = arith.constant 0 : i32
    %c0_i32_2 = arith.constant 0 : i32
    return %arg0, %c0_i32, %c0_i32_0, %c0_i32_1 : i32, i32, i32, i32
  }
  func.func @transform_2(%arg0: i32) -> (i32, i32, i32, i32) {
    %c0_i32 = arith.constant 0 : i32
    %c0_i32_0 = arith.constant 0 : i32
    %c0_i32_1 = arith.constant 0 : i32
    %c0_i32_2 = arith.constant 0 : i32
    return %arg0, %c0_i32, %c0_i32_0, %c0_i32_1 : i32, i32, i32, i32
  }
  func.func @transform_3(%arg0: i32) -> (i32, i32, i32) {
    %c0_i32 = arith.constant 0 : i32
    %c0_i32_0 = arith.constant 0 : i32
    %c0_i32_1 = arith.constant 0 : i32
    return %arg0, %c0_i32, %c0_i32_0 : i32, i32, i32
  }
  func.func @transform_4(%arg0: i32) -> (i32, i32, i32) {
    %c0_i32 = arith.constant 0 : i32
    %c0_i32_0 = arith.constant 0 : i32
    %c0_i32_1 = arith.constant 0 : i32
    return %arg0, %c0_i32, %c0_i32_0 : i32, i32, i32
  }
  func.func @transform_5(%arg0: i32) -> (i32, i32, i32) {
    %c0_i32 = arith.constant 0 : i32
    %c0_i32_0 = arith.constant 0 : i32
    %c0_i32_1 = arith.constant 0 : i32
    return %arg0, %c0_i32, %c0_i32_0 : i32, i32, i32
  }
}

</mosaic_0001>

<llo_original>
// kernel: combined_loss.1
$region0: #{combined_loss.1}
  #allocation0 [shape = 'u32[]', space=smem, size = 0x4, offset = 0x4, fixed_abs, tag = 'smem constant byte address 0x4 - core index']
  #allocation1 [shape = 'u32[144,128]{1,0:T(1,128)}', space=vmem, size = 0x12000, scoped, tag = 'internal scratch']
  %s0 = inlined_call_operand.vmem [shape: f32[2,2,128,128], index: 0, kind: input, shape index: {}]
  %s1 = inlined_call_operand.vmem [shape: f32[2,2,128,128], index: 1, kind: input, shape index: {}]
  %s2 = inlined_call_operand.vmem [shape: f32[2,2,8,128], index: 2, kind: input, shape index: {}]
  %s3 = inlined_call_operand.vmem [shape: s32[2,2,128], index: 3, kind: input, shape index: {}]
  %s4 = inlined_call_operand.vmem [shape: f32[2,128,2], index: 4, kind: input, shape index: {}]
  %s5 = inlined_call_operand.vmem [shape: f32[2,1,128], index: 5, kind: output, shape index: {}]
  %s6 = sld [smem:[#allocation0]]
  $region53: #{combined_loss.1} parent=0
    _
  %s8 = ssub.s32 1, %s6
  %s9 = scalar_select 0, %s8, %s6
  loop: start=0, step=1, limit=4
  $region2: #{combined_loss.1} parent=0 // loop_pre_header
    _
  $region3: #{combined_loss.1} parent=0 // loop_header
    %s11 = sphi 0, %s15
    %p12 = scmp.ge.s32.totalorder %s11, 4
    %s21 = sphi 0, %s23
    %s24 = sphi 0, %s21
    %s25 = sphi 0, %s24
    %s41 = sphi 0, %s25
    %s47 = sphi 0, %s49
    %s50 = sphi 0, %s47
    %s51 = sphi 0, %s50
    %s67 = sphi 0, %s51
    %s73 = sphi 0, %s75
    %s76 = sphi 0, %s73
    %s77 = sphi 0, %s76
    %s93 = sphi 0, %s77
    %s99 = sphi 0, %s101
    %s102 = sphi 0, %s99
    %s103 = sphi 0, %s102
    %s119 = sphi 0, %s103
    %s125 = sphi 0, %s127
    %s128 = sphi 0, %s125
    %s129 = sphi 0, %s128
    %s145 = sphi 0, %s129
    %s151 = sphi 0, %s153
    %s154 = sphi 0, %s151
    %s155 = sphi 0, %s154
    %s171 = sphi 0, %s155
  $region4: #{combined_loss.1} parent=0 // loop_header_branch
    %14 = sbr.rel (%p12) target = $region8
  $region5: #{combined_loss.1} parent=0 // loop_body
    %s16 = ssub.s32 %s11, 1
    %s17 = ssub.s32 %s11, 2
    %s18 = sadd.s32 %s11, 1
    %s19 = ssub.s32 %s11, %s18
    %p20 = scmp.eq.s32.totalorder %s19, 0
    %s22 = sadd.s32 %s21, 1
    %s23 = scalar_select %p20, %s21, %s22
    %p26 = pneg %p20
    %p27 = scmp.eq.s32.totalorder %s11, 1
    %p28 = por %p26, %p27
    %p29 = scmp.ne.s32.totalorder %s21, %s24
    %p30 = scmp.eq.s32.totalorder %s11, 0
    %p31 = por %p29, %p30
    %p32 = scmp.ne.s32.totalorder %s21, %s24
    %p33 = scmp.eq.s32.totalorder %s16, 1
    %p34 = por %p32, %p33
    %p35 = scmp.ne.s32.totalorder %s24, %s25
    %p36 = scmp.eq.s32.totalorder %s16, 0
    %p37 = por %p35, %p36
    %p38 = scmp.ne.s32.totalorder %s24, %s25
    %p39 = scmp.eq.s32.totalorder %s17, 1
    %p40 = por %p38, %p39
    %p42 = scmp.ne.s32.totalorder %s25, %s41
    %p43 = scmp.eq.s32.totalorder %s17, 0
    %p44 = por %p42, %p43
    %s45 = ssub.s32 %s11, %s18
    %p46 = scmp.eq.s32.totalorder %s45, 0
    %s48 = sadd.s32 %s47, 1
    %s49 = scalar_select %p46, %s47, %s48
    %p52 = pneg %p46
    %p53 = scmp.eq.s32.totalorder %s11, 1
    %p54 = por %p52, %p53
    %p55 = scmp.ne.s32.totalorder %s47, %s50
    %p56 = scmp.eq.s32.totalorder %s11, 0
    %p57 = por %p55, %p56
    %p58 = scmp.ne.s32.totalorder %s47, %s50
    %p59 = scmp.eq.s32.totalorder %s16, 1
    %p60 = por %p58, %p59
    %p61 = scmp.ne.s32.totalorder %s50, %s51
    %p62 = scmp.eq.s32.totalorder %s16, 0
    %p63 = por %p61, %p62
    %p64 = scmp.ne.s32.totalorder %s50, %s51
    %p65 = scmp.eq.s32.totalorder %s17, 1
    %p66 = por %p64, %p65
    %p68 = scmp.ne.s32.totalorder %s51, %s67
    %p69 = scmp.eq.s32.totalorder %s17, 0
    %p70 = por %p68, %p69
    %s71 = ssub.s32 %s11, %s18
    %p72 = scmp.eq.s32.totalorder %s71, 0
    %s74 = sadd.s32 %s73, 1
    %s75 = scalar_select %p72, %s73, %s74
    %p78 = pneg %p72
    %p79 = scmp.eq.s32.totalorder %s11, 1
    %p80 = por %p78, %p79
    %p81 = scmp.ne.s32.totalorder %s73, %s76
    %p82 = scmp.eq.s32.totalorder %s11, 0
    %p83 = por %p81, %p82
    %p84 = scmp.ne.s32.totalorder %s73, %s76
    %p85 = scmp.eq.s32.totalorder %s16, 1
    %p86 = por %p84, %p85
    %p87 = scmp.ne.s32.totalorder %s76, %s77
    %p88 = scmp.eq.s32.totalorder %s16, 0
    %p89 = por %p87, %p88
    %p90 = scmp.ne.s32.totalorder %s76, %s77
    %p91 = scmp.eq.s32.totalorder %s17, 1
    %p92 = por %p90, %p91
    %p94 = scmp.ne.s32.totalorder %s77, %s93
    %p95 = scmp.eq.s32.totalorder %s17, 0
    %p96 = por %p94, %p95
    %s97 = ssub.s32 %s11, %s18
    %p98 = scmp.eq.s32.totalorder %s97, 0
    %s100 = sadd.s32 %s99, 1
    %s101 = scalar_select %p98, %s99, %s100
    %p104 = pneg %p98
    %p105 = scmp.eq.s32.totalorder %s11, 1
    %p106 = por %p104, %p105
    %p107 = scmp.ne.s32.totalorder %s99, %s102
    %p108 = scmp.eq.s32.totalorder %s11, 0
    %p109 = por %p107, %p108
    %p110 = scmp.ne.s32.totalorder %s99, %s102
    %p111 = scmp.eq.s32.totalorder %s16, 1
    %p112 = por %p110, %p111
    %p113 = scmp.ne.s32.totalorder %s102, %s103
    %p114 = scmp.eq.s32.totalorder %s16, 0
    %p115 = por %p113, %p114
    %p116 = scmp.ne.s32.totalorder %s102, %s103
    %p117 = scmp.eq.s32.totalorder %s17, 1
    %p118 = por %p116, %p117
    %p120 = scmp.ne.s32.totalorder %s103, %s119
    %p121 = scmp.eq.s32.totalorder %s17, 0
    %p122 = por %p120, %p121
    %s123 = ssub.s32 %s11, %s18
    %p124 = scmp.eq.s32.totalorder %s123, 0
    %s126 = sadd.s32 %s125, 1
    %s127 = scalar_select %p124, %s125, %s126
    %p130 = pneg %p124
    %p131 = scmp.eq.s32.totalorder %s11, 1
    %p132 = por %p130, %p131
    %p133 = scmp.ne.s32.totalorder %s125, %s128
    %p134 = scmp.eq.s32.totalorder %s11, 0
    %p135 = por %p133, %p134
    %p136 = scmp.ne.s32.totalorder %s125, %s128
    %p137 = scmp.eq.s32.totalorder %s16, 1
    %p138 = por %p136, %p137
    %p139 = scmp.ne.s32.totalorder %s128, %s129
    %p140 = scmp.eq.s32.totalorder %s16, 0
    %p141 = por %p139, %p140
    %p142 = scmp.ne.s32.totalorder %s128, %s129
    %p143 = scmp.eq.s32.totalorder %s17, 1
    %p144 = por %p142, %p143
    %p146 = scmp.ne.s32.totalorder %s129, %s145
    %p147 = scmp.eq.s32.totalorder %s17, 0
    %p148 = por %p146, %p147
    %s149 = ssub.s32 %s11, %s18
    %p150 = scmp.eq.s32.totalorder %s149, 0
    %s152 = sadd.s32 %s151, 1
    %s153 = scalar_select %p150, %s151, %s152
    %p156 = pneg %p150
    %p157 = scmp.eq.s32.totalorder %s11, 1
    %p158 = por %p156, %p157
    %p159 = scmp.ne.s32.totalorder %s151, %s154
    %p160 = scmp.eq.s32.totalorder %s11, 0
    %p161 = por %p159, %p160
    %p162 = scmp.ne.s32.totalorder %s151, %s154
    %p163 = scmp.eq.s32.totalorder %s16, 1
    %p164 = por %p162, %p163
    %p165 = scmp.ne.s32.totalorder %s154, %s155
    %p166 = scmp.eq.s32.totalorder %s16, 0
    %p167 = por %p165, %p166
    %p168 = scmp.ne.s32.totalorder %s154, %s155
    %p169 = scmp.eq.s32.totalorder %s17, 1
    %p170 = por %p168, %p169
    %p172 = scmp.ne.s32.totalorder %s155, %s171
    %p173 = scmp.eq.s32.totalorder %s17, 0
    %p174 = por %p172, %p173
    %p175 = scmp.le.s32.totalorder 1, %s11
    %p176 = scmp.lt.s32.totalorder %s11, 3
    %p177 = pnand %p175, %p176
    %p178 = pneg %p177
    // Predicated region
    $region9: #{combined_loss.1} parent=5 // pred_check
      _
    $region10: #{combined_loss.1} parent=5 // pred_check_branch
      %180 = sbr.rel (%p177) target = $region12
    $region11: #{combined_loss.1} parent=5 // pred_region
      %s181 = ssub.s32 %s11, 1
    $region12: #{combined_loss.1} parent=5 // pred_fallthru
      _
    %p182 = scmp.lt.s32.totalorder %s11, 2
    // Predicated region
    $region13: #{combined_loss.1} parent=5 // pred_check
      %p183 = pneg %p182
    $region14: #{combined_loss.1} parent=5 // pred_check_branch
      %185 = sbr.rel (%p183) target = $region16
    $region15: #{combined_loss.1} parent=5 // pred_region
      // Predicated region
      $region17: #{combined_loss.1} parent=15 // pred_check
        %p186 = pneg %p31
      $region18: #{combined_loss.1} parent=15 // pred_check_branch
        %188 = sbr.rel (%p186) target = $region20
      $region19: #{combined_loss.1} parent=15 // pred_region
        %p189 = scmp.lt.s32.totalorder %s11, 1
        %s190 = scalar_select %p189, %s11, 1
        %s191 = smul.addr %s190, 32
        %s192 = smul.addr %s191, 8
        %s193 = scalar_lea.vmem %s0, %s192
      $region20: #{combined_loss.1} parent=15 // pred_fallthru
        _
      // Predicated region
      $region21: #{combined_loss.1} parent=15 // pred_check
        %p194 = pneg %p57
      $region22: #{combined_loss.1} parent=15 // pred_check_branch
        %196 = sbr.rel (%p194) target = $region24
      $region23: #{combined_loss.1} parent=15 // pred_region
        %p197 = scmp.lt.s32.totalorder %s11, 1
        %s198 = scalar_select %p197, %s11, 1
        %s199 = smul.addr %s198, 32
        %s200 = smul.addr %s199, 8
        %s201 = scalar_lea.vmem %s1, %s200
      $region24: #{combined_loss.1} parent=15 // pred_fallthru
        _
      // Predicated region
      $region25: #{combined_loss.1} parent=15 // pred_check
        %p202 = pneg %p83
      $region26: #{combined_loss.1} parent=15 // pred_check_branch
        %204 = sbr.rel (%p202) target = $region28
      $region27: #{combined_loss.1} parent=15 // pred_region
        %p205 = scmp.lt.s32.totalorder %s11, 1
        %s206 = scalar_select %p205, %s11, 1
        %s207 = smul.addr %s206, 2
        %s208 = smul.addr %s207, 8
        %s209 = scalar_lea.vmem %s2, %s208
      $region28: #{combined_loss.1} parent=15 // pred_fallthru
        _
      // Predicated region
      $region29: #{combined_loss.1} parent=15 // pred_check
        %p210 = pneg %p109
      $region30: #{combined_loss.1} parent=15 // pred_check_branch
        %212 = sbr.rel (%p210) target = $region32
      $region31: #{combined_loss.1} parent=15 // pred_region
        %p213 = scmp.lt.s32.totalorder %s11, 1
        %s214 = scalar_select %p213, %s11, 1
        %s215 = smul.addr %s214, 2
        %s216 = scalar_lea.vmem %s3, %s215
      $region32: #{combined_loss.1} parent=15 // pred_fallthru
        _
      // Predicated region
      $region33: #{combined_loss.1} parent=15 // pred_check
        %p217 = pneg %p135
      $region34: #{combined_loss.1} parent=15 // pred_check_branch
        %219 = sbr.rel (%p217) target = $region36
      $region35: #{combined_loss.1} parent=15 // pred_region
        %p220 = scmp.lt.s32.totalorder %s11, 1
        %s221 = scalar_select %p220, %s11, 1
        %s222 = smul.addr %s221, 16
        %s223 = smul.addr %s222, 8
        %s224 = scalar_lea.vmem %s4, %s223
      $region36: #{combined_loss.1} parent=15 // pred_fallthru
        _
    $region16: #{combined_loss.1} parent=5 // pred_fallthru
      _
    %p225 = scmp.le.s32.totalorder 1, %s11
    %p226 = scmp.lt.s32.totalorder %s11, 3
    %p227 = pnand %p225, %p226
    %p228 = pneg %p227
    // Predicated region
    $region37: #{combined_loss.1} parent=5 // pred_check
      _
    $region38: #{combined_loss.1} parent=5 // pred_check_branch
      %230 = sbr.rel (%p227) target = $region40
    $region39: #{combined_loss.1} parent=5 // pred_region
      %s231 = ssub.s32 %s11, 1
      %p232 = scmp.lt.s32.totalorder %s16, 1
      %s233 = scalar_select %p232, %s16, 1
      %s234 = smul.addr %s233, 32
      %s235 = smul.addr %s234, 8
      %s236 = scalar_lea.vmem %s0, %s235
      %p237 = pneg %p37
      %p238 = pneg %p34
      %p239 = scmp.lt.s32.totalorder %s16, 1
      %s240 = scalar_select %p239, %s16, 1
      %s241 = smul.addr %s240, 32
      %s242 = smul.addr %s241, 8
      %s243 = scalar_lea.vmem %s1, %s242
      %p244 = pneg %p63
      %p245 = pneg %p60
      %p246 = scmp.lt.s32.totalorder %s16, 1
      %s247 = scalar_select %p246, %s16, 1
      %s248 = smul.addr %s247, 2
      %s249 = smul.addr %s248, 8
      %s250 = scalar_lea.vmem %s2, %s249
      %p251 = pneg %p89
      %p252 = pneg %p86
      %p253 = scmp.lt.s32.totalorder %s16, 1
      %s254 = scalar_select %p253, %s16, 1
      %s255 = smul.addr %s254, 2
      %s256 = scalar_lea.vmem %s3, %s255
      %p257 = pneg %p115
      %p258 = pneg %p112
      %p259 = scmp.lt.s32.totalorder %s16, 1
      %s260 = scalar_select %p259, %s16, 1
      %s261 = smul.addr %s260, 16
      %s262 = smul.addr %s261, 8
      %s263 = scalar_lea.vmem %s4, %s262
      %p264 = pneg %p141
      %p265 = pneg %p138
      %p266 = pneg %p167
      %p267 = pneg %p164
      %p268 = scmp.lt.s32.totalorder %s16, 1
      %s269 = scalar_select %p268, %s16, 1
      %s270 = scalar_lea.vmem %s5, %s269
      %p271 = scmp.lt.s32.totalorder %s16, 1
      %s272 = scalar_select %p271, %s16, 1
      %s273 = smul.addr %s272, 32
      %s274 = smul.addr %s273, 8
      %s275 = scalar_lea.vmem %s0, %s274
      %p276 = scmp.lt.s32.totalorder %s16, 1
      %s277 = scalar_select %p276, %s16, 1
      %s278 = smul.addr %s277, 32
      %s279 = smul.addr %s278, 8
      %s280 = scalar_lea.vmem %s1, %s279
      %p281 = scmp.lt.s32.totalorder %s16, 1
      %s282 = scalar_select %p281, %s16, 1
      %s283 = smul.addr %s282, 2
      %s284 = smul.addr %s283, 8
      %s285 = scalar_lea.vmem %s2, %s284
      %p286 = scmp.lt.s32.totalorder %s16, 1
      %s287 = scalar_select %p286, %s16, 1
      %s288 = smul.addr %s287, 2
      %s289 = scalar_lea.vmem %s3, %s288
      %p290 = scmp.lt.s32.totalorder %s16, 1
      %s291 = scalar_select %p290, %s16, 1
      %s292 = smul.addr %s291, 16
      %s293 = smul.addr %s292, 8
      %s294 = scalar_lea.vmem %s4, %s293
      %p295 = scmp.lt.s32.totalorder %s16, 1
      %s296 = scalar_select %p295, %s16, 1
      %s297 = scalar_lea.vmem %s5, %s296
      %v299 = vld [vmem:[%s289] sm:$0x3]
      %v300 = vld [vmem:[%s294] sm:$0xff]
      %v301 = vld [vmem:[%s294 + $0x8] sm:$0xff]
      %v302 = vld [vmem:[%s294 + $0x10] sm:$0xff]
      %v303 = vld [vmem:[%s294 + $0x18] sm:$0xff]
      %v304 = vld [vmem:[%s294 + $0x20] sm:$0xff]
      %v305 = vld [vmem:[%s294 + $0x28] sm:$0xff]
      %v306 = vld [vmem:[%s294 + $0x30] sm:$0xff]
      %v307 = vld [vmem:[%s294 + $0x38] sm:$0xff]
      %v308 = vld [vmem:[%s294 + $0x40] sm:$0xff]
      %v309 = vld [vmem:[%s294 + $0x48] sm:$0xff]
      %v310 = vld [vmem:[%s294 + $0x50] sm:$0xff]
      %v311 = vld [vmem:[%s294 + $0x58] sm:$0xff]
      %v312 = vld [vmem:[%s294 + $0x60] sm:$0xff]
      %v313 = vld [vmem:[%s294 + $0x68] sm:$0xff]
      %v314 = vld [vmem:[%s294 + $0x70] sm:$0xff]
      %v315 = vld [vmem:[%s294 + $0x78] sm:$0xff]
      %v316 = vlaneseq
      %v317 = vshrl.u32 %v316, 7
      %v318 = vlaneseq
      %v319 = vand.u32 %v318, 127
      %vm320 = vcmp.ne.s32.totalorder %v317, %v319
      %v321 = vsel %vm320, 1, 0
      %v322 = vcvt.s32.f32 %v321
      %v323 = vsub.f32 1.0, %v322
      %v324 = vadd.s32 %v317, 8
      %v325 = vadd.s32 %v317, 16
      %v326 = vadd.s32 %v317, 24
      %v327 = vadd.s32 %v317, 32
      %v328 = vadd.s32 %v317, 40
      %v329 = vadd.s32 %v317, 48
      %v330 = vadd.s32 %v317, 56
      %v331 = vadd.s32 %v317, 64
      %v332 = vadd.s32 %v317, 72
      %v333 = vadd.s32 %v317, 80
      %v334 = vadd.s32 %v317, 88
      %v335 = vadd.s32 %v317, 96
      %v336 = vadd.s32 %v317, 104
      %v337 = vadd.s32 %v317, 112
      %v338 = vadd.s32 %v317, 120
      %vm339 = vcmp.eq.s32.totalorder %v317, %v319
      %vm340 = vcmp.eq.s32.totalorder %v324, %v319
      %vm341 = vcmp.eq.s32.totalorder %v325, %v319
      %vm342 = vcmp.eq.s32.totalorder %v326, %v319
      %vm343 = vcmp.eq.s32.totalorder %v327, %v319
      %vm344 = vcmp.eq.s32.totalorder %v328, %v319
      %vm345 = vcmp.eq.s32.totalorder %v329, %v319
      %vm346 = vcmp.eq.s32.totalorder %v330, %v319
      %vm347 = vcmp.eq.s32.totalorder %v331, %v319
      %vm348 = vcmp.eq.s32.totalorder %v332, %v319
      %vm349 = vcmp.eq.s32.totalorder %v333, %v319
      %vm350 = vcmp.eq.s32.totalorder %v334, %v319
      %vm351 = vcmp.eq.s32.totalorder %v335, %v319
      %vm352 = vcmp.eq.s32.totalorder %v336, %v319
      %vm353 = vcmp.eq.s32.totalorder %v337, %v319
      %vm354 = vcmp.eq.s32.totalorder %v338, %v319
      %v355 = vsel %vm339, 1, 0
      %v356 = vsel %vm340, 1, 0
      %v357 = vsel %vm341, 1, 0
      %v358 = vsel %vm342, 1, 0
      %v359 = vsel %vm343, 1, 0
      %v360 = vsel %vm344, 1, 0
      %v361 = vsel %vm345, 1, 0
      %v362 = vsel %vm346, 1, 0
      %v363 = vsel %vm347, 1, 0
      %v364 = vsel %vm348, 1, 0
      %v365 = vsel %vm349, 1, 0
      %v366 = vsel %vm350, 1, 0
      %v367 = vsel %vm351, 1, 0
      %v368 = vsel %vm352, 1, 0
      %v369 = vsel %vm353, 1, 0
      %v370 = vsel %vm354, 1, 0
      %v371 = vcvt.s32.f32 %v355
      %v372 = vcvt.s32.f32 %v356
      %v373 = vcvt.s32.f32 %v357
      %v374 = vcvt.s32.f32 %v358
      %v375 = vcvt.s32.f32 %v359
      %v376 = vcvt.s32.f32 %v360
      %v377 = vcvt.s32.f32 %v361
      %v378 = vcvt.s32.f32 %v362
      %v379 = vcvt.s32.f32 %v363
      %v380 = vcvt.s32.f32 %v364
      %v381 = vcvt.s32.f32 %v365
      %v382 = vcvt.s32.f32 %v366
      %v383 = vcvt.s32.f32 %v367
      %v384 = vcvt.s32.f32 %v368
      %v385 = vcvt.s32.f32 %v369
      %v386 = vcvt.s32.f32 %v370
      %v387 = vld [vmem:[%s275] sm:$0xff]
      %v388 = vld [vmem:[%s275 + $0x8] sm:$0xff]
      %v389 = vld [vmem:[%s275 + $0x10] sm:$0xff]
      %v390 = vld [vmem:[%s275 + $0x18] sm:$0xff]
      %v391 = vld [vmem:[%s275 + $0x20] sm:$0xff]
      %v392 = vld [vmem:[%s275 + $0x28] sm:$0xff]
      %v393 = vld [vmem:[%s275 + $0x30] sm:$0xff]
      %v394 = vld [vmem:[%s275 + $0x38] sm:$0xff]
      %v395 = vld [vmem:[%s275 + $0x40] sm:$0xff]
      %v396 = vld [vmem:[%s275 + $0x48] sm:$0xff]
      %v397 = vld [vmem:[%s275 + $0x50] sm:$0xff]
      %v398 = vld [vmem:[%s275 + $0x58] sm:$0xff]
      %v399 = vld [vmem:[%s275 + $0x60] sm:$0xff]
      %v400 = vld [vmem:[%s275 + $0x68] sm:$0xff]
      %v401 = vld [vmem:[%s275 + $0x70] sm:$0xff]
      %v402 = vld [vmem:[%s275 + $0x78] sm:$0xff]
      %v403 = vld [vmem:[%s280] sm:$0xff]
      %v404 = vld [vmem:[%s280 + $0x8] sm:$0xff]
      %v405 = vld [vmem:[%s280 + $0x10] sm:$0xff]
      %v406 = vld [vmem:[%s280 + $0x18] sm:$0xff]
      %v407 = vld [vmem:[%s280 + $0x20] sm:$0xff]
      %v408 = vld [vmem:[%s280 + $0x28] sm:$0xff]
      %v409 = vld [vmem:[%s280 + $0x30] sm:$0xff]
      %v410 = vld [vmem:[%s280 + $0x38] sm:$0xff]
      %v411 = vld [vmem:[%s280 + $0x40] sm:$0xff]
      %v412 = vld [vmem:[%s280 + $0x48] sm:$0xff]
      %v413 = vld [vmem:[%s280 + $0x50] sm:$0xff]
      %v414 = vld [vmem:[%s280 + $0x58] sm:$0xff]
      %v415 = vld [vmem:[%s280 + $0x60] sm:$0xff]
      %v416 = vld [vmem:[%s280 + $0x68] sm:$0xff]
      %v417 = vld [vmem:[%s280 + $0x70] sm:$0xff]
      %v418 = vld [vmem:[%s280 + $0x78] sm:$0xff]
      %v419 = vld [vmem:[%s285] sm:$0xff]
      %v420 = vlaneseq
      %v421 = vshrl.u32 %v420, 7
      %v422 = vsub.s32 0, %v421
      %v423 = vrot.slane %v299, %v422
      %vm424 = vcmp.eq.s32.totalorder %v317, %v423
      %v425 = vsel %vm424, 1, 0
      %v426 = vcvt.s32.f32 %v425
      %427 = vadd.xlane.f32.xlu0 %v426
      %v428 = vpop.xlane.xlu0 %427
      %429 = vmatprep.subr.mxu0 0.0
      %430 = vmatpush1.xpose.msra.mxu0 %v426
      %431 = vmatprep.subr.mxu0 0.0
      %432 = vmatpush1.xpose.msra.mxu0 0.0
      %433 = vmatprep.subr.mxu0 0.0
      %434 = vmatpush1.xpose.msra.mxu0 0.0
      %435 = vmatprep.subr.mxu0 0.0
      %436 = vmatpush1.xpose.msra.mxu0 0.0
      %437 = vmatprep.subr.mxu0 0.0
      %438 = vmatpush1.xpose.msra.mxu0 0.0
      %439 = vmatprep.subr.mxu0 0.0
      %440 = vmatpush1.xpose.msra.mxu0 0.0
      %441 = vmatprep.subr.mxu0 0.0
      %442 = vmatpush1.xpose.msra.mxu0 0.0
      %443 = vmatprep.subr.mxu0 0.0
      %444 = vmatpush1.xpose.msra.mxu0 0.0
      %445 = vmatprep.subr.mxu0 0.0
      %446 = vmatpush1.xpose.msra.mxu0 0.0
      %447 = vmatprep.subr.mxu0 0.0
      %448 = vmatpush1.xpose.msra.mxu0 0.0
      %449 = vmatprep.subr.mxu0 0.0
      %450 = vmatpush1.xpose.msra.mxu0 0.0
      %451 = vmatprep.subr.mxu0 0.0
      %452 = vmatpush1.xpose.msra.mxu0 0.0
      %453 = vmatprep.subr.mxu0 0.0
      %454 = vmatpush1.xpose.msra.mxu0 0.0
      %455 = vmatprep.subr.mxu0 0.0
      %456 = vmatpush1.xpose.msra.mxu0 0.0
      %457 = vmatprep.subr.mxu0 0.0
      %458 = vmatpush1.xpose.msra.mxu0 0.0
      %459 = vmatprep.subr.mxu0 0.0
      %460 = vmatpush1.xpose.msra.mxu0 0.0
      %461 = vmatprep.subr.mxu0 0.0
      %462 = vmatpush1.xpose.msra.mxu0 0.0
      %463 = vmatprep.subr.mxu0 0.0
      %464 = vmatpush1.xpose.msra.mxu0 0.0
      %465 = vmatprep.subr.mxu0 0.0
      %466 = vmatpush1.xpose.msra.mxu0 0.0
      %467 = vmatprep.subr.mxu0 0.0
      %468 = vmatpush1.xpose.msra.mxu0 0.0
      %469 = vmatprep.subr.mxu0 0.0
      %470 = vmatpush1.xpose.msra.mxu0 0.0
      %471 = vmatprep.subr.mxu0 0.0
      %472 = vmatpush1.xpose.msra.mxu0 0.0
      %473 = vmatprep.subr.mxu0 0.0
      %474 = vmatpush1.xpose.msra.mxu0 0.0
      %475 = vmatprep.subr.mxu0 0.0
      %476 = vmatpush1.xpose.msra.mxu0 0.0
      %477 = vmatprep.subr.mxu0 0.0
      %478 = vmatpush1.xpose.msra.mxu0 0.0
      %479 = vmatprep.subr.mxu0 0.0
      %480 = vmatpush1.xpose.msra.mxu0 0.0
      %481 = vmatprep.subr.mxu0 0.0
      %482 = vmatpush1.xpose.msra.mxu0 0.0
      %483 = vmatprep.subr.mxu0 0.0
      %484 = vmatpush1.xpose.msra.mxu0 0.0
      %485 = vmatprep.subr.mxu0 0.0
      %486 = vmatpush1.xpose.msra.mxu0 0.0
      %487 = vmatprep.subr.mxu0 0.0
      %488 = vmatpush1.xpose.msra.mxu0 0.0
      %489 = vmatprep.subr.mxu0 0.0
      %490 = vmatpush1.xpose.msra.mxu0 0.0
      %491 = vmatprep.subr.mxu0 0.0
      %492 = vmatpush1.xpose.msra.mxu0 0.0
      %493 = vmatprep.mubr.f32.mxu0 0.0
      %494 = vmatmul.mubr.f32.gmra.mrb[0].mxu0 1.0
      %v495 = vpop.f32.mrb[0].mxu0
      %v496 = vadd.f32 0.0, %v495
      %v497 = vpop.f32.mrb[0].mxu0
      %498 = vdwg.mxu0
      %vm499 = vcmp.gt.f32.partialorder %v428, 0.5
      %v500 = vsel %vm499, 1, 0
      %v501 = vcvt.s32.f32 %v500
      %vm502 = vcmp.gt.f32.partialorder %v496, 0.5
      %v503 = vsel %vm502, 1, 0
      %v504 = vcvt.s32.f32 %v503
      %v505 = vlaneseq
      %v506 = vshrl.u32 %v505, 7
      %v507 = vsub.s32 0, %v506
      %v508 = vrot.slane %v504, %v507
      %v509 = vmul.f32 %v501, %v508
      %v510 = vmax.f32 %v428, 1.0
      %v511 = vrcp.pop %v510
      %v512 = vmul.f32 1.0, %v511
      %v513 = vpack.c.bf16 %v426, %v426
      %v514 = vpack.c.bf16 %v388, %v387
      %v515 = vpack.c.bf16 %v390, %v389
      %v516 = vpack.c.bf16 %v392, %v391
      %v517 = vpack.c.bf16 %v394, %v393
      %v518 = vpack.c.bf16 %v396, %v395
      %v519 = vpack.c.bf16 %v398, %v397
      %v520 = vpack.c.bf16 %v400, %v399
      %v521 = vpack.c.bf16 %v402, %v401
      %522 = vmatprep.subr.bf16.mxu0 0
      %523 = vmatpush1.bf16.msra.mxu0 %v514
      %524 = vmatprep.subr.bf16.mxu0 0
      %525 = vmatpush1.bf16.msra.mxu0 %v515
      %526 = vmatprep.subr.bf16.mxu0 0
      %527 = vmatpush1.bf16.msra.mxu0 %v516
      %528 = vmatprep.subr.bf16.mxu0 0
      %529 = vmatpush1.bf16.msra.mxu0 %v517
      %530 = vmatprep.subr.bf16.mxu0 0
      %531 = vmatpush1.bf16.msra.mxu0 %v518
      %532 = vmatprep.subr.bf16.mxu0 0
      %533 = vmatpush1.bf16.msra.mxu0 %v519
      %534 = vmatprep.subr.bf16.mxu0 0
      %535 = vmatpush1.bf16.msra.mxu0 %v520
      %536 = vmatprep.subr.bf16.mxu0 0
      %537 = vmatpush1.bf16.msra.mxu0 %v521
      %538 = vmatprep.subr.bf16.mxu0 0
      %539 = vmatpush1.bf16.msra.mxu0 0
      %540 = vmatprep.subr.bf16.mxu0 0
      %541 = vmatpush1.bf16.msra.mxu0 0
      %542 = vmatprep.subr.bf16.mxu0 0
      %543 = vmatpush1.bf16.msra.mxu0 0
      %544 = vmatprep.subr.bf16.mxu0 0
      %545 = vmatpush1.bf16.msra.mxu0 0
      %546 = vmatprep.subr.bf16.mxu0 0
      %547 = vmatpush1.bf16.msra.mxu0 0
      %548 = vmatprep.subr.bf16.mxu0 0
      %549 = vmatpush1.bf16.msra.mxu0 0
      %550 = vmatprep.subr.bf16.mxu0 0
      %551 = vmatpush1.bf16.msra.mxu0 0
      %552 = vmatprep.subr.bf16.mxu0 0
      %553 = vmatpush1.bf16.msra.mxu0 0
      %554 = vmatprep.mubr.bf16.mxu0 0
      %555 = vmatmul.mubr.bf16.gmra.mrb[0].mxu0 %v513
      %v556 = vpop.f32.mrb[0].mxu0
      %v557 = vadd.f32 0.0, %v556
      %v558 = vpop.f32.mrb[0].mxu0
      %v559 = vpop.f32.mrb[0].mxu0
      %v560 = vpop.f32.mrb[0].mxu0
      %561 = vdwg.mxu0
      %v562 = vmul.f32 %v557, %v512
      %v563 = vpack.c.bf16 %v404, %v403
      %v564 = vpack.c.bf16 %v406, %v405
      %v565 = vpack.c.bf16 %v408, %v407
      %v566 = vpack.c.bf16 %v410, %v409
      %v567 = vpack.c.bf16 %v412, %v411
      %v568 = vpack.c.bf16 %v414, %v413
      %v569 = vpack.c.bf16 %v416, %v415
      %v570 = vpack.c.bf16 %v418, %v417
      %571 = vmatprep.subr.bf16.mxu0 0
      %572 = vmatpush1.bf16.msra.mxu0 %v563
      %573 = vmatprep.subr.bf16.mxu0 0
      %574 = vmatpush1.bf16.msra.mxu0 %v564
      %575 = vmatprep.subr.bf16.mxu0 0
      %576 = vmatpush1.bf16.msra.mxu0 %v565
      %577 = vmatprep.subr.bf16.mxu0 0
      %578 = vmatpush1.bf16.msra.mxu0 %v566
      %579 = vmatprep.subr.bf16.mxu0 0
      %580 = vmatpush1.bf16.msra.mxu0 %v567
      %581 = vmatprep.subr.bf16.mxu0 0
      %582 = vmatpush1.bf16.msra.mxu0 %v568
      %583 = vmatprep.subr.bf16.mxu0 0
      %584 = vmatpush1.bf16.msra.mxu0 %v569
      %585 = vmatprep.subr.bf16.mxu0 0
      %586 = vmatpush1.bf16.msra.mxu0 %v570
      %587 = vmatprep.subr.bf16.mxu0 0
      %588 = vmatpush1.bf16.msra.mxu0 0
      %589 = vmatprep.subr.bf16.mxu0 0
      %590 = vmatpush1.bf16.msra.mxu0 0
      %591 = vmatprep.subr.bf16.mxu0 0
      %592 = vmatpush1.bf16.msra.mxu0 0
      %593 = vmatprep.subr.bf16.mxu0 0
      %594 = vmatpush1.bf16.msra.mxu0 0
      %595 = vmatprep.subr.bf16.mxu0 0
      %596 = vmatpush1.bf16.msra.mxu0 0
      %597 = vmatprep.subr.bf16.mxu0 0
      %598 = vmatpush1.bf16.msra.mxu0 0
      %599 = vmatprep.subr.bf16.mxu0 0
      %600 = vmatpush1.bf16.msra.mxu0 0
      %601 = vmatprep.subr.bf16.mxu0 0
      %602 = vmatpush1.bf16.msra.mxu0 0
      %603 = vmatprep.mubr.bf16.mxu0 0
      %604 = vmatmul.mubr.bf16.gmra.mrb[0].mxu0 %v513
      %v605 = vpop.f32.mrb[0].mxu0
      %v606 = vadd.f32 0.0, %v605
      %v607 = vpop.f32.mrb[0].mxu0
      %v608 = vpop.f32.mrb[0].mxu0
      %v609 = vpop.f32.mrb[0].mxu0
      %610 = vdwg.mxu0
      %v611 = vmul.f32 %v606, %v512
      %v612 = vmul.f32 %v387, %v387
      %v613 = vmul.f32 %v388, %v388
      %v614 = vmul.f32 %v389, %v389
      %v615 = vmul.f32 %v390, %v390
      %v616 = vmul.f32 %v391, %v391
      %v617 = vmul.f32 %v392, %v392
      %v618 = vmul.f32 %v393, %v393
      %v619 = vmul.f32 %v394, %v394
      %v620 = vmul.f32 %v395, %v395
      %v621 = vmul.f32 %v396, %v396
      %v622 = vmul.f32 %v397, %v397
      %v623 = vmul.f32 %v398, %v398
      %v624 = vmul.f32 %v399, %v399
      %v625 = vmul.f32 %v400, %v400
      %v626 = vmul.f32 %v401, %v401
      %v627 = vmul.f32 %v402, %v402
      %628 = vadd.xlane.f32.xlu0 %v612
      %v629 = vpop.xlane.xlu0 %628
      %630 = vadd.xlane.f32.xlu0 %v613
      %v631 = vpop.xlane.xlu0 %630
      %632 = vadd.xlane.f32.xlu0 %v614
      %v633 = vpop.xlane.xlu0 %632
      %634 = vadd.xlane.f32.xlu0 %v615
      %v635 = vpop.xlane.xlu0 %634
      %636 = vadd.xlane.f32.xlu0 %v616
      %v637 = vpop.xlane.xlu0 %636
      %638 = vadd.xlane.f32.xlu0 %v617
      %v639 = vpop.xlane.xlu0 %638
      %640 = vadd.xlane.f32.xlu0 %v618
      %v641 = vpop.xlane.xlu0 %640
      %642 = vadd.xlane.f32.xlu0 %v619
      %v643 = vpop.xlane.xlu0 %642
      %644 = vadd.xlane.f32.xlu0 %v620
      %v645 = vpop.xlane.xlu0 %644
      %646 = vadd.xlane.f32.xlu0 %v621
      %v647 = vpop.xlane.xlu0 %646
      %648 = vadd.xlane.f32.xlu0 %v622
      %v649 = vpop.xlane.xlu0 %648
      %650 = vadd.xlane.f32.xlu0 %v623
      %v651 = vpop.xlane.xlu0 %650
      %652 = vadd.xlane.f32.xlu0 %v624
      %v653 = vpop.xlane.xlu0 %652
      %654 = vadd.xlane.f32.xlu0 %v625
      %v655 = vpop.xlane.xlu0 %654
      %656 = vadd.xlane.f32.xlu0 %v626
      %v657 = vpop.xlane.xlu0 %656
      %658 = vadd.xlane.f32.xlu0 %v627
      %v659 = vpop.xlane.xlu0 %658
      %v660 = vadd.f32 %v629, 1e-08
      %v661 = vadd.f32 %v631, 1e-08
      %v662 = vadd.f32 %v633, 1e-08
      %v663 = vadd.f32 %v635, 1e-08
      %v664 = vadd.f32 %v637, 1e-08
      %v665 = vadd.f32 %v639, 1e-08
      %v666 = vadd.f32 %v641, 1e-08
      %v667 = vadd.f32 %v643, 1e-08
      %v668 = vadd.f32 %v645, 1e-08
      %v669 = vadd.f32 %v647, 1e-08
      %v670 = vadd.f32 %v649, 1e-08
      %v671 = vadd.f32 %v651, 1e-08
      %v672 = vadd.f32 %v653, 1e-08
      %v673 = vadd.f32 %v655, 1e-08
      %v674 = vadd.f32 %v657, 1e-08
      %v675 = vadd.f32 %v659, 1e-08
      %v676 = vrsqrt.pop %v660
      %v677 = vrsqrt.pop %v661
      %v678 = vrsqrt.pop %v662
      %v679 = vrsqrt.pop %v663
      %v680 = vrsqrt.pop %v664
      %v681 = vrsqrt.pop %v665
      %v682 = vrsqrt.pop %v666
      %v683 = vrsqrt.pop %v667
      %v684 = vrsqrt.pop %v668
      %v685 = vrsqrt.pop %v669
      %v686 = vrsqrt.pop %v670
      %v687 = vrsqrt.pop %v671
      %v688 = vrsqrt.pop %v672
      %v689 = vrsqrt.pop %v673
      %v690 = vrsqrt.pop %v674
      %v691 = vrsqrt.pop %v675
      %v692 = vmul.f32 %v387, %v676
      %v693 = vmul.f32 %v388, %v677
      %v694 = vmul.f32 %v389, %v678
      %v695 = vmul.f32 %v390, %v679
      %v696 = vmul.f32 %v391, %v680
      %v697 = vmul.f32 %v392, %v681
      %v698 = vmul.f32 %v393, %v682
      %v699 = vmul.f32 %v394, %v683
      %v700 = vmul.f32 %v395, %v684
      %v701 = vmul.f32 %v396, %v685
      %v702 = vmul.f32 %v397, %v686
      %v703 = vmul.f32 %v398, %v687
      %v704 = vmul.f32 %v399, %v688
      %v705 = vmul.f32 %v400, %v689
      %v706 = vmul.f32 %v401, %v690
      %v707 = vmul.f32 %v402, %v691
      %v708 = vmul.f32 %v562, %v562
      %709 = vadd.xlane.f32.xlu0 %v708
      %v710 = vpop.xlane.xlu0 %709
      %v711 = vadd.f32 %v710, 1e-08
      %v712 = vrsqrt.pop %v711
      %v713 = vmul.f32 %v562, %v712
      %v714 = vpack.c.bf16 %v713, %v713
      %v715 = vpack.c.bf16 %v693, %v692
      %v716 = vpack.c.bf16 %v695, %v694
      %v717 = vpack.c.bf16 %v697, %v696
      %v718 = vpack.c.bf16 %v699, %v698
      %v719 = vpack.c.bf16 %v701, %v700
      %v720 = vpack.c.bf16 %v703, %v702
      %v721 = vpack.c.bf16 %v705, %v704
      %v722 = vpack.c.bf16 %v707, %v706
      %723 = vmatprep.subr.bf16.mxu0 0
      %724 = vmatpush1.bf16.xpose.msra.mxu0 %v715
      %725 = vmatprep.subr.bf16.mxu0 0
      %726 = vmatpush1.bf16.xpose.msra.mxu0 %v716
      %727 = vmatprep.subr.bf16.mxu0 0
      %728 = vmatpush1.bf16.xpose.msra.mxu0 %v717
      %729 = vmatprep.subr.bf16.mxu0 0
      %730 = vmatpush1.bf16.xpose.msra.mxu0 %v718
      %731 = vmatprep.subr.bf16.mxu0 0
      %732 = vmatpush1.bf16.xpose.msra.mxu0 %v719
      %733 = vmatprep.subr.bf16.mxu0 0
      %734 = vmatpush1.bf16.xpose.msra.mxu0 %v720
      %735 = vmatprep.subr.bf16.mxu0 0
      %736 = vmatpush1.bf16.xpose.msra.mxu0 %v721
      %737 = vmatprep.subr.bf16.mxu0 0
      %738 = vmatpush1.bf16.xpose.msra.mxu0 %v722
      %739 = vmatprep.subr.bf16.mxu0 0
      %740 = vmatpush1.bf16.xpose.msra.mxu0 0
      %741 = vmatprep.subr.bf16.mxu0 0
      %742 = vmatpush1.bf16.xpose.msra.mxu0 0
      %743 = vmatprep.subr.bf16.mxu0 0
      %744 = vmatpush1.bf16.xpose.msra.mxu0 0
      %745 = vmatprep.subr.bf16.mxu0 0
      %746 = vmatpush1.bf16.xpose.msra.mxu0 0
      %747 = vmatprep.subr.bf16.mxu0 0
      %748 = vmatpush1.bf16.xpose.msra.mxu0 0
      %749 = vmatprep.subr.bf16.mxu0 0
      %750 = vmatpush1.bf16.xpose.msra.mxu0 0
      %751 = vmatprep.subr.bf16.mxu0 0
      %752 = vmatpush1.bf16.xpose.msra.mxu0 0
      %753 = vmatprep.subr.bf16.mxu0 0
      %754 = vmatpush1.bf16.xpose.msra.mxu0 0
      %755 = vmatprep.mubr.bf16.mxu0 0
      %756 = vmatmul.mubr.bf16.gmra.mrb[0].mxu0 %v714
      %v757 = vpop.f32.mrb[0].mxu0
      %v758 = vadd.f32 0.0, %v757
      %v759 = vpop.f32.mrb[0].mxu0
      %v760 = vpop.f32.mrb[0].mxu0
      %v761 = vpop.f32.mrb[0].mxu0
      %762 = vdwg.mxu0
      %v763 = vrcp.pop 0.1
      %v764 = vmul.f32 %v758, %v763
      %vm765 = vcmp.gt.f32.partialorder %v501, 0.5
      %v766 = vsel %vm765, 1, 0
      %vm767 = vcmp.eq.s32.totalorder %v766, 1
      %v768 = vsel %vm767, %v764, -1e+09
      %v769 = vrot.slane %v768, 4
      %v770 = vmax.f32 %v768, %v769
      %v771 = vrot.slane %v770, 2
      %v772 = vmax.f32 %v770, %v771
      %v773 = vrot.slane %v772, 1
      %v774 = vmax.f32 %v772, %v773
      %v775 = vsub.f32 %v768, %v774
      %v776 = vmul.f32 %v775, 1.442695
      %v777 = vpow.pop %v776
      %v778 = vrot.slane %v777, 4
      %v779 = vadd.f32 %v777, %v778
      %v780 = vrot.slane %v779, 2
      %v781 = vadd.f32 %v779, %v780
      %v782 = vrot.slane %v781, 1
      %v783 = vadd.f32 %v781, %v782
      %v784 = vlog2.pop %v783
      %v785 = vmul.f32 %v784, 0.6931472
      %v786 = vadd.f32 %v785, %v774
      %v787 = vmul.f32 %v768, %v426
      %v788 = vrot.slane %v787, 4
      %v789 = vadd.f32 %v787, %v788
      %v790 = vrot.slane %v789, 2
      %v791 = vadd.f32 %v789, %v790
      %v792 = vrot.slane %v791, 1
      %v793 = vadd.f32 %v791, %v792
      %v794 = vsub.f32 %v786, %v793
      %vm795 = vcmask 1040384
      %v796 = vsel %vm795, %v794, 0.0
      %797 = vadd.xlane.f32.xlu0 %v796
      %v798 = vpop.xlane.xlu0 %797
      %v799 = vrot.slane %v798, 4
      %v800 = vadd.f32 %v798, %v799
      %v801 = vrot.slane %v800, 2
      %v802 = vadd.f32 %v800, %v801
      %v803 = vrot.slane %v802, 1
      %v804 = vadd.f32 %v802, %v803
      %s805 = vtos %v804
      %v806 = vrcp.pop 128.0
      %s807 = vtos %v806
      %s808 = smul.f32 %s805, %s807
      %vm809 = vcmask 7168
      %v810 = vsel %vm809, %v629, 0.0
      %v811 = vsel %vm809, %v631, 0.0
      %v812 = vadd.f32 %v810, %v811
      %v813 = vsel %vm809, %v633, 0.0
      %v814 = vadd.f32 %v812, %v813
      %v815 = vsel %vm809, %v635, 0.0
      %v816 = vadd.f32 %v814, %v815
      %v817 = vsel %vm809, %v637, 0.0
      %v818 = vadd.f32 %v816, %v817
      %v819 = vsel %vm809, %v639, 0.0
      %v820 = vadd.f32 %v818, %v819
      %v821 = vsel %vm809, %v641, 0.0
      %v822 = vadd.f32 %v820, %v821
      %v823 = vsel %vm809, %v643, 0.0
      %v824 = vadd.f32 %v822, %v823
      %v825 = vsel %vm809, %v645, 0.0
      %v826 = vadd.f32 %v824, %v825
      %v827 = vsel %vm809, %v647, 0.0
      %v828 = vadd.f32 %v826, %v827
      %v829 = vsel %vm809, %v649, 0.0
      %v830 = vadd.f32 %v828, %v829
      %v831 = vsel %vm809, %v651, 0.0
      %v832 = vadd.f32 %v830, %v831
      %v833 = vsel %vm809, %v653, 0.0
      %v834 = vadd.f32 %v832, %v833
      %v835 = vsel %vm809, %v655, 0.0
      %v836 = vadd.f32 %v834, %v835
      %v837 = vsel %vm809, %v657, 0.0
      %v838 = vadd.f32 %v836, %v837
      %v839 = vsel %vm809, %v659, 0.0
      %v840 = vadd.f32 %v838, %v839
      %841 = vadd.xlane.f32.xlu0 %v840
      %v842 = vpop.xlane.xlu0 %841
      %v843 = vrot.slane %v842, 4
      %v844 = vadd.f32 %v842, %v843
      %v845 = vrot.slane %v844, 2
      %v846 = vadd.f32 %v844, %v845
      %v847 = vrot.slane %v846, 1
      %v848 = vadd.f32 %v846, %v847
      %s849 = vtos %v848
      %v850 = vmul.f32 %v428, %v710
      %v851 = vsel %vm809, %v850, 0.0
      %852 = vadd.xlane.f32.xlu0 %v851
      %v853 = vpop.xlane.xlu0 %852
      %v854 = vrot.slane %v853, 4
      %v855 = vadd.f32 %v853, %v854
      %v856 = vrot.slane %v855, 2
      %v857 = vadd.f32 %v855, %v856
      %v858 = vrot.slane %v857, 1
      %v859 = vadd.f32 %v857, %v858
      %s860 = vtos %v859
      %s861 = ssub.f32 %s849, %s860
      %s862 = smax.f32 %s861, 0.0
      %v863 = vrcp.pop 128.0
      %s864 = vtos %v863
      %s865 = smul.f32 %s862, %s864
      %866 = vmatprep.subr.mxu0 0.0
      %867 = vmatpush1.xpose.msra.mxu0 %v713
      %868 = vmatprep.subr.mxu0 0.0
      %869 = vmatpush1.xpose.msra.mxu0 0.0
      %870 = vmatprep.subr.mxu0 0.0
      %871 = vmatpush1.xpose.msra.mxu0 0.0
      %872 = vmatprep.subr.mxu0 0.0
      %873 = vmatpush1.xpose.msra.mxu0 0.0
      %874 = vmatprep.subr.mxu0 0.0
      %875 = vmatpush1.xpose.msra.mxu0 0.0
      %876 = vmatprep.subr.mxu0 0.0
      %877 = vmatpush1.xpose.msra.mxu0 0.0
      %878 = vmatprep.subr.mxu0 0.0
      %879 = vmatpush1.xpose.msra.mxu0 0.0
      %880 = vmatprep.subr.mxu0 0.0
      %881 = vmatpush1.xpose.msra.mxu0 0.0
      %882 = vmatprep.subr.mxu0 0.0
      %883 = vmatpush1.xpose.msra.mxu0 0.0
      %884 = vmatprep.subr.mxu0 0.0
      %885 = vmatpush1.xpose.msra.mxu0 0.0
      %886 = vmatprep.subr.mxu0 0.0
      %887 = vmatpush1.xpose.msra.mxu0 0.0
      %888 = vmatprep.subr.mxu0 0.0
      %889 = vmatpush1.xpose.msra.mxu0 0.0
      %890 = vmatprep.subr.mxu0 0.0
      %891 = vmatpush1.xpose.msra.mxu0 0.0
      %892 = vmatprep.subr.mxu0 0.0
      %893 = vmatpush1.xpose.msra.mxu0 0.0
      %894 = vmatprep.subr.mxu0 0.0
      %895 = vmatpush1.xpose.msra.mxu0 0.0
      %896 = vmatprep.subr.mxu0 0.0
      %897 = vmatpush1.xpose.msra.mxu0 0.0
      %898 = vmatprep.subr.mxu0 0.0
      %899 = vmatpush1.xpose.msra.mxu0 0.0
      %900 = vmatprep.subr.mxu0 0.0
      %901 = vmatpush1.xpose.msra.mxu0 0.0
      %902 = vmatprep.subr.mxu0 0.0
      %903 = vmatpush1.xpose.msra.mxu0 0.0
      %904 = vmatprep.subr.mxu0 0.0
      %905 = vmatpush1.xpose.msra.mxu0 0.0
      %906 = vmatprep.subr.mxu0 0.0
      %907 = vmatpush1.xpose.msra.mxu0 0.0
      %908 = vmatprep.subr.mxu0 0.0
      %909 = vmatpush1.xpose.msra.mxu0 0.0
      %910 = vmatprep.subr.mxu0 0.0
      %911 = vmatpush1.xpose.msra.mxu0 0.0
      %912 = vmatprep.subr.mxu0 0.0
      %913 = vmatpush1.xpose.msra.mxu0 0.0
      %914 = vmatprep.subr.mxu0 0.0
      %915 = vmatpush1.xpose.msra.mxu0 0.0
      %916 = vmatprep.subr.mxu0 0.0
      %917 = vmatpush1.xpose.msra.mxu0 0.0
      %918 = vmatprep.subr.mxu0 0.0
      %919 = vmatpush1.xpose.msra.mxu0 0.0
      %920 = vmatprep.subr.mxu0 0.0
      %921 = vmatpush1.xpose.msra.mxu0 0.0
      %922 = vmatprep.subr.mxu0 0.0
      %923 = vmatpush1.xpose.msra.mxu0 0.0
      %924 = vmatprep.subr.mxu0 0.0
      %925 = vmatpush1.xpose.msra.mxu0 0.0
      %926 = vmatprep.subr.mxu0 0.0
      %927 = vmatpush1.xpose.msra.mxu0 0.0
      %928 = vmatprep.subr.mxu0 0.0
      %929 = vmatpush1.xpose.msra.mxu0 0.0
      %930 = vmatprep.mubr.f32.mxu0 0.0
      %931 = vmatmul.mubr.f32.gmra.mrb[0].mxu0 %v713
      %v932 = vpop.f32.mrb[0].mxu0
      %v933 = vadd.f32 0.0, %v932
      %v934 = vpop.f32.mrb[0].mxu0
      %935 = vdwg.mxu0
      %v936 = vmul.f32 %v933, 2.0
      %v937 = vsub.f32 2.0, %v936
      %v938 = vmax.f32 %v937, 0.0
      %v939 = vadd.f32 %v938, 1e-12
      %v940 = vrsqrt.pop %v939
      %v941 = vmul.f32 %v939, %v940
      %vm942 = vcmp.eq.f32.partialorder %v939, inf
      %v943 = vsel %vm942, %v939, %v941
      %vm944 = vcmp.eq.f32.partialorder %v939, 0.0
      %v945 = vand.u32 %v939, 2147483648
      %v946 = vsel %vm944, %v945, %v943
      %v947 = vmul.f32 %v509, %v322
      %v948 = vsub.f32 1.0, %v946
      %v949 = vmax.f32 %v948, 0.0
      %v950 = vmul.f32 %v949, %v949
      %v951 = vmul.f32 %v950, %v947
      %vm952 = vcmask 64512
      %v953 = vsel %vm952, %v951, 0.0
      %954 = vadd.xlane.f32.xlu0 %v953
      %v955 = vpop.xlane.xlu0 %954
      %v956 = vrot.slane %v955, 4
      %v957 = vadd.f32 %v955, %v956
      %v958 = vrot.slane %v957, 2
      %v959 = vadd.f32 %v957, %v958
      %v960 = vrot.slane %v959, 1
      %v961 = vadd.f32 %v959, %v960
      %s962 = vtos %v961
      %v963 = vsel %vm952, %v947, 0.0
      %964 = vadd.xlane.f32.xlu0 %v963
      %v965 = vpop.xlane.xlu0 %964
      %v966 = vrot.slane %v965, 4
      %v967 = vadd.f32 %v965, %v966
      %v968 = vrot.slane %v967, 2
      %v969 = vadd.f32 %v967, %v968
      %v970 = vrot.slane %v969, 1
      %v971 = vadd.f32 %v969, %v970
      %s972 = vtos %v971
      %s973 = smax.f32 %s972, 1.0
      %v974 = vstv %s973
      %v975 = vrcp.pop %v974
      %s976 = vtos %v975
      %s977 = smul.f32 %s962, %s976
      %s978 = sadd.f32 %s808, %s977
      %s979 = smul.f32 %s865, 0.5
      %s980 = sadd.f32 %s978, %s979
      %s981 = sadd.f32 %s980, 0.0
      %v982 = vmul.f32 %v611, %v611
      %983 = vadd.xlane.f32.xlu0 %v982
      %v984 = vpop.xlane.xlu0 %983
      %v985 = vadd.f32 %v984, 1e-08
      %v986 = vrsqrt.pop %v985
      %v987 = vmul.f32 %v611, %v986
      %v988 = vmul.f32 %v419, %v419
      %989 = vadd.xlane.f32.xlu0 %v988
      %v990 = vpop.xlane.xlu0 %989
      %v991 = vadd.f32 %v990, 1e-08
      %v992 = vrsqrt.pop %v991
      %v993 = vmul.f32 %v419, %v992
      %v994 = vpack.c.bf16 %v987, %v987
      %v995 = vpack.c.bf16 %v993, %v993
      %996 = vmatprep.subr.bf16.mxu0 0
      %997 = vmatpush1.bf16.xpose.msra.mxu0 %v995
      %998 = vmatprep.subr.bf16.mxu0 0
      %999 = vmatpush1.bf16.xpose.msra.mxu0 0
      %1000 = vmatprep.subr.bf16.mxu0 0
      %1001 = vmatpush1.bf16.xpose.msra.mxu0 0
      %1002 = vmatprep.subr.bf16.mxu0 0
      %1003 = vmatpush1.bf16.xpose.msra.mxu0 0
      %1004 = vmatprep.subr.bf16.mxu0 0
      %1005 = vmatpush1.bf16.xpose.msra.mxu0 0
      %1006 = vmatprep.subr.bf16.mxu0 0
      %1007 = vmatpush1.bf16.xpose.msra.mxu0 0
      %1008 = vmatprep.subr.bf16.mxu0 0
      %1009 = vmatpush1.bf16.xpose.msra.mxu0 0
      %1010 = vmatprep.subr.bf16.mxu0 0
      %1011 = vmatpush1.bf16.xpose.msra.mxu0 0
      %1012 = vmatprep.subr.bf16.mxu0 0
      %1013 = vmatpush1.bf16.xpose.msra.mxu0 0
      %1014 = vmatprep.subr.bf16.mxu0 0
      %1015 = vmatpush1.bf16.xpose.msra.mxu0 0
      %1016 = vmatprep.subr.bf16.mxu0 0
      %1017 = vmatpush1.bf16.xpose.msra.mxu0 0
      %1018 = vmatprep.subr.bf16.mxu0 0
      %1019 = vmatpush1.bf16.xpose.msra.mxu0 0
      %1020 = vmatprep.subr.bf16.mxu0 0
      %1021 = vmatpush1.bf16.xpose.msra.mxu0 0
      %1022 = vmatprep.subr.bf16.mxu0 0
      %1023 = vmatpush1.bf16.xpose.msra.mxu0 0
      %1024 = vmatprep.subr.bf16.mxu0 0
      %1025 = vmatpush1.bf16.xpose.msra.mxu0 0
      %1026 = vmatprep.subr.bf16.mxu0 0
      %1027 = vmatpush1.bf16.xpose.msra.mxu0 0
      %1028 = vmatprep.mubr.bf16.mxu0 0
      %1029 = vmatmul.mubr.bf16.gmra.mrb[0].mxu0 %v994
      %v1030 = vpop.f32.mrb[0].mxu0
      %v1031 = vadd.f32 0.0, %v1030
      %v1032 = vpop.f32.mrb[0].mxu0
      %v1033 = vpop.f32.mrb[0].mxu0
      %v1034 = vpop.f32.mrb[0].mxu0
      %1035 = vdwg.mxu0
      %vm1036 = vcmp.gt.f32.partialorder %v504, 0.5
      %v1037 = vmul.f32 %v1031, %v763
      %v1038 = vsel %vm1036, 1, 0
      %v1039 = vlaneseq
      %v1040 = vshrl.u32 %v1039, 7
      %v1041 = vsub.s32 0, %v1040
      %v1042 = vrot.slane %v1038, %v1041
      %vm1043 = vcmp.eq.s32.totalorder %v1042, 1
      %v1044 = vsel %vm1043, %v1037, -1e+09
      %v1045 = vsel %vm952, %v1044, -inf
      %1046 = vmax.xlane.f32.xlu0 %v1045
      %v1047 = vpop.xlane.xlu0 %1046
      %v1048 = vsub.f32 %v1044, %v1047
      %v1049 = vmul.f32 %v1048, 1.442695
      %v1050 = vpow.pop %v1049
      %v1051 = vsel %vm952, %v1050, 0.0
      %1052 = vadd.xlane.f32.xlu0 %v1051
      %v1053 = vpop.xlane.xlu0 %1052
      %v1054 = vlog2.pop %v1053
      %v1055 = vmul.f32 %v1054, 0.6931472
      %v1056 = vadd.f32 %v1055, %v1047
      %v1057 = vmul.f32 %v1044, %v323
      %v1058 = vsel %vm952, %v1057, 0.0
      %1059 = vadd.xlane.f32.xlu0 %v1058
      %v1060 = vpop.xlane.xlu0 %1059
      %v1061 = vsel %vm809, %v501, 0.0
      %1062 = vadd.xlane.f32.xlu0 %v1061
      %v1063 = vpop.xlane.xlu0 %1062
      %v1064 = vrot.slane %v1063, 4
      %v1065 = vadd.f32 %v1063, %v1064
      %v1066 = vrot.slane %v1065, 2
      %v1067 = vadd.f32 %v1065, %v1066
      %v1068 = vrot.slane %v1067, 1
      %v1069 = vadd.f32 %v1067, %v1068
      %s1070 = vtos %v1069
      %s1071 = smax.f32 %s1070, 1.0
      %v1072 = vsub.f32 %v1056, %v1060
      %v1073 = vmul.f32 %v1072, %v501
      %v1074 = vsel %vm809, %v1073, 0.0
      %1075 = vadd.xlane.f32.xlu0 %v1074
      %v1076 = vpop.xlane.xlu0 %1075
      %v1077 = vrot.slane %v1076, 4
      %v1078 = vadd.f32 %v1076, %v1077
      %v1079 = vrot.slane %v1078, 2
      %v1080 = vadd.f32 %v1078, %v1079
      %v1081 = vrot.slane %v1080, 1
      %v1082 = vadd.f32 %v1080, %v1081
      %s1083 = vtos %v1082
      %v1084 = vstv %s1071
      %v1085 = vrcp.pop %v1084
      %s1086 = vtos %v1085
      %s1087 = smul.f32 %s1083, %s1086
      %v1088 = vmul.f32 %v1031, %v323
      %v1089 = vsel %vm952, %v1088, 0.0
      %1090 = vadd.xlane.f32.xlu0 %v1089
      %v1091 = vpop.xlane.xlu0 %1090
      %v1092 = vsub.f32 %v1031, %v1091
      %v1093 = vadd.f32 %v1092, 0.2
      %v1094 = vmax.f32 %v1093, 0.0
      %v1095 = vmul.f32 %v1094, %v947
      %v1096 = vsel %vm952, %v1095, 0.0
      %1097 = vadd.xlane.f32.xlu0 %v1096
      %v1098 = vpop.xlane.xlu0 %1097
      %v1099 = vrot.slane %v1098, 4
      %v1100 = vadd.f32 %v1098, %v1099
      %v1101 = vrot.slane %v1100, 2
      %v1102 = vadd.f32 %v1100, %v1101
      %v1103 = vrot.slane %v1102, 1
      %v1104 = vadd.f32 %v1102, %v1103
      %s1105 = vtos %v1104
      %v1106 = vstv %s973
      %v1107 = vrcp.pop %v1106
      %s1108 = vtos %v1107
      %s1109 = smul.f32 %s1105, %s1108
      %s1110 = sadd.f32 %s1087, 0.0
      %s1111 = sadd.f32 %s1110, %s1109
      %s1112 = scalar_lea.vmem %s275, 128
      %v1113 = vld [vmem:[%s1112] sm:$0xff]
      %v1114 = vld [vmem:[%s1112 + $0x8] sm:$0xff]
      %v1115 = vld [vmem:[%s1112 + $0x10] sm:$0xff]
      %v1116 = vld [vmem:[%s1112 + $0x18] sm:$0xff]
      %v1117 = vld [vmem:[%s1112 + $0x20] sm:$0xff]
      %v1118 = vld [vmem:[%s1112 + $0x28] sm:$0xff]
      %v1119 = vld [vmem:[%s1112 + $0x30] sm:$0xff]
      %v1120 = vld [vmem:[%s1112 + $0x38] sm:$0xff]
      %v1121 = vld [vmem:[%s1112 + $0x40] sm:$0xff]
      %v1122 = vld [vmem:[%s1112 + $0x48] sm:$0xff]
      %v1123 = vld [vmem:[%s1112 + $0x50] sm:$0xff]
      %v1124 = vld [vmem:[%s1112 + $0x58] sm:$0xff]
      %v1125 = vld [vmem:[%s1112 + $0x60] sm:$0xff]
      %v1126 = vld [vmem:[%s1112 + $0x68] sm:$0xff]
      %v1127 = vld [vmem:[%s1112 + $0x70] sm:$0xff]
      %v1128 = vld [vmem:[%s1112 + $0x78] sm:$0xff]
      %s1129 = scalar_lea.vmem %s280, 128
      %v1130 = vld [vmem:[%s1129] sm:$0xff]
      %v1131 = vld [vmem:[%s1129 + $0x8] sm:$0xff]
      %v1132 = vld [vmem:[%s1129 + $0x10] sm:$0xff]
      %v1133 = vld [vmem:[%s1129 + $0x18] sm:$0xff]
      %v1134 = vld [vmem:[%s1129 + $0x20] sm:$0xff]
      %v1135 = vld [vmem:[%s1129 + $0x28] sm:$0xff]
      %v1136 = vld [vmem:[%s1129 + $0x30] sm:$0xff]
      %v1137 = vld [vmem:[%s1129 + $0x38] sm:$0xff]
      %v1138 = vld [vmem:[%s1129 + $0x40] sm:$0xff]
      %v1139 = vld [vmem:[%s1129 + $0x48] sm:$0xff]
      %v1140 = vld [vmem:[%s1129 + $0x50] sm:$0xff]
      %v1141 = vld [vmem:[%s1129 + $0x58] sm:$0xff]
      %v1142 = vld [vmem:[%s1129 + $0x60] sm:$0xff]
      %v1143 = vld [vmem:[%s1129 + $0x68] sm:$0xff]
      %v1144 = vld [vmem:[%s1129 + $0x70] sm:$0xff]
      %v1145 = vld [vmem:[%s1129 + $0x78] sm:$0xff]
      %s1146 = scalar_lea.vmem %s285, 8
      %v1147 = vld [vmem:[%s1146] sm:$0xff]
      %v1148 = vlaneseq
      %v1149 = vshrl.u32 %v1148, 7
      %v1150 = vsub.s32 1, %v1149
      %v1151 = vrot.slane %v299, %v1150
      %vm1152 = vcmp.eq.s32.totalorder %v317, %v1151
      %v1153 = vsel %vm1152, 1, 0
      %v1154 = vcvt.s32.f32 %v1153
      %1155 = vadd.xlane.f32.xlu0 %v1154
      %v1156 = vpop.xlane.xlu0 %1155
      %1157 = vmatprep.subr.mxu0 0.0
      %1158 = vmatpush1.xpose.msra.mxu0 %v1154
      %1159 = vmatprep.subr.mxu0 0.0
      %1160 = vmatpush1.xpose.msra.mxu0 0.0
      %1161 = vmatprep.subr.mxu0 0.0
      %1162 = vmatpush1.xpose.msra.mxu0 0.0
      %1163 = vmatprep.subr.mxu0 0.0
      %1164 = vmatpush1.xpose.msra.mxu0 0.0
      %1165 = vmatprep.subr.mxu0 0.0
      %1166 = vmatpush1.xpose.msra.mxu0 0.0
      %1167 = vmatprep.subr.mxu0 0.0
      %1168 = vmatpush1.xpose.msra.mxu0 0.0
      %1169 = vmatprep.subr.mxu0 0.0
      %1170 = vmatpush1.xpose.msra.mxu0 0.0
      %1171 = vmatprep.subr.mxu0 0.0
      %1172 = vmatpush1.xpose.msra.mxu0 0.0
      %1173 = vmatprep.subr.mxu0 0.0
      %1174 = vmatpush1.xpose.msra.mxu0 0.0
      %1175 = vmatprep.subr.mxu0 0.0
      %1176 = vmatpush1.xpose.msra.mxu0 0.0
      %1177 = vmatprep.subr.mxu0 0.0
      %1178 = vmatpush1.xpose.msra.mxu0 0.0
      %1179 = vmatprep.subr.mxu0 0.0
      %1180 = vmatpush1.xpose.msra.mxu0 0.0
      %1181 = vmatprep.subr.mxu0 0.0
      %1182 = vmatpush1.xpose.msra.mxu0 0.0
      %1183 = vmatprep.subr.mxu0 0.0
      %1184 = vmatpush1.xpose.msra.mxu0 0.0
      %1185 = vmatprep.subr.mxu0 0.0
      %1186 = vmatpush1.xpose.msra.mxu0 0.0
      %1187 = vmatprep.subr.mxu0 0.0
      %1188 = vmatpush1.xpose.msra.mxu0 0.0
      %1189 = vmatprep.subr.mxu0 0.0
      %1190 = vmatpush1.xpose.msra.mxu0 0.0
      %1191 = vmatprep.subr.mxu0 0.0
      %1192 = vmatpush1.xpose.msra.mxu0 0.0
      %1193 = vmatprep.subr.mxu0 0.0
      %1194 = vmatpush1.xpose.msra.mxu0 0.0
      %1195 = vmatprep.subr.mxu0 0.0
      %1196 = vmatpush1.xpose.msra.mxu0 0.0
      %1197 = vmatprep.subr.mxu0 0.0
      %1198 = vmatpush1.xpose.msra.mxu0 0.0
      %1199 = vmatprep.subr.mxu0 0.0
      %1200 = vmatpush1.xpose.msra.mxu0 0.0
      %1201 = vmatprep.subr.mxu0 0.0
      %1202 = vmatpush1.xpose.msra.mxu0 0.0
      %1203 = vmatprep.subr.mxu0 0.0
      %1204 = vmatpush1.xpose.msra.mxu0 0.0
      %1205 = vmatprep.subr.mxu0 0.0
      %1206 = vmatpush1.xpose.msra.mxu0 0.0
      %1207 = vmatprep.subr.mxu0 0.0
      %1208 = vmatpush1.xpose.msra.mxu0 0.0
      %1209 = vmatprep.subr.mxu0 0.0
      %1210 = vmatpush1.xpose.msra.mxu0 0.0
      %1211 = vmatprep.subr.mxu0 0.0
      %1212 = vmatpush1.xpose.msra.mxu0 0.0
      %1213 = vmatprep.subr.mxu0 0.0
      %1214 = vmatpush1.xpose.msra.mxu0 0.0
      %1215 = vmatprep.subr.mxu0 0.0
      %1216 = vmatpush1.xpose.msra.mxu0 0.0
      %1217 = vmatprep.subr.mxu0 0.0
      %1218 = vmatpush1.xpose.msra.mxu0 0.0
      %1219 = vmatprep.subr.mxu0 0.0
      %1220 = vmatpush1.xpose.msra.mxu0 0.0
      %1221 = vmatprep.mubr.f32.mxu0 0.0
      %1222 = vmatmul.mubr.f32.gmra.mrb[0].mxu0 1.0
      %v1223 = vpop.f32.mrb[0].mxu0
      %v1224 = vadd.f32 0.0, %v1223
      %v1225 = vpop.f32.mrb[0].mxu0
      %1226 = vdwg.mxu0
      %vm1227 = vcmp.gt.f32.partialorder %v1156, 0.5
      %v1228 = vsel %vm1227, 1, 0
      %v1229 = vcvt.s32.f32 %v1228
      %vm1230 = vcmp.gt.f32.partialorder %v1224, 0.5
      %v1231 = vsel %vm1230, 1, 0
      %v1232 = vcvt.s32.f32 %v1231
      %v1233 = vlaneseq
      %v1234 = vshrl.u32 %v1233, 7
      %v1235 = vsub.s32 0, %v1234
      %v1236 = vrot.slane %v1232, %v1235
      %v1237 = vmul.f32 %v1229, %v1236
      %v1238 = vmax.f32 %v1156, 1.0
      %v1239 = vrcp.pop %v1238
      %v1240 = vmul.f32 1.0, %v1239
      %v1241 = vpack.c.bf16 %v1154, %v1154
      %v1242 = vpack.c.bf16 %v1114, %v1113
      %v1243 = vpack.c.bf16 %v1116, %v1115
      %v1244 = vpack.c.bf16 %v1118, %v1117
      %v1245 = vpack.c.bf16 %v1120, %v1119
      %v1246 = vpack.c.bf16 %v1122, %v1121
      %v1247 = vpack.c.bf16 %v1124, %v1123
      %v1248 = vpack.c.bf16 %v1126, %v1125
      %v1249 = vpack.c.bf16 %v1128, %v1127
      %1250 = vmatprep.subr.bf16.mxu0 0
      %1251 = vmatpush1.bf16.msra.mxu0 %v1242
      %1252 = vmatprep.subr.bf16.mxu0 0
      %1253 = vmatpush1.bf16.msra.mxu0 %v1243
      %1254 = vmatprep.subr.bf16.mxu0 0
      %1255 = vmatpush1.bf16.msra.mxu0 %v1244
      %1256 = vmatprep.subr.bf16.mxu0 0
      %1257 = vmatpush1.bf16.msra.mxu0 %v1245
      %1258 = vmatprep.subr.bf16.mxu0 0
      %1259 = vmatpush1.bf16.msra.mxu0 %v1246
      %1260 = vmatprep.subr.bf16.mxu0 0
      %1261 = vmatpush1.bf16.msra.mxu0 %v1247
      %1262 = vmatprep.subr.bf16.mxu0 0
      %1263 = vmatpush1.bf16.msra.mxu0 %v1248
      %1264 = vmatprep.subr.bf16.mxu0 0
      %1265 = vmatpush1.bf16.msra.mxu0 %v1249
      %1266 = vmatprep.subr.bf16.mxu0 0
      %1267 = vmatpush1.bf16.msra.mxu0 0
      %1268 = vmatprep.subr.bf16.mxu0 0
      %1269 = vmatpush1.bf16.msra.mxu0 0
      %1270 = vmatprep.subr.bf16.mxu0 0
      %1271 = vmatpush1.bf16.msra.mxu0 0
      %1272 = vmatprep.subr.bf16.mxu0 0
      %1273 = vmatpush1.bf16.msra.mxu0 0
      %1274 = vmatprep.subr.bf16.mxu0 0
      %1275 = vmatpush1.bf16.msra.mxu0 0
      %1276 = vmatprep.subr.bf16.mxu0 0
      %1277 = vmatpush1.bf16.msra.mxu0 0
      %1278 = vmatprep.subr.bf16.mxu0 0
      %1279 = vmatpush1.bf16.msra.mxu0 0
      %1280 = vmatprep.subr.bf16.mxu0 0
      %1281 = vmatpush1.bf16.msra.mxu0 0
      %1282 = vmatprep.mubr.bf16.mxu0 0
      %1283 = vmatmul.mubr.bf16.gmra.mrb[0].mxu0 %v1241
      %v1284 = vpop.f32.mrb[0].mxu0
      %v1285 = vadd.f32 0.0, %v1284
      %v1286 = vpop.f32.mrb[0].mxu0
      %v1287 = vpop.f32.mrb[0].mxu0
      %v1288 = vpop.f32.mrb[0].mxu0
      %1289 = vdwg.mxu0
      %v1290 = vmul.f32 %v1285, %v1240
      %v1291 = vpack.c.bf16 %v1131, %v1130
      %v1292 = vpack.c.bf16 %v1133, %v1132
      %v1293 = vpack.c.bf16 %v1135, %v1134
      %v1294 = vpack.c.bf16 %v1137, %v1136
      %v1295 = vpack.c.bf16 %v1139, %v1138
      %v1296 = vpack.c.bf16 %v1141, %v1140
      %v1297 = vpack.c.bf16 %v1143, %v1142
      %v1298 = vpack.c.bf16 %v1145, %v1144
      %1299 = vmatprep.subr.bf16.mxu0 0
      %1300 = vmatpush1.bf16.msra.mxu0 %v1291
      %1301 = vmatprep.subr.bf16.mxu0 0
      %1302 = vmatpush1.bf16.msra.mxu0 %v1292
      %1303 = vmatprep.subr.bf16.mxu0 0
      %1304 = vmatpush1.bf16.msra.mxu0 %v1293
      %1305 = vmatprep.subr.bf16.mxu0 0
      %1306 = vmatpush1.bf16.msra.mxu0 %v1294
      %1307 = vmatprep.subr.bf16.mxu0 0
      %1308 = vmatpush1.bf16.msra.mxu0 %v1295
      %1309 = vmatprep.subr.bf16.mxu0 0
      %1310 = vmatpush1.bf16.msra.mxu0 %v1296
      %1311 = vmatprep.subr.bf16.mxu0 0
      %1312 = vmatpush1.bf16.msra.mxu0 %v1297
      %1313 = vmatprep.subr.bf16.mxu0 0
      %1314 = vmatpush1.bf16.msra.mxu0 %v1298
      %1315 = vmatprep.subr.bf16.mxu0 0
      %1316 = vmatpush1.bf16.msra.mxu0 0
      %1317 = vmatprep.subr.bf16.mxu0 0
      %1318 = vmatpush1.bf16.msra.mxu0 0
      %1319 = vmatprep.subr.bf16.mxu0 0
      %1320 = vmatpush1.bf16.msra.mxu0 0
      %1321 = vmatprep.subr.bf16.mxu0 0
      %1322 = vmatpush1.bf16.msra.mxu0 0
      %1323 = vmatprep.subr.bf16.mxu0 0
      %1324 = vmatpush1.bf16.msra.mxu0 0
      %1325 = vmatprep.subr.bf16.mxu0 0
      %1326 = vmatpush1.bf16.msra.mxu0 0
      %1327 = vmatprep.subr.bf16.mxu0 0
      %1328 = vmatpush1.bf16.msra.mxu0 0
      %1329 = vmatprep.subr.bf16.mxu0 0
      %1330 = vmatpush1.bf16.msra.mxu0 0
      %1331 = vmatprep.mubr.bf16.mxu0 0
      %1332 = vmatmul.mubr.bf16.gmra.mrb[0].mxu0 %v1241
      %v1333 = vpop.f32.mrb[0].mxu0
      %v1334 = vadd.f32 0.0, %v1333
      %v1335 = vpop.f32.mrb[0].mxu0
      %v1336 = vpop.f32.mrb[0].mxu0
      %v1337 = vpop.f32.mrb[0].mxu0
      %1338 = vdwg.mxu0
      %v1339 = vmul.f32 %v1334, %v1240
      %v1340 = vmul.f32 %v1113, %v1113
      %v1341 = vmul.f32 %v1114, %v1114
      %v1342 = vmul.f32 %v1115, %v1115
      %v1343 = vmul.f32 %v1116, %v1116
      %v1344 = vmul.f32 %v1117, %v1117
      %v1345 = vmul.f32 %v1118, %v1118
      %v1346 = vmul.f32 %v1119, %v1119
      %v1347 = vmul.f32 %v1120, %v1120
      %v1348 = vmul.f32 %v1121, %v1121
      %v1349 = vmul.f32 %v1122, %v1122
      %v1350 = vmul.f32 %v1123, %v1123
      %v1351 = vmul.f32 %v1124, %v1124
      %v1352 = vmul.f32 %v1125, %v1125
      %v1353 = vmul.f32 %v1126, %v1126
      %v1354 = vmul.f32 %v1127, %v1127
      %v1355 = vmul.f32 %v1128, %v1128
      %1356 = vadd.xlane.f32.xlu0 %v1340
      %v1357 = vpop.xlane.xlu0 %1356
      %1358 = vadd.xlane.f32.xlu0 %v1341
      %v1359 = vpop.xlane.xlu0 %1358
      %1360 = vadd.xlane.f32.xlu0 %v1342
      %v1361 = vpop.xlane.xlu0 %1360
      %1362 = vadd.xlane.f32.xlu0 %v1343
      %v1363 = vpop.xlane.xlu0 %1362
      %1364 = vadd.xlane.f32.xlu0 %v1344
      %v1365 = vpop.xlane.xlu0 %1364
      %1366 = vadd.xlane.f32.xlu0 %v1345
      %v1367 = vpop.xlane.xlu0 %1366
      %1368 = vadd.xlane.f32.xlu0 %v1346
      %v1369 = vpop.xlane.xlu0 %1368
      %1370 = vadd.xlane.f32.xlu0 %v1347
      %v1371 = vpop.xlane.xlu0 %1370
      %1372 = vadd.xlane.f32.xlu0 %v1348
      %v1373 = vpop.xlane.xlu0 %1372
      %1374 = vadd.xlane.f32.xlu0 %v1349
      %v1375 = vpop.xlane.xlu0 %1374
      %1376 = vadd.xlane.f32.xlu0 %v1350
      %v1377 = vpop.xlane.xlu0 %1376
      %1378 = vadd.xlane.f32.xlu0 %v1351
      %v1379 = vpop.xlane.xlu0 %1378
      %1380 = vadd.xlane.f32.xlu0 %v1352
      %v1381 = vpop.xlane.xlu0 %1380
      %1382 = vadd.xlane.f32.xlu0 %v1353
      %v1383 = vpop.xlane.xlu0 %1382
      %1384 = vadd.xlane.f32.xlu0 %v1354
      %v1385 = vpop.xlane.xlu0 %1384
      %1386 = vadd.xlane.f32.xlu0 %v1355
      %v1387 = vpop.xlane.xlu0 %1386
      %v1388 = vadd.f32 %v1357, 1e-08
      %v1389 = vadd.f32 %v1359, 1e-08
      %v1390 = vadd.f32 %v1361, 1e-08
      %v1391 = vadd.f32 %v1363, 1e-08
      %v1392 = vadd.f32 %v1365, 1e-08
      %v1393 = vadd.f32 %v1367, 1e-08
      %v1394 = vadd.f32 %v1369, 1e-08
      %v1395 = vadd.f32 %v1371, 1e-08
      %v1396 = vadd.f32 %v1373, 1e-08
      %v1397 = vadd.f32 %v1375, 1e-08
      %v1398 = vadd.f32 %v1377, 1e-08
      %v1399 = vadd.f32 %v1379, 1e-08
      %v1400 = vadd.f32 %v1381, 1e-08
      %v1401 = vadd.f32 %v1383, 1e-08
      %v1402 = vadd.f32 %v1385, 1e-08
      %v1403 = vadd.f32 %v1387, 1e-08
      %v1404 = vrsqrt.pop %v1388
      %v1405 = vrsqrt.pop %v1389
      %v1406 = vrsqrt.pop %v1390
      %v1407 = vrsqrt.pop %v1391
      %v1408 = vrsqrt.pop %v1392
      %v1409 = vrsqrt.pop %v1393
      %v1410 = vrsqrt.pop %v1394
      %v1411 = vrsqrt.pop %v1395
      %v1412 = vrsqrt.pop %v1396
      %v1413 = vrsqrt.pop %v1397
      %v1414 = vrsqrt.pop %v1398
      %v1415 = vrsqrt.pop %v1399
      %v1416 = vrsqrt.pop %v1400
      %v1417 = vrsqrt.pop %v1401
      %v1418 = vrsqrt.pop %v1402
      %v1419 = vrsqrt.pop %v1403
      %v1420 = vmul.f32 %v1113, %v1404
      %v1421 = vmul.f32 %v1114, %v1405
      %v1422 = vmul.f32 %v1115, %v1406
      %v1423 = vmul.f32 %v1116, %v1407
      %v1424 = vmul.f32 %v1117, %v1408
      %v1425 = vmul.f32 %v1118, %v1409
      %v1426 = vmul.f32 %v1119, %v1410
      %v1427 = vmul.f32 %v1120, %v1411
      %v1428 = vmul.f32 %v1121, %v1412
      %v1429 = vmul.f32 %v1122, %v1413
      %v1430 = vmul.f32 %v1123, %v1414
      %v1431 = vmul.f32 %v1124, %v1415
      %v1432 = vmul.f32 %v1125, %v1416
      %v1433 = vmul.f32 %v1126, %v1417
      %v1434 = vmul.f32 %v1127, %v1418
      %v1435 = vmul.f32 %v1128, %v1419
      %v1436 = vmul.f32 %v1290, %v1290
      %1437 = vadd.xlane.f32.xlu0 %v1436
      %v1438 = vpop.xlane.xlu0 %1437
      %v1439 = vadd.f32 %v1438, 1e-08
      %v1440 = vrsqrt.pop %v1439
      %v1441 = vmul.f32 %v1290, %v1440
      %v1442 = vpack.c.bf16 %v1441, %v1441
      %v1443 = vpack.c.bf16 %v1421, %v1420
      %v1444 = vpack.c.bf16 %v1423, %v1422
      %v1445 = vpack.c.bf16 %v1425, %v1424
      %v1446 = vpack.c.bf16 %v1427, %v1426
      %v1447 = vpack.c.bf16 %v1429, %v1428
      %v1448 = vpack.c.bf16 %v1431, %v1430
      %v1449 = vpack.c.bf16 %v1433, %v1432
      %v1450 = vpack.c.bf16 %v1435, %v1434
      %1451 = vmatprep.subr.bf16.mxu0 0
      %1452 = vmatpush1.bf16.xpose.msra.mxu0 %v1443
      %1453 = vmatprep.subr.bf16.mxu0 0
      %1454 = vmatpush1.bf16.xpose.msra.mxu0 %v1444
      %1455 = vmatprep.subr.bf16.mxu0 0
      %1456 = vmatpush1.bf16.xpose.msra.mxu0 %v1445
      %1457 = vmatprep.subr.bf16.mxu0 0
      %1458 = vmatpush1.bf16.xpose.msra.mxu0 %v1446
      %1459 = vmatprep.subr.bf16.mxu0 0
      %1460 = vmatpush1.bf16.xpose.msra.mxu0 %v1447
      %1461 = vmatprep.subr.bf16.mxu0 0
      %1462 = vmatpush1.bf16.xpose.msra.mxu0 %v1448
      %1463 = vmatprep.subr.bf16.mxu0 0
      %1464 = vmatpush1.bf16.xpose.msra.mxu0 %v1449
      %1465 = vmatprep.subr.bf16.mxu0 0
      %1466 = vmatpush1.bf16.xpose.msra.mxu0 %v1450
      %1467 = vmatprep.subr.bf16.mxu0 0
      %1468 = vmatpush1.bf16.xpose.msra.mxu0 0
      %1469 = vmatprep.subr.bf16.mxu0 0
      %1470 = vmatpush1.bf16.xpose.msra.mxu0 0
      %1471 = vmatprep.subr.bf16.mxu0 0
      %1472 = vmatpush1.bf16.xpose.msra.mxu0 0
      %1473 = vmatprep.subr.bf16.mxu0 0
      %1474 = vmatpush1.bf16.xpose.msra.mxu0 0
      %1475 = vmatprep.subr.bf16.mxu0 0
      %1476 = vmatpush1.bf16.xpose.msra.mxu0 0
      %1477 = vmatprep.subr.bf16.mxu0 0
      %1478 = vmatpush1.bf16.xpose.msra.mxu0 0
      %1479 = vmatprep.subr.bf16.mxu0 0
      %1480 = vmatpush1.bf16.xpose.msra.mxu0 0
      %1481 = vmatprep.subr.bf16.mxu0 0
      %1482 = vmatpush1.bf16.xpose.msra.mxu0 0
      %1483 = vmatprep.mubr.bf16.mxu0 0
      %1484 = vmatmul.mubr.bf16.gmra.mrb[0].mxu0 %v1442
      %v1485 = vpop.f32.mrb[0].mxu0
      %v1486 = vadd.f32 0.0, %v1485
      %v1487 = vpop.f32.mrb[0].mxu0
      %v1488 = vpop.f32.mrb[0].mxu0
      %v1489 = vpop.f32.mrb[0].mxu0
      %1490 = vdwg.mxu0
      %v1491 = vmul.f32 %v1486, %v763
      %vm1492 = vcmp.gt.f32.partialorder %v1229, 0.5
      %v1493 = vsel %vm1492, 1, 0
      %vm1494 = vcmp.eq.s32.totalorder %v1493, 1
      %v1495 = vsel %vm1494, %v1491, -1e+09
      %v1496 = vrot.slane %v1495, 4
      %v1497 = vmax.f32 %v1495, %v1496
      %v1498 = vrot.slane %v1497, 2
      %v1499 = vmax.f32 %v1497, %v1498
      %v1500 = vrot.slane %v1499, 1
      %v1501 = vmax.f32 %v1499, %v1500
      %v1502 = vsub.f32 %v1495, %v1501
      %v1503 = vmul.f32 %v1502, 1.442695
      %v1504 = vpow.pop %v1503
      %v1505 = vrot.slane %v1504, 4
      %v1506 = vadd.f32 %v1504, %v1505
      %v1507 = vrot.slane %v1506, 2
      %v1508 = vadd.f32 %v1506, %v1507
      %v1509 = vrot.slane %v1508, 1
      %v1510 = vadd.f32 %v1508, %v1509
      %v1511 = vlog2.pop %v1510
      %v1512 = vmul.f32 %v1511, 0.6931472
      %v1513 = vadd.f32 %v1512, %v1501
      %v1514 = vmul.f32 %v1495, %v1154
      %v1515 = vrot.slane %v1514, 4
      %v1516 = vadd.f32 %v1514, %v1515
      %v1517 = vrot.slane %v1516, 2
      %v1518 = vadd.f32 %v1516, %v1517
      %v1519 = vrot.slane %v1518, 1
      %v1520 = vadd.f32 %v1518, %v1519
      %v1521 = vsub.f32 %v1513, %v1520
      %v1522 = vsel %vm795, %v1521, 0.0
      %1523 = vadd.xlane.f32.xlu0 %v1522
      %v1524 = vpop.xlane.xlu0 %1523
      %v1525 = vrot.slane %v1524, 4
      %v1526 = vadd.f32 %v1524, %v1525
      %v1527 = vrot.slane %v1526, 2
      %v1528 = vadd.f32 %v1526, %v1527
      %v1529 = vrot.slane %v1528, 1
      %v1530 = vadd.f32 %v1528, %v1529
      %s1531 = vtos %v1530
      %v1532 = vrcp.pop 128.0
      %s1533 = vtos %v1532
      %s1534 = smul.f32 %s1531, %s1533
      %v1535 = vsel %vm809, %v1357, 0.0
      %v1536 = vsel %vm809, %v1359, 0.0
      %v1537 = vadd.f32 %v1535, %v1536
      %v1538 = vsel %vm809, %v1361, 0.0
      %v1539 = vadd.f32 %v1537, %v1538
      %v1540 = vsel %vm809, %v1363, 0.0
      %v1541 = vadd.f32 %v1539, %v1540
      %v1542 = vsel %vm809, %v1365, 0.0
      %v1543 = vadd.f32 %v1541, %v1542
      %v1544 = vsel %vm809, %v1367, 0.0
      %v1545 = vadd.f32 %v1543, %v1544
      %v1546 = vsel %vm809, %v1369, 0.0
      %v1547 = vadd.f32 %v1545, %v1546
      %v1548 = vsel %vm809, %v1371, 0.0
      %v1549 = vadd.f32 %v1547, %v1548
      %v1550 = vsel %vm809, %v1373, 0.0
      %v1551 = vadd.f32 %v1549, %v1550
      %v1552 = vsel %vm809, %v1375, 0.0
      %v1553 = vadd.f32 %v1551, %v1552
      %v1554 = vsel %vm809, %v1377, 0.0
      %v1555 = vadd.f32 %v1553, %v1554
      %v1556 = vsel %vm809, %v1379, 0.0
      %v1557 = vadd.f32 %v1555, %v1556
      %v1558 = vsel %vm809, %v1381, 0.0
      %v1559 = vadd.f32 %v1557, %v1558
      %v1560 = vsel %vm809, %v1383, 0.0
      %v1561 = vadd.f32 %v1559, %v1560
      %v1562 = vsel %vm809, %v1385, 0.0
      %v1563 = vadd.f32 %v1561, %v1562
      %v1564 = vsel %vm809, %v1387, 0.0
      %v1565 = vadd.f32 %v1563, %v1564
      %1566 = vadd.xlane.f32.xlu0 %v1565
      %v1567 = vpop.xlane.xlu0 %1566
      %v1568 = vrot.slane %v1567, 4
      %v1569 = vadd.f32 %v1567, %v1568
      %v1570 = vrot.slane %v1569, 2
      %v1571 = vadd.f32 %v1569, %v1570
      %v1572 = vrot.slane %v1571, 1
      %v1573 = vadd.f32 %v1571, %v1572
      %s1574 = vtos %v1573
      %v1575 = vmul.f32 %v1156, %v1438
      %v1576 = vsel %vm809, %v1575, 0.0
      %1577 = vadd.xlane.f32.xlu0 %v1576
      %v1578 = vpop.xlane.xlu0 %1577
      %v1579 = vrot.slane %v1578, 4
      %v1580 = vadd.f32 %v1578, %v1579
      %v1581 = vrot.slane %v1580, 2
      %v1582 = vadd.f32 %v1580, %v1581
      %v1583 = vrot.slane %v1582, 1
      %v1584 = vadd.f32 %v1582, %v1583
      %s1585 = vtos %v1584
      %s1586 = ssub.f32 %s1574, %s1585
      %s1587 = smax.f32 %s1586, 0.0
      %v1588 = vrcp.pop 128.0
      %s1589 = vtos %v1588
      %s1590 = smul.f32 %s1587, %s1589
      %1591 = vmatprep.subr.mxu0 0.0
      %1592 = vmatpush1.xpose.msra.mxu0 %v1441
      %1593 = vmatprep.subr.mxu0 0.0
      %1594 = vmatpush1.xpose.msra.mxu0 0.0
      %1595 = vmatprep.subr.mxu0 0.0
      %1596 = vmatpush1.xpose.msra.mxu0 0.0
      %1597 = vmatprep.subr.mxu0 0.0
      %1598 = vmatpush1.xpose.msra.mxu0 0.0
      %1599 = vmatprep.subr.mxu0 0.0
      %1600 = vmatpush1.xpose.msra.mxu0 0.0
      %1601 = vmatprep.subr.mxu0 0.0
      %1602 = vmatpush1.xpose.msra.mxu0 0.0
      %1603 = vmatprep.subr.mxu0 0.0
      %1604 = vmatpush1.xpose.msra.mxu0 0.0
      %1605 = vmatprep.subr.mxu0 0.0
      %1606 = vmatpush1.xpose.msra.mxu0 0.0
      %1607 = vmatprep.subr.mxu0 0.0
      %1608 = vmatpush1.xpose.msra.mxu0 0.0
      %1609 = vmatprep.subr.mxu0 0.0
      %1610 = vmatpush1.xpose.msra.mxu0 0.0
      %1611 = vmatprep.subr.mxu0 0.0
      %1612 = vmatpush1.xpose.msra.mxu0 0.0
      %1613 = vmatprep.subr.mxu0 0.0
      %1614 = vmatpush1.xpose.msra.mxu0 0.0
      %1615 = vmatprep.subr.mxu0 0.0
      %1616 = vmatpush1.xpose.msra.mxu0 0.0
      %1617 = vmatprep.subr.mxu0 0.0
      %1618 = vmatpush1.xpose.msra.mxu0 0.0
      %1619 = vmatprep.subr.mxu0 0.0
      %1620 = vmatpush1.xpose.msra.mxu0 0.0
      %1621 = vmatprep.subr.mxu0 0.0
      %1622 = vmatpush1.xpose.msra.mxu0 0.0
      %1623 = vmatprep.subr.mxu0 0.0
      %1624 = vmatpush1.xpose.msra.mxu0 0.0
      %1625 = vmatprep.subr.mxu0 0.0
      %1626 = vmatpush1.xpose.msra.mxu0 0.0
      %1627 = vmatprep.subr.mxu0 0.0
      %1628 = vmatpush1.xpose.msra.mxu0 0.0
      %1629 = vmatprep.subr.mxu0 0.0
      %1630 = vmatpush1.xpose.msra.mxu0 0.0
      %1631 = vmatprep.subr.mxu0 0.0
      %1632 = vmatpush1.xpose.msra.mxu0 0.0
      %1633 = vmatprep.subr.mxu0 0.0
      %1634 = vmatpush1.xpose.msra.mxu0 0.0
      %1635 = vmatprep.subr.mxu0 0.0
      %1636 = vmatpush1.xpose.msra.mxu0 0.0
      %1637 = vmatprep.subr.mxu0 0.0
      %1638 = vmatpush1.xpose.msra.mxu0 0.0
      %1639 = vmatprep.subr.mxu0 0.0
      %1640 = vmatpush1.xpose.msra.mxu0 0.0
      %1641 = vmatprep.subr.mxu0 0.0
      %1642 = vmatpush1.xpose.msra.mxu0 0.0
      %1643 = vmatprep.subr.mxu0 0.0
      %1644 = vmatpush1.xpose.msra.mxu0 0.0
      %1645 = vmatprep.subr.mxu0 0.0
      %1646 = vmatpush1.xpose.msra.mxu0 0.0
      %1647 = vmatprep.subr.mxu0 0.0
      %1648 = vmatpush1.xpose.msra.mxu0 0.0
      %1649 = vmatprep.subr.mxu0 0.0
      %1650 = vmatpush1.xpose.msra.mxu0 0.0
      %1651 = vmatprep.subr.mxu0 0.0
      %1652 = vmatpush1.xpose.msra.mxu0 0.0
      %1653 = vmatprep.subr.mxu0 0.0
      %1654 = vmatpush1.xpose.msra.mxu0 0.0
      %1655 = vmatprep.mubr.f32.mxu0 0.0
      %1656 = vmatmul.mubr.f32.gmra.mrb[0].mxu0 %v1441
      %v1657 = vpop.f32.mrb[0].mxu0
      %v1658 = vadd.f32 0.0, %v1657
      %v1659 = vpop.f32.mrb[0].mxu0
      %1660 = vdwg.mxu0
      %v1661 = vmul.f32 %v1658, 2.0
      %v1662 = vsub.f32 2.0, %v1661
      %v1663 = vmax.f32 %v1662, 0.0
      %v1664 = vadd.f32 %v1663, 1e-12
      %v1665 = vrsqrt.pop %v1664
      %v1666 = vmul.f32 %v1664, %v1665
      %vm1667 = vcmp.eq.f32.partialorder %v1664, inf
      %v1668 = vsel %vm1667, %v1664, %v1666
      %vm1669 = vcmp.eq.f32.partialorder %v1664, 0.0
      %v1670 = vand.u32 %v1664, 2147483648
      %v1671 = vsel %vm1669, %v1670, %v1668
      %v1672 = vmul.f32 %v1237, %v322
      %v1673 = vsub.f32 1.0, %v1671
      %v1674 = vmax.f32 %v1673, 0.0
      %v1675 = vmul.f32 %v1674, %v1674
      %v1676 = vmul.f32 %v1675, %v1672
      %v1677 = vsel %vm952, %v1676, 0.0
      %1678 = vadd.xlane.f32.xlu0 %v1677
      %v1679 = vpop.xlane.xlu0 %1678
      %v1680 = vrot.slane %v1679, 4
      %v1681 = vadd.f32 %v1679, %v1680
      %v1682 = vrot.slane %v1681, 2
      %v1683 = vadd.f32 %v1681, %v1682
      %v1684 = vrot.slane %v1683, 1
      %v1685 = vadd.f32 %v1683, %v1684
      %s1686 = vtos %v1685
      %v1687 = vsel %vm952, %v1672, 0.0
      %1688 = vadd.xlane.f32.xlu0 %v1687
      %v1689 = vpop.xlane.xlu0 %1688
      %v1690 = vrot.slane %v1689, 4
      %v1691 = vadd.f32 %v1689, %v1690
      %v1692 = vrot.slane %v1691, 2
      %v1693 = vadd.f32 %v1691, %v1692
      %v1694 = vrot.slane %v1693, 1
      %v1695 = vadd.f32 %v1693, %v1694
      %s1696 = vtos %v1695
      %s1697 = smax.f32 %s1696, 1.0
      %v1698 = vstv %s1697
      %v1699 = vrcp.pop %v1698
      %s1700 = vtos %v1699
      %s1701 = smul.f32 %s1686, %s1700
      %s1702 = sadd.f32 %s1534, %s1701
      %s1703 = smul.f32 %s1590, 0.5
      %s1704 = sadd.f32 %s1702, %s1703
      %s1705 = sadd.f32 %s981, %s1704
      %v1706 = vmul.f32 %v1339, %v1339
      %1707 = vadd.xlane.f32.xlu0 %v1706
      %v1708 = vpop.xlane.xlu0 %1707
      %v1709 = vadd.f32 %v1708, 1e-08
      %v1710 = vrsqrt.pop %v1709
      %v1711 = vmul.f32 %v1339, %v1710
      %v1712 = vmul.f32 %v1147, %v1147
      %1713 = vadd.xlane.f32.xlu0 %v1712
      %v1714 = vpop.xlane.xlu0 %1713
      %v1715 = vadd.f32 %v1714, 1e-08
      %v1716 = vrsqrt.pop %v1715
      %v1717 = vmul.f32 %v1147, %v1716
      %v1718 = vpack.c.bf16 %v1711, %v1711
      %v1719 = vpack.c.bf16 %v1717, %v1717
      %1720 = vmatprep.subr.bf16.mxu0 0
      %1721 = vmatpush1.bf16.xpose.msra.mxu0 %v1719
      %1722 = vmatprep.subr.bf16.mxu0 0
      %1723 = vmatpush1.bf16.xpose.msra.mxu0 0
      %1724 = vmatprep.subr.bf16.mxu0 0
      %1725 = vmatpush1.bf16.xpose.msra.mxu0 0
      %1726 = vmatprep.subr.bf16.mxu0 0
      %1727 = vmatpush1.bf16.xpose.msra.mxu0 0
      %1728 = vmatprep.subr.bf16.mxu0 0
      %1729 = vmatpush1.bf16.xpose.msra.mxu0 0
      %1730 = vmatprep.subr.bf16.mxu0 0
      %1731 = vmatpush1.bf16.xpose.msra.mxu0 0
      %1732 = vmatprep.subr.bf16.mxu0 0
      %1733 = vmatpush1.bf16.xpose.msra.mxu0 0
      %1734 = vmatprep.subr.bf16.mxu0 0
      %1735 = vmatpush1.bf16.xpose.msra.mxu0 0
      %1736 = vmatprep.subr.bf16.mxu0 0
      %1737 = vmatpush1.bf16.xpose.msra.mxu0 0
      %1738 = vmatprep.subr.bf16.mxu0 0
      %1739 = vmatpush1.bf16.xpose.msra.mxu0 0
      %1740 = vmatprep.subr.bf16.mxu0 0
      %1741 = vmatpush1.bf16.xpose.msra.mxu0 0
      %1742 = vmatprep.subr.bf16.mxu0 0
      %1743 = vmatpush1.bf16.xpose.msra.mxu0 0
      %1744 = vmatprep.subr.bf16.mxu0 0
      %1745 = vmatpush1.bf16.xpose.msra.mxu0 0
      %1746 = vmatprep.subr.bf16.mxu0 0
      %1747 = vmatpush1.bf16.xpose.msra.mxu0 0
      %1748 = vmatprep.subr.bf16.mxu0 0
      %1749 = vmatpush1.bf16.xpose.msra.mxu0 0
      %1750 = vmatprep.subr.bf16.mxu0 0
      %1751 = vmatpush1.bf16.xpose.msra.mxu0 0
      %1752 = vmatprep.mubr.bf16.mxu0 0
      %1753 = vmatmul.mubr.bf16.gmra.mrb[0].mxu0 %v1718
      %v1754 = vpop.f32.mrb[0].mxu0
      %v1755 = vadd.f32 0.0, %v1754
      %v1756 = vpop.f32.mrb[0].mxu0
      %v1757 = vpop.f32.mrb[0].mxu0
      %v1758 = vpop.f32.mrb[0].mxu0
      %1759 = vdwg.mxu0
      %vm1760 = vcmp.gt.f32.partialorder %v1232, 0.5
      %v1761 = vmul.f32 %v1755, %v763
      %v1762 = vsel %vm1760, 1, 0
      %v1763 = vlaneseq
      %v1764 = vshrl.u32 %v1763, 7
      %v1765 = vsub.s32 0, %v1764
      %v1766 = vrot.slane %v1762, %v1765
      %vm1767 = vcmp.eq.s32.totalorder %v1766, 1
      %v1768 = vsel %vm1767, %v1761, -1e+09
      %v1769 = vsel %vm952, %v1768, -inf
      %1770 = vmax.xlane.f32.xlu0 %v1769
      %v1771 = vpop.xlane.xlu0 %1770
      %v1772 = vsub.f32 %v1768, %v1771
      %v1773 = vmul.f32 %v1772, 1.442695
      %v1774 = vpow.pop %v1773
      %v1775 = vsel %vm952, %v1774, 0.0
      %1776 = vadd.xlane.f32.xlu0 %v1775
      %v1777 = vpop.xlane.xlu0 %1776
      %v1778 = vlog2.pop %v1777
      %v1779 = vmul.f32 %v1778, 0.6931472
      %v1780 = vadd.f32 %v1779, %v1771
      %v1781 = vmul.f32 %v1768, %v323
      %v1782 = vsel %vm952, %v1781, 0.0
      %1783 = vadd.xlane.f32.xlu0 %v1782
      %v1784 = vpop.xlane.xlu0 %1783
      %v1785 = vsel %vm809, %v1229, 0.0
      %1786 = vadd.xlane.f32.xlu0 %v1785
      %v1787 = vpop.xlane.xlu0 %1786
      %v1788 = vrot.slane %v1787, 4
      %v1789 = vadd.f32 %v1787, %v1788
      %v1790 = vrot.slane %v1789, 2
      %v1791 = vadd.f32 %v1789, %v1790
      %v1792 = vrot.slane %v1791, 1
      %v1793 = vadd.f32 %v1791, %v1792
      %s1794 = vtos %v1793
      %s1795 = smax.f32 %s1794, 1.0
      %v1796 = vsub.f32 %v1780, %v1784
      %v1797 = vmul.f32 %v1796, %v1229
      %v1798 = vsel %vm809, %v1797, 0.0
      %1799 = vadd.xlane.f32.xlu0 %v1798
      %v1800 = vpop.xlane.xlu0 %1799
      %v1801 = vrot.slane %v1800, 4
      %v1802 = vadd.f32 %v1800, %v1801
      %v1803 = vrot.slane %v1802, 2
      %v1804 = vadd.f32 %v1802, %v1803
      %v1805 = vrot.slane %v1804, 1
      %v1806 = vadd.f32 %v1804, %v1805
      %s1807 = vtos %v1806
      %v1808 = vstv %s1795
      %v1809 = vrcp.pop %v1808
      %s1810 = vtos %v1809
      %s1811 = smul.f32 %s1807, %s1810
      %v1812 = vmul.f32 %v1755, %v323
      %v1813 = vsel %vm952, %v1812, 0.0
      %1814 = vadd.xlane.f32.xlu0 %v1813
      %v1815 = vpop.xlane.xlu0 %1814
      %v1816 = vsub.f32 %v1755, %v1815
      %v1817 = vadd.f32 %v1816, 0.2
      %v1818 = vmax.f32 %v1817, 0.0
      %v1819 = vmul.f32 %v1818, %v1672
      %v1820 = vsel %vm952, %v1819, 0.0
      %1821 = vadd.xlane.f32.xlu0 %v1820
      %v1822 = vpop.xlane.xlu0 %1821
      %v1823 = vrot.slane %v1822, 4
      %v1824 = vadd.f32 %v1822, %v1823
      %v1825 = vrot.slane %v1824, 2
      %v1826 = vadd.f32 %v1824, %v1825
      %v1827 = vrot.slane %v1826, 1
      %v1828 = vadd.f32 %v1826, %v1827
      %s1829 = vtos %v1828
      %v1830 = vstv %s1697
      %v1831 = vrcp.pop %v1830
      %s1832 = vtos %v1831
      %s1833 = smul.f32 %s1829, %s1832
      %s1834 = sadd.f32 %s1111, %s1811
      %s1835 = sadd.f32 %s1834, %s1833
      %v1836 = vrcp.pop 2.0
      %s1837 = vtos %v1836
      %s1838 = smul.f32 %s1705, %s1837
      %v1839 = vrcp.pop 2.0
      %s1840 = vtos %v1839
      %s1841 = smul.f32 %s1835, %s1840
      %1858 = vrot.lane.b32.xlu0 %v300, 127
      %v1859 = vpop.permute.xlu0 %1858
      %1860 = vrot.lane.b32.xlu0 %v301, 127
      %v1861 = vpop.permute.xlu0 %1860
      %1862 = vrot.lane.b32.xlu0 %v302, 127
      %v1863 = vpop.permute.xlu0 %1862
      %1864 = vrot.lane.b32.xlu0 %v303, 127
      %v1865 = vpop.permute.xlu0 %1864
      %1866 = vrot.lane.b32.xlu0 %v304, 127
      %v1867 = vpop.permute.xlu0 %1866
      %1868 = vrot.lane.b32.xlu0 %v305, 127
      %v1869 = vpop.permute.xlu0 %1868
      %1870 = vrot.lane.b32.xlu0 %v306, 127
      %v1871 = vpop.permute.xlu0 %1870
      %1872 = vrot.lane.b32.xlu0 %v307, 127
      %v1873 = vpop.permute.xlu0 %1872
      %1874 = vrot.lane.b32.xlu0 %v308, 127
      %v1875 = vpop.permute.xlu0 %1874
      %1876 = vrot.lane.b32.xlu0 %v309, 127
      %v1877 = vpop.permute.xlu0 %1876
      %1878 = vrot.lane.b32.xlu0 %v310, 127
      %v1879 = vpop.permute.xlu0 %1878
      %1880 = vrot.lane.b32.xlu0 %v311, 127
      %v1881 = vpop.permute.xlu0 %1880
      %1882 = vrot.lane.b32.xlu0 %v312, 127
      %v1883 = vpop.permute.xlu0 %1882
      %1884 = vrot.lane.b32.xlu0 %v313, 127
      %v1885 = vpop.permute.xlu0 %1884
      %1886 = vrot.lane.b32.xlu0 %v314, 127
      %v1887 = vpop.permute.xlu0 %1886
      %1888 = vrot.lane.b32.xlu0 %v315, 127
      %v1889 = vpop.permute.xlu0 %1888
      %v1906 = vmul.f32 %v300, %v1859
      %v1907 = vmul.f32 %v301, %v1861
      %v1908 = vmul.f32 %v302, %v1863
      %v1909 = vmul.f32 %v303, %v1865
      %v1910 = vmul.f32 %v304, %v1867
      %v1911 = vmul.f32 %v305, %v1869
      %v1912 = vmul.f32 %v306, %v1871
      %v1913 = vmul.f32 %v307, %v1873
      %v1914 = vmul.f32 %v308, %v1875
      %v1915 = vmul.f32 %v309, %v1877
      %v1916 = vmul.f32 %v310, %v1879
      %v1917 = vmul.f32 %v311, %v1881
      %v1918 = vmul.f32 %v312, %v1883
      %v1919 = vmul.f32 %v313, %v1885
      %v1920 = vmul.f32 %v314, %v1887
      %v1921 = vmul.f32 %v315, %v1889
      %v1922 = vsel %vm809, %v1906, 0.0
      %v1923 = vsel %vm809, %v1907, 0.0
      %v1924 = vadd.f32 %v1922, %v1923
      %v1925 = vsel %vm809, %v1908, 0.0
      %v1926 = vadd.f32 %v1924, %v1925
      %v1927 = vsel %vm809, %v1909, 0.0
      %v1928 = vadd.f32 %v1926, %v1927
      %v1929 = vsel %vm809, %v1910, 0.0
      %v1930 = vadd.f32 %v1928, %v1929
      %v1931 = vsel %vm809, %v1911, 0.0
      %v1932 = vadd.f32 %v1930, %v1931
      %v1933 = vsel %vm809, %v1912, 0.0
      %v1934 = vadd.f32 %v1932, %v1933
      %v1935 = vsel %vm809, %v1913, 0.0
      %v1936 = vadd.f32 %v1934, %v1935
      %v1937 = vsel %vm809, %v1914, 0.0
      %v1938 = vadd.f32 %v1936, %v1937
      %v1939 = vsel %vm809, %v1915, 0.0
      %v1940 = vadd.f32 %v1938, %v1939
      %v1941 = vsel %vm809, %v1916, 0.0
      %v1942 = vadd.f32 %v1940, %v1941
      %v1943 = vsel %vm809, %v1917, 0.0
      %v1944 = vadd.f32 %v1942, %v1943
      %v1945 = vsel %vm809, %v1918, 0.0
      %v1946 = vadd.f32 %v1944, %v1945
      %v1947 = vsel %vm809, %v1919, 0.0
      %v1948 = vadd.f32 %v1946, %v1947
      %v1949 = vsel %vm809, %v1920, 0.0
      %v1950 = vadd.f32 %v1948, %v1949
      %v1951 = vsel %vm809, %v1921, 0.0
      %v1952 = vadd.f32 %v1950, %v1951
      %1953 = vadd.xlane.f32.xlu0 %v1952
      %v1954 = vpop.xlane.xlu0 %1953
      %v1955 = vrot.slane %v1954, 4
      %v1956 = vadd.f32 %v1954, %v1955
      %v1957 = vrot.slane %v1956, 2
      %v1958 = vadd.f32 %v1956, %v1957
      %v1959 = vrot.slane %v1958, 1
      %v1960 = vadd.f32 %v1958, %v1959
      %s1961 = vtos %v1960
      %s1962 = smax.f32 %s1961, 1.0
      %1963 = vmatprep.subr.bf16.mxu0 0
      %1964 = vmatpush1.bf16.xpose.msra.mxu0 %v1443
      %1965 = vmatprep.subr.bf16.mxu0 0
      %1966 = vmatpush1.bf16.xpose.msra.mxu0 %v1444
      %1967 = vmatprep.subr.bf16.mxu0 0
      %1968 = vmatpush1.bf16.xpose.msra.mxu0 %v1445
      %1969 = vmatprep.subr.bf16.mxu0 0
      %1970 = vmatpush1.bf16.xpose.msra.mxu0 %v1446
      %1971 = vmatprep.subr.bf16.mxu0 0
      %1972 = vmatpush1.bf16.xpose.msra.mxu0 %v1447
      %1973 = vmatprep.subr.bf16.mxu0 0
      %1974 = vmatpush1.bf16.xpose.msra.mxu0 %v1448
      %1975 = vmatprep.subr.bf16.mxu0 0
      %1976 = vmatpush1.bf16.xpose.msra.mxu0 %v1449
      %1977 = vmatprep.subr.bf16.mxu0 0
      %1978 = vmatpush1.bf16.xpose.msra.mxu0 %v1450
      %1979 = vmatprep.subr.bf16.mxu0 0
      %1980 = vmatpush1.bf16.xpose.msra.mxu0 0
      %1981 = vmatprep.subr.bf16.mxu0 0
      %1982 = vmatpush1.bf16.xpose.msra.mxu0 0
      %1983 = vmatprep.subr.bf16.mxu0 0
      %1984 = vmatpush1.bf16.xpose.msra.mxu0 0
      %1985 = vmatprep.subr.bf16.mxu0 0
      %1986 = vmatpush1.bf16.xpose.msra.mxu0 0
      %1987 = vmatprep.subr.bf16.mxu0 0
      %1988 = vmatpush1.bf16.xpose.msra.mxu0 0
      %1989 = vmatprep.subr.bf16.mxu0 0
      %1990 = vmatpush1.bf16.xpose.msra.mxu0 0
      %1991 = vmatprep.subr.bf16.mxu0 0
      %1992 = vmatpush1.bf16.xpose.msra.mxu0 0
      %1993 = vmatprep.subr.bf16.mxu0 0
      %1994 = vmatpush1.bf16.xpose.msra.mxu0 0
      %1995 = vmatprep.mubr.bf16.mxu0 0
      %1996 = vmatmul.mubr.bf16.gmra.mrb[0].mxu0 %v715
      %v1997 = vpop.f32.mrb[0].mxu0
      %v1998 = vadd.f32 0.0, %v1997
      %v1999 = vpop.f32.mrb[0].mxu0
      %v2000 = vpop.f32.mrb[0].mxu0
      %v2001 = vadd.f32 0.0, %v2000
      %v2002 = vpop.f32.mrb[0].mxu0
      %2003 = vmatprep.mubr.bf16.mxu0 0
      %2004 = vmatmul.mubr.bf16.gmra.mrb[0].mxu0 %v716
      %v2005 = vpop.f32.mrb[0].mxu0
      %v2006 = vadd.f32 0.0, %v2005
      %v2007 = vpop.f32.mrb[0].mxu0
      %v2008 = vpop.f32.mrb[0].mxu0
      %v2009 = vadd.f32 0.0, %v2008
      %v2010 = vpop.f32.mrb[0].mxu0
      %2011 = vmatprep.mubr.bf16.mxu0 0
      %2012 = vmatmul.mubr.bf16.gmra.mrb[0].mxu0 %v717
      %v2013 = vpop.f32.mrb[0].mxu0
      %v2014 = vadd.f32 0.0, %v2013
      %v2015 = vpop.f32.mrb[0].mxu0
      %v2016 = vpop.f32.mrb[0].mxu0
      %v2017 = vadd.f32 0.0, %v2016
      %v2018 = vpop.f32.mrb[0].mxu0
      %2019 = vmatprep.mubr.bf16.mxu0 0
      %2020 = vmatmul.mubr.bf16.gmra.mrb[0].mxu0 %v718
      %v2021 = vpop.f32.mrb[0].mxu0
      %v2022 = vadd.f32 0.0, %v2021
      %v2023 = vpop.f32.mrb[0].mxu0
      %v2024 = vpop.f32.mrb[0].mxu0
      %v2025 = vadd.f32 0.0, %v2024
      %v2026 = vpop.f32.mrb[0].mxu0
      %2027 = vmatprep.mubr.bf16.mxu0 0
      %2028 = vmatmul.mubr.bf16.gmra.mrb[0].mxu0 %v719
      %v2029 = vpop.f32.mrb[0].mxu0
      %v2030 = vadd.f32 0.0, %v2029
      %v2031 = vpop.f32.mrb[0].mxu0
      %v2032 = vpop.f32.mrb[0].mxu0
      %v2033 = vadd.f32 0.0, %v2032
      %v2034 = vpop.f32.mrb[0].mxu0
      %2035 = vmatprep.mubr.bf16.mxu0 0
      %2036 = vmatmul.mubr.bf16.gmra.mrb[0].mxu0 %v720
      %v2037 = vpop.f32.mrb[0].mxu0
      %v2038 = vadd.f32 0.0, %v2037
      %v2039 = vpop.f32.mrb[0].mxu0
      %v2040 = vpop.f32.mrb[0].mxu0
      %v2041 = vadd.f32 0.0, %v2040
      %v2042 = vpop.f32.mrb[0].mxu0
      %2043 = vmatprep.mubr.bf16.mxu0 0
      %2044 = vmatmul.mubr.bf16.gmra.mrb[0].mxu0 %v721
      %v2045 = vpop.f32.mrb[0].mxu0
      %v2046 = vadd.f32 0.0, %v2045
      %v2047 = vpop.f32.mrb[0].mxu0
      %v2048 = vpop.f32.mrb[0].mxu0
      %v2049 = vadd.f32 0.0, %v2048
      %v2050 = vpop.f32.mrb[0].mxu0
      %2051 = vmatprep.mubr.bf16.mxu0 0
      %2052 = vmatmul.mubr.bf16.gmra.mrb[0].mxu0 %v722
      %v2053 = vpop.f32.mrb[0].mxu0
      %v2054 = vadd.f32 0.0, %v2053
      %v2055 = vpop.f32.mrb[0].mxu0
      %v2056 = vpop.f32.mrb[0].mxu0
      %v2057 = vadd.f32 0.0, %v2056
      %v2058 = vpop.f32.mrb[0].mxu0
      %2059 = vdwg.mxu0
      %v2060 = vmul.f32 %v1998, %v763
      %v2061 = vmul.f32 %v2001, %v763
      %v2062 = vmul.f32 %v2006, %v763
      %v2063 = vmul.f32 %v2009, %v763
      %v2064 = vmul.f32 %v2014, %v763
      %v2065 = vmul.f32 %v2017, %v763
      %v2066 = vmul.f32 %v2022, %v763
      %v2067 = vmul.f32 %v2025, %v763
      %v2068 = vmul.f32 %v2030, %v763
      %v2069 = vmul.f32 %v2033, %v763
      %v2070 = vmul.f32 %v2038, %v763
      %v2071 = vmul.f32 %v2041, %v763
      %v2072 = vmul.f32 %v2046, %v763
      %v2073 = vmul.f32 %v2049, %v763
      %v2074 = vmul.f32 %v2054, %v763
      %v2075 = vmul.f32 %v2057, %v763
      %v2076 = vmul.f32 %v2060, %v371
      %v2077 = vmul.f32 %v2061, %v372
      %v2078 = vmul.f32 %v2062, %v373
      %v2079 = vmul.f32 %v2063, %v374
      %v2080 = vmul.f32 %v2064, %v375
      %v2081 = vmul.f32 %v2065, %v376
      %v2082 = vmul.f32 %v2066, %v377
      %v2083 = vmul.f32 %v2067, %v378
      %v2084 = vmul.f32 %v2068, %v379
      %v2085 = vmul.f32 %v2069, %v380
      %v2086 = vmul.f32 %v2070, %v381
      %v2087 = vmul.f32 %v2071, %v382
      %v2088 = vmul.f32 %v2072, %v383
      %v2089 = vmul.f32 %v2073, %v384
      %v2090 = vmul.f32 %v2074, %v385
      %v2091 = vmul.f32 %v2075, %v386
      %2092 = vadd.xlane.f32.xlu0 %v2076
      %v2093 = vpop.xlane.xlu0 %2092
      %2094 = vadd.xlane.f32.xlu0 %v2077
      %v2095 = vpop.xlane.xlu0 %2094
      %2096 = vadd.xlane.f32.xlu0 %v2078
      %v2097 = vpop.xlane.xlu0 %2096
      %2098 = vadd.xlane.f32.xlu0 %v2079
      %v2099 = vpop.xlane.xlu0 %2098
      %2100 = vadd.xlane.f32.xlu0 %v2080
      %v2101 = vpop.xlane.xlu0 %2100
      %2102 = vadd.xlane.f32.xlu0 %v2081
      %v2103 = vpop.xlane.xlu0 %2102
      %2104 = vadd.xlane.f32.xlu0 %v2082
      %v2105 = vpop.xlane.xlu0 %2104
      %2106 = vadd.xlane.f32.xlu0 %v2083
      %v2107 = vpop.xlane.xlu0 %2106
      %2108 = vadd.xlane.f32.xlu0 %v2084
      %v2109 = vpop.xlane.xlu0 %2108
      %2110 = vadd.xlane.f32.xlu0 %v2085
      %v2111 = vpop.xlane.xlu0 %2110
      %2112 = vadd.xlane.f32.xlu0 %v2086
      %v2113 = vpop.xlane.xlu0 %2112
      %2114 = vadd.xlane.f32.xlu0 %v2087
      %v2115 = vpop.xlane.xlu0 %2114
      %2116 = vadd.xlane.f32.xlu0 %v2088
      %v2117 = vpop.xlane.xlu0 %2116
      %2118 = vadd.xlane.f32.xlu0 %v2089
      %v2119 = vpop.xlane.xlu0 %2118
      %2120 = vadd.xlane.f32.xlu0 %v2090
      %v2121 = vpop.xlane.xlu0 %2120
      %2122 = vadd.xlane.f32.xlu0 %v2091
      %v2123 = vpop.xlane.xlu0 %2122
      %2124 = vmax.xlane.f32.xlu0 %v2060
      %v2125 = vpop.xlane.xlu0 %2124
      %2126 = vmax.xlane.f32.xlu0 %v2061
      %v2127 = vpop.xlane.xlu0 %2126
      %2128 = vmax.xlane.f32.xlu0 %v2062
      %v2129 = vpop.xlane.xlu0 %2128
      %2130 = vmax.xlane.f32.xlu0 %v2063
      %v2131 = vpop.xlane.xlu0 %2130
      %2132 = vmax.xlane.f32.xlu0 %v2064
      %v2133 = vpop.xlane.xlu0 %2132
      %2134 = vmax.xlane.f32.xlu0 %v2065
      %v2135 = vpop.xlane.xlu0 %2134
      %2136 = vmax.xlane.f32.xlu0 %v2066
      %v2137 = vpop.xlane.xlu0 %2136
      %2138 = vmax.xlane.f32.xlu0 %v2067
      %v2139 = vpop.xlane.xlu0 %2138
      %2140 = vmax.xlane.f32.xlu0 %v2068
      %v2141 = vpop.xlane.xlu0 %2140
      %2142 = vmax.xlane.f32.xlu0 %v2069
      %v2143 = vpop.xlane.xlu0 %2142
      %2144 = vmax.xlane.f32.xlu0 %v2070
      %v2145 = vpop.xlane.xlu0 %2144
      %2146 = vmax.xlane.f32.xlu0 %v2071
      %v2147 = vpop.xlane.xlu0 %2146
      %2148 = vmax.xlane.f32.xlu0 %v2072
      %v2149 = vpop.xlane.xlu0 %2148
      %2150 = vmax.xlane.f32.xlu0 %v2073
      %v2151 = vpop.xlane.xlu0 %2150
      %2152 = vmax.xlane.f32.xlu0 %v2074
      %v2153 = vpop.xlane.xlu0 %2152
      %2154 = vmax.xlane.f32.xlu0 %v2075
      %v2155 = vpop.xlane.xlu0 %2154
      %v2156 = vsub.f32 %v2060, %v2125
      %v2157 = vsub.f32 %v2061, %v2127
      %v2158 = vsub.f32 %v2062, %v2129
      %v2159 = vsub.f32 %v2063, %v2131
      %v2160 = vsub.f32 %v2064, %v2133
      %v2161 = vsub.f32 %v2065, %v2135
      %v2162 = vsub.f32 %v2066, %v2137
      %v2163 = vsub.f32 %v2067, %v2139
      %v2164 = vsub.f32 %v2068, %v2141
      %v2165 = vsub.f32 %v2069, %v2143
      %v2166 = vsub.f32 %v2070, %v2145
      %v2167 = vsub.f32 %v2071, %v2147
      %v2168 = vsub.f32 %v2072, %v2149
      %v2169 = vsub.f32 %v2073, %v2151
      %v2170 = vsub.f32 %v2074, %v2153
      %v2171 = vsub.f32 %v2075, %v2155
      %v2172 = vmul.f32 %v2156, 1.442695
      %v2173 = vpow.pop %v2172
      %v2174 = vmul.f32 %v2157, 1.442695
      %v2175 = vpow.pop %v2174
      %v2176 = vmul.f32 %v2158, 1.442695
      %v2177 = vpow.pop %v2176
      %v2178 = vmul.f32 %v2159, 1.442695
      %v2179 = vpow.pop %v2178
      %v2180 = vmul.f32 %v2160, 1.442695
      %v2181 = vpow.pop %v2180
      %v2182 = vmul.f32 %v2161, 1.442695
      %v2183 = vpow.pop %v2182
      %v2184 = vmul.f32 %v2162, 1.442695
      %v2185 = vpow.pop %v2184
      %v2186 = vmul.f32 %v2163, 1.442695
      %v2187 = vpow.pop %v2186
      %v2188 = vmul.f32 %v2164, 1.442695
      %v2189 = vpow.pop %v2188
      %v2190 = vmul.f32 %v2165, 1.442695
      %v2191 = vpow.pop %v2190
      %v2192 = vmul.f32 %v2166, 1.442695
      %v2193 = vpow.pop %v2192
      %v2194 = vmul.f32 %v2167, 1.442695
      %v2195 = vpow.pop %v2194
      %v2196 = vmul.f32 %v2168, 1.442695
      %v2197 = vpow.pop %v2196
      %v2198 = vmul.f32 %v2169, 1.442695
      %v2199 = vpow.pop %v2198
      %v2200 = vmul.f32 %v2170, 1.442695
      %v2201 = vpow.pop %v2200
      %v2202 = vmul.f32 %v2171, 1.442695
      %v2203 = vpow.pop %v2202
      %2204 = vadd.xlane.f32.xlu0 %v2173
      %v2205 = vpop.xlane.xlu0 %2204
      %2206 = vadd.xlane.f32.xlu0 %v2175
      %v2207 = vpop.xlane.xlu0 %2206
      %2208 = vadd.xlane.f32.xlu0 %v2177
      %v2209 = vpop.xlane.xlu0 %2208
      %2210 = vadd.xlane.f32.xlu0 %v2179
      %v2211 = vpop.xlane.xlu0 %2210
      %2212 = vadd.xlane.f32.xlu0 %v2181
      %v2213 = vpop.xlane.xlu0 %2212
      %2214 = vadd.xlane.f32.xlu0 %v2183
      %v2215 = vpop.xlane.xlu0 %2214
      %2216 = vadd.xlane.f32.xlu0 %v2185
      %v2217 = vpop.xlane.xlu0 %2216
      %2218 = vadd.xlane.f32.xlu0 %v2187
      %v2219 = vpop.xlane.xlu0 %2218
      %2220 = vadd.xlane.f32.xlu0 %v2189
      %v2221 = vpop.xlane.xlu0 %2220
      %2222 = vadd.xlane.f32.xlu0 %v2191
      %v2223 = vpop.xlane.xlu0 %2222
      %2224 = vadd.xlane.f32.xlu0 %v2193
      %v2225 = vpop.xlane.xlu0 %2224
      %2226 = vadd.xlane.f32.xlu0 %v2195
      %v2227 = vpop.xlane.xlu0 %2226
      %2228 = vadd.xlane.f32.xlu0 %v2197
      %v2229 = vpop.xlane.xlu0 %2228
      %2230 = vadd.xlane.f32.xlu0 %v2199
      %v2231 = vpop.xlane.xlu0 %2230
      %2232 = vadd.xlane.f32.xlu0 %v2201
      %v2233 = vpop.xlane.xlu0 %2232
      %2234 = vadd.xlane.f32.xlu0 %v2203
      %v2235 = vpop.xlane.xlu0 %2234
      %v2236 = vlog2.pop %v2205
      %v2237 = vmul.f32 %v2236, 0.6931472
      %v2238 = vlog2.pop %v2207
      %v2239 = vmul.f32 %v2238, 0.6931472
      %v2240 = vlog2.pop %v2209
      %v2241 = vmul.f32 %v2240, 0.6931472
      %v2242 = vlog2.pop %v2211
      %v2243 = vmul.f32 %v2242, 0.6931472
      %v2244 = vlog2.pop %v2213
      %v2245 = vmul.f32 %v2244, 0.6931472
      %v2246 = vlog2.pop %v2215
      %v2247 = vmul.f32 %v2246, 0.6931472
      %v2248 = vlog2.pop %v2217
      %v2249 = vmul.f32 %v2248, 0.6931472
      %v2250 = vlog2.pop %v2219
      %v2251 = vmul.f32 %v2250, 0.6931472
      %v2252 = vlog2.pop %v2221
      %v2253 = vmul.f32 %v2252, 0.6931472
      %v2254 = vlog2.pop %v2223
      %v2255 = vmul.f32 %v2254, 0.6931472
      %v2256 = vlog2.pop %v2225
      %v2257 = vmul.f32 %v2256, 0.6931472
      %v2258 = vlog2.pop %v2227
      %v2259 = vmul.f32 %v2258, 0.6931472
      %v2260 = vlog2.pop %v2229
      %v2261 = vmul.f32 %v2260, 0.6931472
      %v2262 = vlog2.pop %v2231
      %v2263 = vmul.f32 %v2262, 0.6931472
      %v2264 = vlog2.pop %v2233
      %v2265 = vmul.f32 %v2264, 0.6931472
      %v2266 = vlog2.pop %v2235
      %v2267 = vmul.f32 %v2266, 0.6931472
      %v2268 = vadd.f32 %v2237, %v2125
      %v2269 = vadd.f32 %v2239, %v2127
      %v2270 = vadd.f32 %v2241, %v2129
      %v2271 = vadd.f32 %v2243, %v2131
      %v2272 = vadd.f32 %v2245, %v2133
      %v2273 = vadd.f32 %v2247, %v2135
      %v2274 = vadd.f32 %v2249, %v2137
      %v2275 = vadd.f32 %v2251, %v2139
      %v2276 = vadd.f32 %v2253, %v2141
      %v2277 = vadd.f32 %v2255, %v2143
      %v2278 = vadd.f32 %v2257, %v2145
      %v2279 = vadd.f32 %v2259, %v2147
      %v2280 = vadd.f32 %v2261, %v2149
      %v2281 = vadd.f32 %v2263, %v2151
      %v2282 = vadd.f32 %v2265, %v2153
      %v2283 = vadd.f32 %v2267, %v2155
      %v2284 = vsub.f32 %v2268, %v2093
      %v2285 = vsub.f32 %v2269, %v2095
      %v2286 = vsub.f32 %v2270, %v2097
      %v2287 = vsub.f32 %v2271, %v2099
      %v2288 = vsub.f32 %v2272, %v2101
      %v2289 = vsub.f32 %v2273, %v2103
      %v2290 = vsub.f32 %v2274, %v2105
      %v2291 = vsub.f32 %v2275, %v2107
      %v2292 = vsub.f32 %v2276, %v2109
      %v2293 = vsub.f32 %v2277, %v2111
      %v2294 = vsub.f32 %v2278, %v2113
      %v2295 = vsub.f32 %v2279, %v2115
      %v2296 = vsub.f32 %v2280, %v2117
      %v2297 = vsub.f32 %v2281, %v2119
      %v2298 = vsub.f32 %v2282, %v2121
      %v2299 = vsub.f32 %v2283, %v2123
      %v2300 = vmul.f32 %v2284, %v1906
      %v2301 = vmul.f32 %v2285, %v1907
      %v2302 = vmul.f32 %v2286, %v1908
      %v2303 = vmul.f32 %v2287, %v1909
      %v2304 = vmul.f32 %v2288, %v1910
      %v2305 = vmul.f32 %v2289, %v1911
      %v2306 = vmul.f32 %v2290, %v1912
      %v2307 = vmul.f32 %v2291, %v1913
      %v2308 = vmul.f32 %v2292, %v1914
      %v2309 = vmul.f32 %v2293, %v1915
      %v2310 = vmul.f32 %v2294, %v1916
      %v2311 = vmul.f32 %v2295, %v1917
      %v2312 = vmul.f32 %v2296, %v1918
      %v2313 = vmul.f32 %v2297, %v1919
      %v2314 = vmul.f32 %v2298, %v1920
      %v2315 = vmul.f32 %v2299, %v1921
      %v2316 = vsel %vm809, %v2300, 0.0
      %v2317 = vsel %vm809, %v2301, 0.0
      %v2318 = vadd.f32 %v2316, %v2317
      %v2319 = vsel %vm809, %v2302, 0.0
      %v2320 = vadd.f32 %v2318, %v2319
      %v2321 = vsel %vm809, %v2303, 0.0
      %v2322 = vadd.f32 %v2320, %v2321
      %v2323 = vsel %vm809, %v2304, 0.0
      %v2324 = vadd.f32 %v2322, %v2323
      %v2325 = vsel %vm809, %v2305, 0.0
      %v2326 = vadd.f32 %v2324, %v2325
      %v2327 = vsel %vm809, %v2306, 0.0
      %v2328 = vadd.f32 %v2326, %v2327
      %v2329 = vsel %vm809, %v2307, 0.0
      %v2330 = vadd.f32 %v2328, %v2329
      %v2331 = vsel %vm809, %v2308, 0.0
      %v2332 = vadd.f32 %v2330, %v2331
      %v2333 = vsel %vm809, %v2309, 0.0
      %v2334 = vadd.f32 %v2332, %v2333
      %v2335 = vsel %vm809, %v2310, 0.0
      %v2336 = vadd.f32 %v2334, %v2335
      %v2337 = vsel %vm809, %v2311, 0.0
      %v2338 = vadd.f32 %v2336, %v2337
      %v2339 = vsel %vm809, %v2312, 0.0
      %v2340 = vadd.f32 %v2338, %v2339
      %v2341 = vsel %vm809, %v2313, 0.0
      %v2342 = vadd.f32 %v2340, %v2341
      %v2343 = vsel %vm809, %v2314, 0.0
      %v2344 = vadd.f32 %v2342, %v2343
      %v2345 = vsel %vm809, %v2315, 0.0
      %v2346 = vadd.f32 %v2344, %v2345
      %2347 = vadd.xlane.f32.xlu0 %v2346
      %v2348 = vpop.xlane.xlu0 %2347
      %v2349 = vrot.slane %v2348, 4
      %v2350 = vadd.f32 %v2348, %v2349
      %v2351 = vrot.slane %v2350, 2
      %v2352 = vadd.f32 %v2350, %v2351
      %v2353 = vrot.slane %v2352, 1
      %v2354 = vadd.f32 %v2352, %v2353
      %s2355 = vtos %v2354
      %v2356 = vstv %s1962
      %v2357 = vrcp.pop %v2356
      %s2358 = vtos %v2357
      %s2359 = smul.f32 %s2355, %s2358
      %s2360 = sadd.f32 %s2359, 0.0
      %v2361 = vmul.f32 %v2093, 0.1
      %v2362 = vmul.f32 %v2095, 0.1
      %v2363 = vmul.f32 %v2097, 0.1
      %v2364 = vmul.f32 %v2099, 0.1
      %v2365 = vmul.f32 %v2101, 0.1
      %v2366 = vmul.f32 %v2103, 0.1
      %v2367 = vmul.f32 %v2105, 0.1
      %v2368 = vmul.f32 %v2107, 0.1
      %v2369 = vmul.f32 %v2109, 0.1
      %v2370 = vmul.f32 %v2111, 0.1
      %v2371 = vmul.f32 %v2113, 0.1
      %v2372 = vmul.f32 %v2115, 0.1
      %v2373 = vmul.f32 %v2117, 0.1
      %v2374 = vmul.f32 %v2119, 0.1
      %v2375 = vmul.f32 %v2121, 0.1
      %v2376 = vmul.f32 %v2123, 0.1
      %v2377 = vsub.f32 1.0, %v2361
      %v2378 = vsub.f32 1.0, %v2362
      %v2379 = vsub.f32 1.0, %v2363
      %v2380 = vsub.f32 1.0, %v2364
      %v2381 = vsub.f32 1.0, %v2365
      %v2382 = vsub.f32 1.0, %v2366
      %v2383 = vsub.f32 1.0, %v2367
      %v2384 = vsub.f32 1.0, %v2368
      %v2385 = vsub.f32 1.0, %v2369
      %v2386 = vsub.f32 1.0, %v2370
      %v2387 = vsub.f32 1.0, %v2371
      %v2388 = vsub.f32 1.0, %v2372
      %v2389 = vsub.f32 1.0, %v2373
      %v2390 = vsub.f32 1.0, %v2374
      %v2391 = vsub.f32 1.0, %v2375
      %v2392 = vsub.f32 1.0, %v2376
      %v2393 = vmul.f32 %v2377, %v1906
      %v2394 = vmul.f32 %v2378, %v1907
      %v2395 = vmul.f32 %v2379, %v1908
      %v2396 = vmul.f32 %v2380, %v1909
      %v2397 = vmul.f32 %v2381, %v1910
      %v2398 = vmul.f32 %v2382, %v1911
      %v2399 = vmul.f32 %v2383, %v1912
      %v2400 = vmul.f32 %v2384, %v1913
      %v2401 = vmul.f32 %v2385, %v1914
      %v2402 = vmul.f32 %v2386, %v1915
      %v2403 = vmul.f32 %v2387, %v1916
      %v2404 = vmul.f32 %v2388, %v1917
      %v2405 = vmul.f32 %v2389, %v1918
      %v2406 = vmul.f32 %v2390, %v1919
      %v2407 = vmul.f32 %v2391, %v1920
      %v2408 = vmul.f32 %v2392, %v1921
      %v2409 = vsel %vm809, %v2393, 0.0
      %v2410 = vsel %vm809, %v2394, 0.0
      %v2411 = vadd.f32 %v2409, %v2410
      %v2412 = vsel %vm809, %v2395, 0.0
      %v2413 = vadd.f32 %v2411, %v2412
      %v2414 = vsel %vm809, %v2396, 0.0
      %v2415 = vadd.f32 %v2413, %v2414
      %v2416 = vsel %vm809, %v2397, 0.0
      %v2417 = vadd.f32 %v2415, %v2416
      %v2418 = vsel %vm809, %v2398, 0.0
      %v2419 = vadd.f32 %v2417, %v2418
      %v2420 = vsel %vm809, %v2399, 0.0
      %v2421 = vadd.f32 %v2419, %v2420
      %v2422 = vsel %vm809, %v2400, 0.0
      %v2423 = vadd.f32 %v2421, %v2422
      %v2424 = vsel %vm809, %v2401, 0.0
      %v2425 = vadd.f32 %v2423, %v2424
      %v2426 = vsel %vm809, %v2402, 0.0
      %v2427 = vadd.f32 %v2425, %v2426
      %v2428 = vsel %vm809, %v2403, 0.0
      %v2429 = vadd.f32 %v2427, %v2428
      %v2430 = vsel %vm809, %v2404, 0.0
      %v2431 = vadd.f32 %v2429, %v2430
      %v2432 = vsel %vm809, %v2405, 0.0
      %v2433 = vadd.f32 %v2431, %v2432
      %v2434 = vsel %vm809, %v2406, 0.0
      %v2435 = vadd.f32 %v2433, %v2434
      %v2436 = vsel %vm809, %v2407, 0.0
      %v2437 = vadd.f32 %v2435, %v2436
      %v2438 = vsel %vm809, %v2408, 0.0
      %v2439 = vadd.f32 %v2437, %v2438
      %2440 = vadd.xlane.f32.xlu0 %v2439
      %v2441 = vpop.xlane.xlu0 %2440
      %v2442 = vrot.slane %v2441, 4
      %v2443 = vadd.f32 %v2441, %v2442
      %v2444 = vrot.slane %v2443, 2
      %v2445 = vadd.f32 %v2443, %v2444
      %v2446 = vrot.slane %v2445, 1
      %v2447 = vadd.f32 %v2445, %v2446
      %s2448 = vtos %v2447
      %v2449 = vstv %s1962
      %v2450 = vrcp.pop %v2449
      %s2451 = vtos %v2450
      %s2452 = smul.f32 %s2448, %s2451
      %s2453 = sadd.f32 %s2452, 0.0
      %s2454 = smul.f32 %s2453, 0.5
      %s2455 = sadd.f32 %s2360, %s2454
      %vm2456 = vcmp.eq.s32.totalorder %v319, 0
      %v2457 = vstv %s1838
      %v2458 = vsel %vm2456, %v2457, 0.0
      %vm2459 = vcmp.eq.s32.totalorder %v319, 1
      %v2460 = vstv %s1841
      %v2461 = vsel %vm2459, %v2460, 0.0
      %v2462 = vadd.f32 %v2458, %v2461
      %vm2463 = vcmp.eq.s32.totalorder %v319, 2
      %v2464 = vstv %s2455
      %v2465 = vsel %vm2463, %v2464, 0.0
      %v2466 = vadd.f32 %v2462, %v2465
      %2467 = vst [vmem:[%s297] sm:$0x1] %v2466
      %p2468 = scmp.lt.s32.totalorder %s16, 1
      %s2469 = scalar_select %p2468, %s16, 1
      %s2470 = scalar_lea.vmem %s5, %s2469
      // Predicated region
      $region41: #{combined_loss.1} parent=39 // pred_check
        %p2471 = pneg %p164
      $region42: #{combined_loss.1} parent=39 // pred_check_branch
        %2473 = sbr.rel (%p2471) target = $region44
      $region43: #{combined_loss.1} parent=39 // pred_region
        _
      $region44: #{combined_loss.1} parent=39 // pred_fallthru
        _
    $region40: #{combined_loss.1} parent=5 // pred_fallthru
      _
    %p2474 = scmp.le.s32.totalorder 2, %s11
    // Predicated region
    $region45: #{combined_loss.1} parent=5 // pred_check
      %p2475 = pneg %p2474
    $region46: #{combined_loss.1} parent=5 // pred_check_branch
      %2477 = sbr.rel (%p2475) target = $region48
    $region47: #{combined_loss.1} parent=5 // pred_region
      %s2478 = ssub.s32 %s11, 2
      // Predicated region
      $region49: #{combined_loss.1} parent=47 // pred_check
        %p2479 = pneg %p170
      $region50: #{combined_loss.1} parent=47 // pred_check_branch
        %2481 = sbr.rel (%p2479) target = $region52
      $region51: #{combined_loss.1} parent=47 // pred_region
        %p2482 = scmp.lt.s32.totalorder %s17, 1
        %s2483 = scalar_select %p2482, %s17, 1
        %s2484 = scalar_lea.vmem %s5, %s2483
      $region52: #{combined_loss.1} parent=47 // pred_fallthru
        _
    $region48: #{combined_loss.1} parent=5 // pred_fallthru
      _
  $region6: #{combined_loss.1} parent=0 // loop_footer
    %s15 = sadd.s32 1, %s11
  $region7: #{combined_loss.1} parent=0 // loop_footer_branch
    %10 = sbr.rel target = $region3
  $region8: #{combined_loss.1} parent=0 // loop_exit
    _

</llo_original>
